<compile_context>
chip_gen: v6e
topology: v6e:2x2x1
jax: 0.10.0
libtpu: 0.0.40
codegen_flags: <defaults>
</compile_context>

<pallas_src>
import functools

import jax
import jax.numpy as jnp
import numpy as np
from jax import lax
from jax.experimental import pallas as pl
from jax.experimental.pallas import tpu as pltpu


# ---------------------------------------------------------------------------
# helpers
# ---------------------------------------------------------------------------
def _layernorm(x, gamma, beta, eps=1e-5):
    """nn.LayerNorm over the last axis (biased variance), f32 math."""
    mean = jnp.mean(x, axis=-1, keepdims=True)
    centered = x - mean
    var = jnp.mean(centered * centered, axis=-1, keepdims=True)
    return centered * lax.rsqrt(var + eps) * gamma + beta


def _pick_block(total, preferred=(256, 128, 64, 32, 16, 8)):
    for b in preferred:
        if total % b == 0:
            return b
    return total


# ---------------------------------------------------------------------------
# Kernel 1: one fused TransformerBlock per batch element (grid = (N,)).
# ---------------------------------------------------------------------------
def _transformer_block_kernel(
        x_ref, mask_ref,
        w_qkv_ref, w_fc_ref, b_fc_ref,
        ln1_g_ref, ln1_b_ref,
        w1_ref, b1_ref, w2_ref, b2_ref,
        ln2_g_ref, ln2_b_ref,
        o_ref, *, heads, head_dim):
    E = heads * head_dim
    x = x_ref[...]                                              # [L, E] f32

    # Fused QKV projection: one lane-dense [L,E] @ [E,3E] MXU matmul.
    # w_qkv is block-diagonal per head, pre-transposed, with the 1/sqrt(E)
    # softmax scale folded into its Q columns on the host.
    qkv = jnp.dot(x, w_qkv_ref[...], preferred_element_type=jnp.float32)
    q, k, v = qkv[:, :E], qkv[:, E:2 * E], qkv[:, 2 * E:]

    # int8 mask, shared by all heads; comparison hoisted out of the head loop.
    neg_mask = mask_ref[...].astype(jnp.float32) == 0           # [L, L]

    # Per-head attention, softmax kept in f32.
    # TODO(synk): for long sequences (v7x: 64 MiB VMEM) the [L, L] energy tile
    # should be k-blocked flash-style; at these sizes it fits comfortably.
    ctx_parts = []
    for h in range(heads):
        sl = slice(h * head_dim, (h + 1) * head_dim)
        q_h, k_h, v_h = q[:, sl], k[:, sl], v[:, sl]
        # q_h @ k_h^T without materializing a transpose.
        energy = lax.dot_general(q_h, k_h, (((1,), (1,)), ((), ())),
                                 preferred_element_type=jnp.float32)
        energy = jnp.where(neg_mask, jnp.float32(-1e20), energy)
        energy = energy - jnp.max(energy, axis=-1, keepdims=True)
        p = jnp.exp(energy)
        denom = jnp.sum(p, axis=-1, keepdims=True)
        attn = p * pl.reciprocal(denom, approx=True)            # EUP, not VALU
        ctx_parts.append(jnp.dot(attn, v_h, preferred_element_type=jnp.float32))
    ctx = jnp.concatenate(ctx_parts, axis=-1)                   # [L, E] lane-dense

    # fc_out fused in-kernel: no HBM round trip for the context slab.
    attn_out = (jnp.dot(ctx, w_fc_ref[...], preferred_element_type=jnp.float32)
                + b_fc_ref[...])

    # residual + LayerNorm 1
    h1 = _layernorm(attn_out + x, ln1_g_ref[...], ln1_b_ref[...])

    # feed-forward (weights pre-transposed on host) + residual + LayerNorm 2
    f = jnp.dot(h1, w1_ref[...], preferred_element_type=jnp.float32) + b1_ref[...]
    f = jnp.maximum(f, 0.0)
    f = jnp.dot(f, w2_ref[...], preferred_element_type=jnp.float32) + b2_ref[...]
    out = _layernorm(f + h1, ln2_g_ref[...], ln2_b_ref[...])

    o_ref[...] = out.astype(o_ref.dtype)


def transformer_block(x, mask_i8, lp, *, embed_size, heads):
    N, L, E = x.shape
    head_dim = embed_size // heads
    kernel = functools.partial(_transformer_block_kernel,
                               heads=heads, head_dim=head_dim)
    # Loop-invariant weights: whole-array VMEM residency, no double buffering.
    resident = pl.BlockSpec(memory_space=pltpu.MemorySpace.VMEM)
    return pl.pallas_call(
        kernel,
        out_shape=jax.ShapeDtypeStruct((N, L, E), x.dtype),
        grid=(N,),
        in_specs=[
            pl.BlockSpec((None, L, E), lambda n: (n, 0, 0)),          # x
            pl.BlockSpec((None, None, L, L), lambda n: (n, 0, 0, 0)),  # mask int8
            resident, resident, resident,            # w_qkv, w_fc_t, b_fc
            resident, resident,                      # ln1 gamma / beta
            resident, resident, resident, resident,  # w1_t, b1, w2_t, b2
            resident, resident,                      # ln2 gamma / beta
        ],
        out_specs=pl.BlockSpec((None, L, E), lambda n: (n, 0, 0)),
        compiler_params=pltpu.CompilerParams(
            dimension_semantics=("parallel",)),      # shards across v7x TCs
    )(x, mask_i8,
      lp["w_qkv"], lp["w_fc_t"], lp["b_fc"],
      lp["ln1_g"], lp["ln1_b"],
      lp["w1_t"], lp["b1"], lp["w2_t"], lp["b2"],
      lp["ln2_g"], lp["ln2_b"])


# ---------------------------------------------------------------------------
# Kernel 2: final vocab projection, tiled over a flattened (N*seq, vocab) grid.
# ---------------------------------------------------------------------------
def _linear_kernel(x_ref, w_ref, b_ref, o_ref):
    o_ref[...] = (jnp.dot(x_ref[...], w_ref[...],
                          preferred_element_type=jnp.float32)
                  + b_ref[...]).astype(o_ref.dtype)


def linear_tiled(x2d, w_t, b):
    M, K = x2d.shape
    _, Nc = w_t.shape
    mb = _pick_block(M)
    nb = _pick_block(Nc)
    return pl.pallas_call(
        _linear_kernel,
        out_shape=jax.ShapeDtypeStruct((M, Nc), jnp.float32),
        grid=(M // mb, Nc // nb),
        in_specs=[
            pl.BlockSpec((mb, K), lambda i, j: (i, 0)),
            pl.BlockSpec((K, nb), lambda i, j: (0, j)),
            pl.BlockSpec((1, nb), lambda i, j: (0, j)),
        ],
        out_specs=pl.BlockSpec((mb, nb), lambda i, j: (i, j)),
        compiler_params=pltpu.CompilerParams(
            dimension_semantics=("parallel", "parallel")),
    )(x2d, w_t, b)


# ---------------------------------------------------------------------------
# Host-side (one-time) weight preparation: fuse + pre-transpose nn.Linear.
# ---------------------------------------------------------------------------
def _block_diag_t(w, heads):
    """block_diag(w.T, ..., w.T): applies the per-head nn.Linear to the
    flattened [*, heads*head_dim] layout with a single matmul."""
    d = w.shape[0]
    wt = np.asarray(w, np.float32).T
    out = np.zeros((heads * d, heads * d), np.float32)
    for h in range(heads):
        out[h * d:(h + 1) * d, h * d:(h + 1) * d] = wt
    return out


def prepare_params(raw, *, embed_size, heads):
    scale = 1.0 / float(embed_size) ** 0.5
    layers = []
    for lp in raw["layers"]:
        w_qkv = np.concatenate(
            [_block_diag_t(lp["wq"], heads) * scale,   # fold softmax scale into Q
             _block_diag_t(lp["wk"], heads),
             _block_diag_t(lp["wv"], heads)], axis=1)
        layers.append({
            "w_qkv": jnp.asarray(w_qkv),
            "w_fc_t": jnp.asarray(lp["w_fc"]).T,
            "b_fc": jnp.asarray(lp["b_fc"]).reshape(1, -1),
            "ln1_g": jnp.asarray(lp["ln1_g"]).reshape(1, -1),
            "ln1_b": jnp.asarray(lp["ln1_b"]).reshape(1, -1),
            "w1_t": jnp.asarray(lp["w1"]).T,
            "b1": jnp.asarray(lp["b1"]).reshape(1, -1),
            "w2_t": jnp.asarray(lp["w2"]).T,
            "b2": jnp.asarray(lp["b2"]).reshape(1, -1),
            "ln2_g": jnp.asarray(lp["ln2_g"]).reshape(1, -1),
            "ln2_b": jnp.asarray(lp["ln2_b"]).reshape(1, -1),
        })
    return {
        "embedding": raw["embedding"],
        "layers": layers,
        "w_vocab_t": jnp.asarray(raw["w_vocab"]).T,
        "b_vocab": jnp.asarray(raw["b_vocab"]).reshape(1, -1),
    }


def gpt2_forward(token_ids, mask, params, *, embed_size, heads):
    """GPT2.forward: embedding -> transformer blocks -> vocab projection."""
    # TODO(synk): embedding row-gather is left to XLA take(); a scalar-prefetch
    # Pallas gather kernel adds nothing at these sizes.
    x = jnp.take(params["embedding"], token_ids, axis=0)       # [N, L, E] f32
    mask_i8 = (mask != 0).astype(jnp.int8)                     # 4x less mask DMA
    for lp in params["layers"]:
        x = transformer_block(x, mask_i8, lp, embed_size=embed_size, heads=heads)
    N, L, E = x.shape
    logits = linear_tiled(x.reshape(N * L, E),                 # free reshape
                          params["w_vocab_t"], params["b_vocab"])
    return logits.reshape(N, L, -1)


# ---------------------------------------------------------------------------
# Pure-JAX reference (mirrors the PyTorch forward exactly).
# ---------------------------------------------------------------------------
def _ln_ref(x, g, b, eps=1e-5):
    m = x.mean(-1, keepdims=True)
    v = ((x - m) ** 2).mean(-1, keepdims=True)
    return (x - m) / jnp.sqrt(v + eps) * g + b


def _reference_gpt2(token_ids, mask, raw, *, embed_size, heads):
    head_dim = embed_size // heads
    x = raw["embedding"][token_ids]
    N, L, E = x.shape
    for lp in raw["layers"]:
        xh = x.reshape(N, L, heads, head_dim)
        v = xh @ lp["wv"].T
        k = xh @ lp["wk"].T
        q = xh @ lp["wq"].T
        energy = jnp.einsum("nqhd,nkhd->nhqk", q, k)
        energy = jnp.where(mask == 0, -1e20, energy)
        attn = jax.nn.softmax(energy / (embed_size ** 0.5), axis=3)
        ctx = jnp.einsum("nhql,nlhd->nqhd", attn, v).reshape(N, L, E)
        attn_out = ctx @ lp["w_fc"].T + lp["b_fc"]
        h1 = _ln_ref(attn_out + x, lp["ln1_g"], lp["ln1_b"])
        f = jnp.maximum(h1 @ lp["w1"].T + lp["b1"], 0.0) @ lp["w2"].T + lp["b2"]
        x = _ln_ref(f + h1, lp["ln2_g"], lp["ln2_b"])
    return x @ raw["w_vocab"].T + raw["b_vocab"]


if __name__ == "__main__":
    # Small shapes consistent with the module (GPT2(vocab, embed, heads, layers)).
    N, seq_len = 2, 16
    vocab_size = 512
    embed_size, heads, num_layers = 128, 4, 2
    head_dim = embed_size // heads

    key = jax.random.PRNGKey(0)

    def nrm(k, shape, scale):
        return jax.random.normal(k, shape, jnp.float32) * scale

    key, k_tok = jax.random.split(key)
    token_ids = jax.random.randint(k_tok, (N, seq_len), 0, vocab_size)
    mask = jnp.ones((N, 1, seq_len, seq_len), jnp.float32)     # as in the module

    raw_layers = []
    for _ in range(num_layers):
        key, *ks = jax.random.split(key, 14)
        raw_layers.append({
            "wq": nrm(ks[0], (head_dim, head_dim), 0.1),
            "wk": nrm(ks[1], (head_dim, head_dim), 0.1),
            "wv": nrm(ks[2], (head_dim, head_dim), 0.1),
            "w_fc": nrm(ks[3], (embed_size, embed_size), 0.05),
            "b_fc": nrm(ks[4], (embed_size,), 0.05),
            "ln1_g": 1.0 + nrm(ks[5], (embed_size,), 0.05),
            "ln1_b": nrm(ks[6], (embed_size,), 0.05),
            "w1": nrm(ks[7], (4 * embed_size, embed_size), 0.05),
            "b1": nrm(ks[8], (4 * embed_size,), 0.05),
            "w2": nrm(ks[9], (embed_size, 4 * embed_size), 0.05),
            "b2": nrm(ks[10], (embed_size,), 0.05),
            "ln2_g": 1.0 + nrm(ks[11], (embed_size,), 0.05),
            "ln2_b": nrm(ks[12], (embed_size,), 0.05),
        })
    key, k_emb, k_wv, k_bv = jax.random.split(key, 4)
    raw = {
        "embedding": nrm(k_emb, (vocab_size, embed_size), 1.0),
        "layers": raw_layers,
        "w_vocab": nrm(k_wv, (vocab_size, embed_size), 0.05),
        "b_vocab": nrm(k_bv, (vocab_size,), 0.05),
    }

    params = prepare_params(raw, embed_size=embed_size, heads=heads)

    fwd = jax.jit(functools.partial(gpt2_forward,
                                    embed_size=embed_size, heads=heads))
    logits = jax.block_until_ready(fwd(token_ids, mask, params))

    ref = _reference_gpt2(token_ids, mask, raw,
                          embed_size=embed_size, heads=heads)
    # Tolerance accounts for the EUP approximate reciprocal used in the
    # kernel softmax (pl.reciprocal(approx=True)); exact-math agreement ~1e-5.
    np.testing.assert_allclose(np.asarray(logits), np.asarray(ref),
                               rtol=2e-2, atol=2e-2)

    print("KERNEL_OK")
</pallas_src>

<mosaic_0001>
module attributes {stable_mosaic.version = 11 : i64} {
  func.func @_linear_kernel(%arg0: i32, %arg1: i32, %arg2: memref<32x128xf32, #tpu.memory_space<vmem>>, %arg3: memref<128x256xf32, #tpu.memory_space<vmem>>, %arg4: memref<1x256xf32, #tpu.memory_space<vmem>>, %arg5: memref<32x256xf32, #tpu.memory_space<vmem>>) attributes {dimension_semantics = [#tpu.dimension_semantics<parallel>, #tpu.dimension_semantics<parallel>], iteration_bounds = array<i64: 1, 2>, scalar_prefetch = 0 : i64, scratch_operands = 0 : i64, tpu.core_type = #tpu.core_type<tc>, window_params = [{transform_indices = @transform_0, window_bounds = array<i64: 32, 128>}, {transform_indices = @transform_1, window_bounds = array<i64: 128, 256>}, {transform_indices = @transform_2, window_bounds = array<i64: 1, 256>}, {transform_indices = @transform_3, window_bounds = array<i64: 32, 256>}]} {
    %c0 = arith.constant 0 : index
    %c0_0 = arith.constant 0 : index
    %0 = vector.load %arg2[%c0, %c0_0] : memref<32x128xf32, #tpu.memory_space<vmem>>, vector<32x128xf32>
    %c0_1 = arith.constant 0 : index
    %c0_2 = arith.constant 0 : index
    %1 = vector.load %arg3[%c0_1, %c0_2] : memref<128x256xf32, #tpu.memory_space<vmem>>, vector<128x256xf32>
    %cst = arith.constant dense<0.000000e+00> : vector<32x256xf32>
    %2 = tpu.matmul %0, %1, %cst {dimension_numbers = #tpu.dot_dimension_numbers<[1], [0], [0], [1], [0, 0, 1, 1], [], []>} : vector<32x128xf32>, vector<128x256xf32>, vector<32x256xf32> -> vector<32x256xf32>
    %c0_3 = arith.constant 0 : index
    %c0_4 = arith.constant 0 : index
    %3 = vector.load %arg4[%c0_3, %c0_4] : memref<1x256xf32, #tpu.memory_space<vmem>>, vector<1x256xf32>
    %4 = vector.broadcast %3 : vector<1x256xf32> to vector<32x256xf32>
    %5 = arith.addf %2, %4 : vector<32x256xf32>
    %c0_5 = arith.constant 0 : index
    %c0_6 = arith.constant 0 : index
    %6 = vector.load %arg5[%c0_5, %c0_6] : memref<32x256xf32, #tpu.memory_space<vmem>>, vector<32x256xf32>
    tpu.vector_store %arg5[%c0_5, %c0_6], %5 {strides = array<i32>} : memref<32x256xf32, #tpu.memory_space<vmem>>, vector<32x256xf32>,
    return
  }
  func.func @transform_0(%arg0: i32, %arg1: i32) -> (i32, i32) {
    %c0_i32 = arith.constant 0 : i32
    %c0_i32_0 = arith.constant 0 : i32
    return %arg0, %c0_i32 : i32, i32
  }
  func.func @transform_1(%arg0: i32, %arg1: i32) -> (i32, i32) {
    %c0_i32 = arith.constant 0 : i32
    %c0_i32_0 = arith.constant 0 : i32
    return %c0_i32, %arg1 : i32, i32
  }
  func.func @transform_2(%arg0: i32, %arg1: i32) -> (i32, i32) {
    %c0_i32 = arith.constant 0 : i32
    %c0_i32_0 = arith.constant 0 : i32
    return %c0_i32, %arg1 : i32, i32
  }
  func.func @transform_3(%arg0: i32, %arg1: i32) -> (i32, i32) {
    %c0_i32 = arith.constant 0 : i32
    return %arg0, %arg1 : i32, i32
  }
}

module attributes {stable_mosaic.version = 11 : i64} {
  func.func @_transformer_block_kernel(%arg0: i32, %arg1: memref<1x16x128xf32, #tpu.memory_space<vmem>>, %arg2: memref<1x1x16x16xi8, #tpu.memory_space<vmem>>, %arg3: memref<128x384xf32, #tpu.memory_space<vmem>>, %arg4: memref<128x128xf32, #tpu.memory_space<vmem>>, %arg5: memref<1x128xf32, #tpu.memory_space<vmem>>, %arg6: memref<1x128xf32, #tpu.memory_space<vmem>>, %arg7: memref<1x128xf32, #tpu.memory_space<vmem>>, %arg8: memref<128x512xf32, #tpu.memory_space<vmem>>, %arg9: memref<1x512xf32, #tpu.memory_space<vmem>>, %arg10: memref<512x128xf32, #tpu.memory_space<vmem>>, %arg11: memref<1x128xf32, #tpu.memory_space<vmem>>, %arg12: memref<1x128xf32, #tpu.memory_space<vmem>>, %arg13: memref<1x128xf32, #tpu.memory_space<vmem>>, %arg14: memref<1x16x128xf32, #tpu.memory_space<vmem>>) attributes {dimension_semantics = [#tpu.dimension_semantics<parallel>], iteration_bounds = array<i64: 2>, scalar_prefetch = 0 : i64, scratch_operands = 0 : i64, tpu.core_type = #tpu.core_type<tc>, window_params = [{transform_indices = @transform_0, window_bounds = array<i64: 1, 16, 128>}, {transform_indices = @transform_1, window_bounds = array<i64: 1, 1, 16, 16>}, {pipeline_mode = #tpu.pipeline_mode<synchronous>, transform_indices = @transform_2, window_bounds = array<i64: 128, 384>}, {pipeline_mode = #tpu.pipeline_mode<synchronous>, transform_indices = @transform_3, window_bounds = array<i64: 128, 128>}, {pipeline_mode = #tpu.pipeline_mode<synchronous>, transform_indices = @transform_4, window_bounds = array<i64: 1, 128>}, {pipeline_mode = #tpu.pipeline_mode<synchronous>, transform_indices = @transform_5, window_bounds = array<i64: 1, 128>}, {pipeline_mode = #tpu.pipeline_mode<synchronous>, transform_indices = @transform_6, window_bounds = array<i64: 1, 128>}, {pipeline_mode = #tpu.pipeline_mode<synchronous>, transform_indices = @transform_7, window_bounds = array<i64: 128, 512>}, {pipeline_mode = #tpu.pipeline_mode<synchronous>, transform_indices = @transform_8, window_bounds = array<i64: 1, 512>}, {pipeline_mode = #tpu.pipeline_mode<synchronous>, transform_indices = @transform_9, window_bounds = array<i64: 512, 128>}, {pipeline_mode = #tpu.pipeline_mode<synchronous>, transform_indices = @transform_10, window_bounds = array<i64: 1, 128>}, {pipeline_mode = #tpu.pipeline_mode<synchronous>, transform_indices = @transform_11, window_bounds = array<i64: 1, 128>}, {pipeline_mode = #tpu.pipeline_mode<synchronous>, transform_indices = @transform_12, window_bounds = array<i64: 1, 128>}, {transform_indices = @transform_13, window_bounds = array<i64: 1, 16, 128>}]} {
    %c0 = arith.constant 0 : index
    %c0_0 = arith.constant 0 : index
    %c0_1 = arith.constant 0 : index
    %0 = vector.load %arg1[%c0, %c0_0, %c0_1] : memref<1x16x128xf32, #tpu.memory_space<vmem>>, vector<1x16x128xf32>
    %1 = vector.shape_cast %0 : vector<1x16x128xf32> to vector<16x128xf32>
    %c0_2 = arith.constant 0 : index
    %c0_3 = arith.constant 0 : index
    %2 = vector.load %arg3[%c0_2, %c0_3] : memref<128x384xf32, #tpu.memory_space<vmem>>, vector<128x384xf32>
    %cst = arith.constant dense<0.000000e+00> : vector<16x384xf32>
    %3 = tpu.matmul %1, %2, %cst {dimension_numbers = #tpu.dot_dimension_numbers<[1], [0], [0], [1], [0, 0, 1, 1], [], []>} : vector<16x128xf32>, vector<128x384xf32>, vector<16x384xf32> -> vector<16x384xf32>
    %4 = vector.extract_strided_slice %3 {offsets = [0, 0], sizes = [16, 128], strides = [1, 1]} : vector<16x384xf32> to vector<16x128xf32>
    %5 = vector.extract_strided_slice %3 {offsets = [0, 128], sizes = [16, 128], strides = [1, 1]} : vector<16x384xf32> to vector<16x128xf32>
    %6 = vector.extract_strided_slice %3 {offsets = [0, 256], sizes = [16, 128], strides = [1, 1]} : vector<16x384xf32> to vector<16x128xf32>
    %c0_4 = arith.constant 0 : index
    %c0_5 = arith.constant 0 : index
    %c0_6 = arith.constant 0 : index
    %c0_7 = arith.constant 0 : index
    %7 = vector.load %arg2[%c0_4, %c0_5, %c0_6, %c0_7] : memref<1x1x16x16xi8, #tpu.memory_space<vmem>>, vector<1x1x16x16xi8>
    %8 = vector.shape_cast %7 : vector<1x1x16x16xi8> to vector<16x16xi8>
    %9 = arith.sitofp %8 : vector<16x16xi8> to vector<16x16xf32>
    %cst_8 = arith.constant 0.000000e+00 : f32
    %10 = vector.broadcast %cst_8 : f32 to vector<16x16xf32>
    %11 = arith.cmpf oeq, %9, %10 : vector<16x16xf32>
    %12 = vector.extract_strided_slice %4 {offsets = [0, 0], sizes = [16, 32], strides = [1, 1]} : vector<16x128xf32> to vector<16x32xf32>
    %13 = vector.extract_strided_slice %5 {offsets = [0, 0], sizes = [16, 32], strides = [1, 1]} : vector<16x128xf32> to vector<16x32xf32>
    %14 = vector.extract_strided_slice %6 {offsets = [0, 0], sizes = [16, 32], strides = [1, 1]} : vector<16x128xf32> to vector<16x32xf32>
    %cst_9 = arith.constant dense<0.000000e+00> : vector<16x16xf32>
    %15 = tpu.matmul %12, %13, %cst_9 {dimension_numbers = #tpu.dot_dimension_numbers<[1], [1], [0], [0], [0, 0, 1, 0], [], []>} : vector<16x32xf32>, vector<16x32xf32>, vector<16x16xf32> -> vector<16x16xf32>
    %cst_10 = arith.constant -1.000000e+20 : f32
    %16 = vector.broadcast %cst_10 : f32 to vector<16x16xf32>
    %17 = arith.select %11, %16, %15 : vector<16x16xi1>, vector<16x16xf32>
    %cst_11 = arith.constant dense<0xFF800000> : vector<16xf32>
    %18 = vector.multi_reduction <maximumf>, %17, %cst_11 [1] : vector<16x16xf32> to vector<16xf32>
    %19 = vector.shape_cast %18 : vector<16xf32> to vector<16x1xf32>
    %20 = vector.broadcast %19 : vector<16x1xf32> to vector<16x16xf32>
    %21 = arith.subf %17, %20 : vector<16x16xf32>
    %22 = math.exp %21 : vector<16x16xf32>
    %cst_12 = arith.constant dense<0.000000e+00> : vector<16xf32>
    %23 = vector.multi_reduction <add>, %22, %cst_12 [1] : vector<16x16xf32> to vector<16xf32>
    %24 = vector.shape_cast %23 : vector<16xf32> to vector<16x1xf32>
    %25 = tpu.reciprocal %24 {approx = true} : vector<16x1xf32> -> vector<16x1xf32>
    %26 = vector.broadcast %25 : vector<16x1xf32> to vector<16x16xf32>
    %27 = arith.mulf %22, %26 : vector<16x16xf32>
    %cst_13 = arith.constant dense<0.000000e+00> : vector<16x32xf32>
    %28 = tpu.matmul %27, %14, %cst_13 {dimension_numbers = #tpu.dot_dimension_numbers<[1], [0], [0], [1], [0, 0, 1, 1], [], []>} : vector<16x16xf32>, vector<16x32xf32>, vector<16x32xf32> -> vector<16x32xf32>
    %29 = vector.extract_strided_slice %4 {offsets = [0, 32], sizes = [16, 32], strides = [1, 1]} : vector<16x128xf32> to vector<16x32xf32>
    %30 = vector.extract_strided_slice %5 {offsets = [0, 32], sizes = [16, 32], strides = [1, 1]} : vector<16x128xf32> to vector<16x32xf32>
    %31 = vector.extract_strided_slice %6 {offsets = [0, 32], sizes = [16, 32], strides = [1, 1]} : vector<16x128xf32> to vector<16x32xf32>
    %cst_14 = arith.constant dense<0.000000e+00> : vector<16x16xf32>
    %32 = tpu.matmul %29, %30, %cst_14 {dimension_numbers = #tpu.dot_dimension_numbers<[1], [1], [0], [0], [0, 0, 1, 0], [], []>} : vector<16x32xf32>, vector<16x32xf32>, vector<16x16xf32> -> vector<16x16xf32>
    %cst_15 = arith.constant -1.000000e+20 : f32
    %33 = vector.broadcast %cst_15 : f32 to vector<16x16xf32>
    %34 = arith.select %11, %33, %32 : vector<16x16xi1>, vector<16x16xf32>
    %cst_16 = arith.constant dense<0xFF800000> : vector<16xf32>
    %35 = vector.multi_reduction <maximumf>, %34, %cst_16 [1] : vector<16x16xf32> to vector<16xf32>
    %36 = vector.shape_cast %35 : vector<16xf32> to vector<16x1xf32>
    %37 = vector.broadcast %36 : vector<16x1xf32> to vector<16x16xf32>
    %38 = arith.subf %34, %37 : vector<16x16xf32>
    %39 = math.exp %38 : vector<16x16xf32>
    %cst_17 = arith.constant dense<0.000000e+00> : vector<16xf32>
    %40 = vector.multi_reduction <add>, %39, %cst_17 [1] : vector<16x16xf32> to vector<16xf32>
    %41 = vector.shape_cast %40 : vector<16xf32> to vector<16x1xf32>
    %42 = tpu.reciprocal %41 {approx = true} : vector<16x1xf32> -> vector<16x1xf32>
    %43 = vector.broadcast %42 : vector<16x1xf32> to vector<16x16xf32>
    %44 = arith.mulf %39, %43 : vector<16x16xf32>
    %cst_18 = arith.constant dense<0.000000e+00> : vector<16x32xf32>
    %45 = tpu.matmul %44, %31, %cst_18 {dimension_numbers = #tpu.dot_dimension_numbers<[1], [0], [0], [1], [0, 0, 1, 1], [], []>} : vector<16x16xf32>, vector<16x32xf32>, vector<16x32xf32> -> vector<16x32xf32>
    %46 = vector.extract_strided_slice %4 {offsets = [0, 64], sizes = [16, 32], strides = [1, 1]} : vector<16x128xf32> to vector<16x32xf32>
    %47 = vector.extract_strided_slice %5 {offsets = [0, 64], sizes = [16, 32], strides = [1, 1]} : vector<16x128xf32> to vector<16x32xf32>
    %48 = vector.extract_strided_slice %6 {offsets = [0, 64], sizes = [16, 32], strides = [1, 1]} : vector<16x128xf32> to vector<16x32xf32>
    %cst_19 = arith.constant dense<0.000000e+00> : vector<16x16xf32>
    %49 = tpu.matmul %46, %47, %cst_19 {dimension_numbers = #tpu.dot_dimension_numbers<[1], [1], [0], [0], [0, 0, 1, 0], [], []>} : vector<16x32xf32>, vector<16x32xf32>, vector<16x16xf32> -> vector<16x16xf32>
    %cst_20 = arith.constant -1.000000e+20 : f32
    %50 = vector.broadcast %cst_20 : f32 to vector<16x16xf32>
    %51 = arith.select %11, %50, %49 : vector<16x16xi1>, vector<16x16xf32>
    %cst_21 = arith.constant dense<0xFF800000> : vector<16xf32>
    %52 = vector.multi_reduction <maximumf>, %51, %cst_21 [1] : vector<16x16xf32> to vector<16xf32>
    %53 = vector.shape_cast %52 : vector<16xf32> to vector<16x1xf32>
    %54 = vector.broadcast %53 : vector<16x1xf32> to vector<16x16xf32>
    %55 = arith.subf %51, %54 : vector<16x16xf32>
    %56 = math.exp %55 : vector<16x16xf32>
    %cst_22 = arith.constant dense<0.000000e+00> : vector<16xf32>
    %57 = vector.multi_reduction <add>, %56, %cst_22 [1] : vector<16x16xf32> to vector<16xf32>
    %58 = vector.shape_cast %57 : vector<16xf32> to vector<16x1xf32>
    %59 = tpu.reciprocal %58 {approx = true} : vector<16x1xf32> -> vector<16x1xf32>
    %60 = vector.broadcast %59 : vector<16x1xf32> to vector<16x16xf32>
    %61 = arith.mulf %56, %60 : vector<16x16xf32>
    %cst_23 = arith.constant dense<0.000000e+00> : vector<16x32xf32>
    %62 = tpu.matmul %61, %48, %cst_23 {dimension_numbers = #tpu.dot_dimension_numbers<[1], [0], [0], [1], [0, 0, 1, 1], [], []>} : vector<16x16xf32>, vector<16x32xf32>, vector<16x32xf32> -> vector<16x32xf32>
    %63 = vector.extract_strided_slice %4 {offsets = [0, 96], sizes = [16, 32], strides = [1, 1]} : vector<16x128xf32> to vector<16x32xf32>
    %64 = vector.extract_strided_slice %5 {offsets = [0, 96], sizes = [16, 32], strides = [1, 1]} : vector<16x128xf32> to vector<16x32xf32>
    %65 = vector.extract_strided_slice %6 {offsets = [0, 96], sizes = [16, 32], strides = [1, 1]} : vector<16x128xf32> to vector<16x32xf32>
    %cst_24 = arith.constant dense<0.000000e+00> : vector<16x16xf32>
    %66 = tpu.matmul %63, %64, %cst_24 {dimension_numbers = #tpu.dot_dimension_numbers<[1], [1], [0], [0], [0, 0, 1, 0], [], []>} : vector<16x32xf32>, vector<16x32xf32>, vector<16x16xf32> -> vector<16x16xf32>
    %cst_25 = arith.constant -1.000000e+20 : f32
    %67 = vector.broadcast %cst_25 : f32 to vector<16x16xf32>
    %68 = arith.select %11, %67, %66 : vector<16x16xi1>, vector<16x16xf32>
    %cst_26 = arith.constant dense<0xFF800000> : vector<16xf32>
    %69 = vector.multi_reduction <maximumf>, %68, %cst_26 [1] : vector<16x16xf32> to vector<16xf32>
    %70 = vector.shape_cast %69 : vector<16xf32> to vector<16x1xf32>
    %71 = vector.broadcast %70 : vector<16x1xf32> to vector<16x16xf32>
    %72 = arith.subf %68, %71 : vector<16x16xf32>
    %73 = math.exp %72 : vector<16x16xf32>
    %cst_27 = arith.constant dense<0.000000e+00> : vector<16xf32>
    %74 = vector.multi_reduction <add>, %73, %cst_27 [1] : vector<16x16xf32> to vector<16xf32>
    %75 = vector.shape_cast %74 : vector<16xf32> to vector<16x1xf32>
    %76 = tpu.reciprocal %75 {approx = true} : vector<16x1xf32> -> vector<16x1xf32>
    %77 = vector.broadcast %76 : vector<16x1xf32> to vector<16x16xf32>
    %78 = arith.mulf %73, %77 : vector<16x16xf32>
    %cst_28 = arith.constant dense<0.000000e+00> : vector<16x32xf32>
    %79 = tpu.matmul %78, %65, %cst_28 {dimension_numbers = #tpu.dot_dimension_numbers<[1], [0], [0], [1], [0, 0, 1, 1], [], []>} : vector<16x16xf32>, vector<16x32xf32>, vector<16x32xf32> -> vector<16x32xf32>
    %80 = tpu.concatenate %28, %45, %62, %79 in 1 : vector<16x32xf32>, vector<16x32xf32>, vector<16x32xf32>, vector<16x32xf32> -> vector<16x128xf32>
    %c0_29 = arith.constant 0 : index
    %c0_30 = arith.constant 0 : index
    %81 = vector.load %arg4[%c0_29, %c0_30] : memref<128x128xf32, #tpu.memory_space<vmem>>, vector<128x128xf32>
    %cst_31 = arith.constant dense<0.000000e+00> : vector<16x128xf32>
    %82 = tpu.matmul %80, %81, %cst_31 {dimension_numbers = #tpu.dot_dimension_numbers<[1], [0], [0], [1], [0, 0, 1, 1], [], []>} : vector<16x128xf32>, vector<128x128xf32>, vector<16x128xf32> -> vector<16x128xf32>
    %c0_32 = arith.constant 0 : index
    %c0_33 = arith.constant 0 : index
    %83 = vector.load %arg5[%c0_32, %c0_33] : memref<1x128xf32, #tpu.memory_space<vmem>>, vector<1x128xf32>
    %84 = vector.broadcast %83 : vector<1x128xf32> to vector<16x128xf32>
    %85 = arith.addf %82, %84 : vector<16x128xf32>
    %86 = arith.addf %85, %1 : vector<16x128xf32>
    %c0_34 = arith.constant 0 : index
    %c0_35 = arith.constant 0 : index
    %87 = vector.load %arg6[%c0_34, %c0_35] : memref<1x128xf32, #tpu.memory_space<vmem>>, vector<1x128xf32>
    %c0_36 = arith.constant 0 : index
    %c0_37 = arith.constant 0 : index
    %88 = vector.load %arg7[%c0_36, %c0_37] : memref<1x128xf32, #tpu.memory_space<vmem>>, vector<1x128xf32>
    %cst_38 = arith.constant dense<0.000000e+00> : vector<16xf32>
    %89 = vector.multi_reduction <add>, %86, %cst_38 [1] : vector<16x128xf32> to vector<16xf32>
    %90 = vector.shape_cast %89 : vector<16xf32> to vector<16x1xf32>
    %cst_39 = arith.constant 1.280000e+02 : f32
    %91 = vector.broadcast %cst_39 : f32 to vector<16x1xf32>
    %92 = arith.divf %90, %91 : vector<16x1xf32>
    %93 = vector.broadcast %92 : vector<16x1xf32> to vector<16x128xf32>
    %94 = arith.subf %86, %93 : vector<16x128xf32>
    %95 = arith.mulf %94, %94 : vector<16x128xf32>
    %cst_40 = arith.constant dense<0.000000e+00> : vector<16xf32>
    %96 = vector.multi_reduction <add>, %95, %cst_40 [1] : vector<16x128xf32> to vector<16xf32>
    %97 = vector.shape_cast %96 : vector<16xf32> to vector<16x1xf32>
    %cst_41 = arith.constant 1.280000e+02 : f32
    %98 = vector.broadcast %cst_41 : f32 to vector<16x1xf32>
    %99 = arith.divf %97, %98 : vector<16x1xf32>
    %cst_42 = arith.constant 9.99999974E-6 : f32
    %100 = vector.broadcast %cst_42 : f32 to vector<16x1xf32>
    %101 = arith.addf %99, %100 : vector<16x1xf32>
    %102 = math.rsqrt %101 : vector<16x1xf32>
    %103 = vector.broadcast %102 : vector<16x1xf32> to vector<16x128xf32>
    %104 = arith.mulf %94, %103 : vector<16x128xf32>
    %105 = vector.broadcast %87 : vector<1x128xf32> to vector<16x128xf32>
    %106 = arith.mulf %104, %105 : vector<16x128xf32>
    %107 = vector.broadcast %88 : vector<1x128xf32> to vector<16x128xf32>
    %108 = arith.addf %106, %107 : vector<16x128xf32>
    %c0_43 = arith.constant 0 : index
    %c0_44 = arith.constant 0 : index
    %109 = vector.load %arg8[%c0_43, %c0_44] : memref<128x512xf32, #tpu.memory_space<vmem>>, vector<128x512xf32>
    %cst_45 = arith.constant dense<0.000000e+00> : vector<16x512xf32>
    %110 = tpu.matmul %108, %109, %cst_45 {dimension_numbers = #tpu.dot_dimension_numbers<[1], [0], [0], [1], [0, 0, 1, 1], [], []>} : vector<16x128xf32>, vector<128x512xf32>, vector<16x512xf32> -> vector<16x512xf32>
    %c0_46 = arith.constant 0 : index
    %c0_47 = arith.constant 0 : index
    %111 = vector.load %arg9[%c0_46, %c0_47] : memref<1x512xf32, #tpu.memory_space<vmem>>, vector<1x512xf32>
    %112 = vector.broadcast %111 : vector<1x512xf32> to vector<16x512xf32>
    %113 = arith.addf %110, %112 : vector<16x512xf32>
    %cst_48 = arith.constant 0.000000e+00 : f32
    %114 = vector.broadcast %cst_48 : f32 to vector<16x512xf32>
    %115 = arith.maximumf %113, %114 : vector<16x512xf32>
    %c0_49 = arith.constant 0 : index
    %c0_50 = arith.constant 0 : index
    %116 = vector.load %arg10[%c0_49, %c0_50] : memref<512x128xf32, #tpu.memory_space<vmem>>, vector<512x128xf32>
    %cst_51 = arith.constant dense<0.000000e+00> : vector<16x128xf32>
    %117 = tpu.matmul %115, %116, %cst_51 {dimension_numbers = #tpu.dot_dimension_numbers<[1], [0], [0], [1], [0, 0, 1, 1], [], []>} : vector<16x512xf32>, vector<512x128xf32>, vector<16x128xf32> -> vector<16x128xf32>
    %c0_52 = arith.constant 0 : index
    %c0_53 = arith.constant 0 : index
    %118 = vector.load %arg11[%c0_52, %c0_53] : memref<1x128xf32, #tpu.memory_space<vmem>>, vector<1x128xf32>
    %119 = vector.broadcast %118 : vector<1x128xf32> to vector<16x128xf32>
    %120 = arith.addf %117, %119 : vector<16x128xf32>
    %121 = arith.addf %120, %108 : vector<16x128xf32>
    %c0_54 = arith.constant 0 : index
    %c0_55 = arith.constant 0 : index
    %122 = vector.load %arg12[%c0_54, %c0_55] : memref<1x128xf32, #tpu.memory_space<vmem>>, vector<1x128xf32>
    %c0_56 = arith.constant 0 : index
    %c0_57 = arith.constant 0 : index
    %123 = vector.load %arg13[%c0_56, %c0_57] : memref<1x128xf32, #tpu.memory_space<vmem>>, vector<1x128xf32>
    %cst_58 = arith.constant dense<0.000000e+00> : vector<16xf32>
    %124 = vector.multi_reduction <add>, %121, %cst_58 [1] : vector<16x128xf32> to vector<16xf32>
    %125 = vector.shape_cast %124 : vector<16xf32> to vector<16x1xf32>
    %cst_59 = arith.constant 1.280000e+02 : f32
    %126 = vector.broadcast %cst_59 : f32 to vector<16x1xf32>
    %127 = arith.divf %125, %126 : vector<16x1xf32>
    %128 = vector.broadcast %127 : vector<16x1xf32> to vector<16x128xf32>
    %129 = arith.subf %121, %128 : vector<16x128xf32>
    %130 = arith.mulf %129, %129 : vector<16x128xf32>
    %cst_60 = arith.constant dense<0.000000e+00> : vector<16xf32>
    %131 = vector.multi_reduction <add>, %130, %cst_60 [1] : vector<16x128xf32> to vector<16xf32>
    %132 = vector.shape_cast %131 : vector<16xf32> to vector<16x1xf32>
    %cst_61 = arith.constant 1.280000e+02 : f32
    %133 = vector.broadcast %cst_61 : f32 to vector<16x1xf32>
    %134 = arith.divf %132, %133 : vector<16x1xf32>
    %cst_62 = arith.constant 9.99999974E-6 : f32
    %135 = vector.broadcast %cst_62 : f32 to vector<16x1xf32>
    %136 = arith.addf %134, %135 : vector<16x1xf32>
    %137 = math.rsqrt %136 : vector<16x1xf32>
    %138 = vector.broadcast %137 : vector<16x1xf32> to vector<16x128xf32>
    %139 = arith.mulf %129, %138 : vector<16x128xf32>
    %140 = vector.broadcast %122 : vector<1x128xf32> to vector<16x128xf32>
    %141 = arith.mulf %139, %140 : vector<16x128xf32>
    %142 = vector.broadcast %123 : vector<1x128xf32> to vector<16x128xf32>
    %143 = arith.addf %141, %142 : vector<16x128xf32>
    %c0_63 = arith.constant 0 : index
    %c0_64 = arith.constant 0 : index
    %c0_65 = arith.constant 0 : index
    %144 = vector.load %arg14[%c0_63, %c0_64, %c0_65] : memref<1x16x128xf32, #tpu.memory_space<vmem>>, vector<1x16x128xf32>
    %145 = vector.shape_cast %144 : vector<1x16x128xf32> to vector<16x128xf32>
    %146 = vector.shape_cast %143 : vector<16x128xf32> to vector<1x16x128xf32>
    tpu.vector_store %arg14[%c0_63, %c0_64, %c0_65], %146 {strides = array<i32>} : memref<1x16x128xf32, #tpu.memory_space<vmem>>, vector<1x16x128xf32>,
    return
  }
  func.func @transform_0(%arg0: i32) -> (i32, i32, i32) {
    %c0_i32 = arith.constant 0 : i32
    %c0_i32_0 = arith.constant 0 : i32
    %c0_i32_1 = arith.constant 0 : i32
    return %arg0, %c0_i32, %c0_i32_0 : i32, i32, i32
  }
  func.func @transform_1(%arg0: i32) -> (i32, i32, i32, i32) {
    %c0_i32 = arith.constant 0 : i32
    %c0_i32_0 = arith.constant 0 : i32
    %c0_i32_1 = arith.constant 0 : i32
    %c0_i32_2 = arith.constant 0 : i32
    return %arg0, %c0_i32, %c0_i32_0, %c0_i32_1 : i32, i32, i32, i32
  }
  func.func @transform_2(%arg0: i32) -> (i32, i32) {
    %c0_i32 = arith.constant 0 : i32
    %c0_i32_0 = arith.constant 0 : i32
    %c0_i32_1 = arith.constant 0 : i32
    return %c0_i32, %c0_i32_0 : i32, i32
  }
  func.func @transform_3(%arg0: i32) -> (i32, i32) {
    %c0_i32 = arith.constant 0 : i32
    %c0_i32_0 = arith.constant 0 : i32
    %c0_i32_1 = arith.constant 0 : i32
    return %c0_i32, %c0_i32_0 : i32, i32
  }
  func.func @transform_4(%arg0: i32) -> (i32, i32) {
    %c0_i32 = arith.constant 0 : i32
    %c0_i32_0 = arith.constant 0 : i32
    %c0_i32_1 = arith.constant 0 : i32
    return %c0_i32, %c0_i32_0 : i32, i32
  }
  func.func @transform_5(%arg0: i32) -> (i32, i32) {
    %c0_i32 = arith.constant 0 : i32
    %c0_i32_0 = arith.constant 0 : i32
    %c0_i32_1 = arith.constant 0 : i32
    return %c0_i32, %c0_i32_0 : i32, i32
  }
  func.func @transform_6(%arg0: i32) -> (i32, i32) {
    %c0_i32 = arith.constant 0 : i32
    %c0_i32_0 = arith.constant 0 : i32
    %c0_i32_1 = arith.constant 0 : i32
    return %c0_i32, %c0_i32_0 : i32, i32
  }
  func.func @transform_7(%arg0: i32) -> (i32, i32) {
    %c0_i32 = arith.constant 0 : i32
    %c0_i32_0 = arith.constant 0 : i32
    %c0_i32_1 = arith.constant 0 : i32
    return %c0_i32, %c0_i32_0 : i32, i32
  }
  func.func @transform_8(%arg0: i32) -> (i32, i32) {
    %c0_i32 = arith.constant 0 : i32
    %c0_i32_0 = arith.constant 0 : i32
    %c0_i32_1 = arith.constant 0 : i32
    return %c0_i32, %c0_i32_0 : i32, i32
  }
  func.func @transform_9(%arg0: i32) -> (i32, i32) {
    %c0_i32 = arith.constant 0 : i32
    %c0_i32_0 = arith.constant 0 : i32
    %c0_i32_1 = arith.constant 0 : i32
    return %c0_i32, %c0_i32_0 : i32, i32
  }
  func.func @transform_10(%arg0: i32) -> (i32, i32) {
    %c0_i32 = arith.constant 0 : i32
    %c0_i32_0 = arith.constant 0 : i32
    %c0_i32_1 = arith.constant 0 : i32
    return %c0_i32, %c0_i32_0 : i32, i32
  }
  func.func @transform_11(%arg0: i32) -> (i32, i32) {
    %c0_i32 = arith.constant 0 : i32
    %c0_i32_0 = arith.constant 0 : i32
    %c0_i32_1 = arith.constant 0 : i32
    return %c0_i32, %c0_i32_0 : i32, i32
  }
  func.func @transform_12(%arg0: i32) -> (i32, i32) {
    %c0_i32 = arith.constant 0 : i32
    %c0_i32_0 = arith.constant 0 : i32
    %c0_i32_1 = arith.constant 0 : i32
    return %c0_i32, %c0_i32_0 : i32, i32
  }
  func.func @transform_13(%arg0: i32) -> (i32, i32, i32) {
    %c0_i32 = arith.constant 0 : i32
    %c0_i32_0 = arith.constant 0 : i32
    %c0_i32_1 = arith.constant 0 : i32
    return %arg0, %c0_i32, %c0_i32_0 : i32, i32, i32
  }
}

module attributes {stable_mosaic.version = 11 : i64} {
  func.func @_transformer_block_kernel(%arg0: i32, %arg1: memref<1x16x128xf32, #tpu.memory_space<vmem>>, %arg2: memref<1x1x16x16xi8, #tpu.memory_space<vmem>>, %arg3: memref<128x384xf32, #tpu.memory_space<vmem>>, %arg4: memref<128x128xf32, #tpu.memory_space<vmem>>, %arg5: memref<1x128xf32, #tpu.memory_space<vmem>>, %arg6: memref<1x128xf32, #tpu.memory_space<vmem>>, %arg7: memref<1x128xf32, #tpu.memory_space<vmem>>, %arg8: memref<128x512xf32, #tpu.memory_space<vmem>>, %arg9: memref<1x512xf32, #tpu.memory_space<vmem>>, %arg10: memref<512x128xf32, #tpu.memory_space<vmem>>, %arg11: memref<1x128xf32, #tpu.memory_space<vmem>>, %arg12: memref<1x128xf32, #tpu.memory_space<vmem>>, %arg13: memref<1x128xf32, #tpu.memory_space<vmem>>, %arg14: memref<1x16x128xf32, #tpu.memory_space<vmem>>) attributes {dimension_semantics = [#tpu.dimension_semantics<parallel>], iteration_bounds = array<i64: 2>, scalar_prefetch = 0 : i64, scratch_operands = 0 : i64, tpu.core_type = #tpu.core_type<tc>, window_params = [{transform_indices = @transform_0, window_bounds = array<i64: 1, 16, 128>}, {transform_indices = @transform_1, window_bounds = array<i64: 1, 1, 16, 16>}, {pipeline_mode = #tpu.pipeline_mode<synchronous>, transform_indices = @transform_2, window_bounds = array<i64: 128, 384>}, {pipeline_mode = #tpu.pipeline_mode<synchronous>, transform_indices = @transform_3, window_bounds = array<i64: 128, 128>}, {pipeline_mode = #tpu.pipeline_mode<synchronous>, transform_indices = @transform_4, window_bounds = array<i64: 1, 128>}, {pipeline_mode = #tpu.pipeline_mode<synchronous>, transform_indices = @transform_5, window_bounds = array<i64: 1, 128>}, {pipeline_mode = #tpu.pipeline_mode<synchronous>, transform_indices = @transform_6, window_bounds = array<i64: 1, 128>}, {pipeline_mode = #tpu.pipeline_mode<synchronous>, transform_indices = @transform_7, window_bounds = array<i64: 128, 512>}, {pipeline_mode = #tpu.pipeline_mode<synchronous>, transform_indices = @transform_8, window_bounds = array<i64: 1, 512>}, {pipeline_mode = #tpu.pipeline_mode<synchronous>, transform_indices = @transform_9, window_bounds = array<i64: 512, 128>}, {pipeline_mode = #tpu.pipeline_mode<synchronous>, transform_indices = @transform_10, window_bounds = array<i64: 1, 128>}, {pipeline_mode = #tpu.pipeline_mode<synchronous>, transform_indices = @transform_11, window_bounds = array<i64: 1, 128>}, {pipeline_mode = #tpu.pipeline_mode<synchronous>, transform_indices = @transform_12, window_bounds = array<i64: 1, 128>}, {transform_indices = @transform_13, window_bounds = array<i64: 1, 16, 128>}]} {
    %c0 = arith.constant 0 : index
    %c0_0 = arith.constant 0 : index
    %c0_1 = arith.constant 0 : index
    %0 = vector.load %arg1[%c0, %c0_0, %c0_1] : memref<1x16x128xf32, #tpu.memory_space<vmem>>, vector<1x16x128xf32>
    %1 = vector.shape_cast %0 : vector<1x16x128xf32> to vector<16x128xf32>
    %c0_2 = arith.constant 0 : index
    %c0_3 = arith.constant 0 : index
    %2 = vector.load %arg3[%c0_2, %c0_3] : memref<128x384xf32, #tpu.memory_space<vmem>>, vector<128x384xf32>
    %cst = arith.constant dense<0.000000e+00> : vector<16x384xf32>
    %3 = tpu.matmul %1, %2, %cst {dimension_numbers = #tpu.dot_dimension_numbers<[1], [0], [0], [1], [0, 0, 1, 1], [], []>} : vector<16x128xf32>, vector<128x384xf32>, vector<16x384xf32> -> vector<16x384xf32>
    %4 = vector.extract_strided_slice %3 {offsets = [0, 0], sizes = [16, 128], strides = [1, 1]} : vector<16x384xf32> to vector<16x128xf32>
    %5 = vector.extract_strided_slice %3 {offsets = [0, 128], sizes = [16, 128], strides = [1, 1]} : vector<16x384xf32> to vector<16x128xf32>
    %6 = vector.extract_strided_slice %3 {offsets = [0, 256], sizes = [16, 128], strides = [1, 1]} : vector<16x384xf32> to vector<16x128xf32>
    %c0_4 = arith.constant 0 : index
    %c0_5 = arith.constant 0 : index
    %c0_6 = arith.constant 0 : index
    %c0_7 = arith.constant 0 : index
    %7 = vector.load %arg2[%c0_4, %c0_5, %c0_6, %c0_7] : memref<1x1x16x16xi8, #tpu.memory_space<vmem>>, vector<1x1x16x16xi8>
    %8 = vector.shape_cast %7 : vector<1x1x16x16xi8> to vector<16x16xi8>
    %9 = arith.sitofp %8 : vector<16x16xi8> to vector<16x16xf32>
    %cst_8 = arith.constant 0.000000e+00 : f32
    %10 = vector.broadcast %cst_8 : f32 to vector<16x16xf32>
    %11 = arith.cmpf oeq, %9, %10 : vector<16x16xf32>
    %12 = vector.extract_strided_slice %4 {offsets = [0, 0], sizes = [16, 32], strides = [1, 1]} : vector<16x128xf32> to vector<16x32xf32>
    %13 = vector.extract_strided_slice %5 {offsets = [0, 0], sizes = [16, 32], strides = [1, 1]} : vector<16x128xf32> to vector<16x32xf32>
    %14 = vector.extract_strided_slice %6 {offsets = [0, 0], sizes = [16, 32], strides = [1, 1]} : vector<16x128xf32> to vector<16x32xf32>
    %cst_9 = arith.constant dense<0.000000e+00> : vector<16x16xf32>
    %15 = tpu.matmul %12, %13, %cst_9 {dimension_numbers = #tpu.dot_dimension_numbers<[1], [1], [0], [0], [0, 0, 1, 0], [], []>} : vector<16x32xf32>, vector<16x32xf32>, vector<16x16xf32> -> vector<16x16xf32>
    %cst_10 = arith.constant -1.000000e+20 : f32
    %16 = vector.broadcast %cst_10 : f32 to vector<16x16xf32>
    %17 = arith.select %11, %16, %15 : vector<16x16xi1>, vector<16x16xf32>
    %cst_11 = arith.constant dense<0xFF800000> : vector<16xf32>
    %18 = vector.multi_reduction <maximumf>, %17, %cst_11 [1] : vector<16x16xf32> to vector<16xf32>
    %19 = vector.shape_cast %18 : vector<16xf32> to vector<16x1xf32>
    %20 = vector.broadcast %19 : vector<16x1xf32> to vector<16x16xf32>
    %21 = arith.subf %17, %20 : vector<16x16xf32>
    %22 = math.exp %21 : vector<16x16xf32>
    %cst_12 = arith.constant dense<0.000000e+00> : vector<16xf32>
    %23 = vector.multi_reduction <add>, %22, %cst_12 [1] : vector<16x16xf32> to vector<16xf32>
    %24 = vector.shape_cast %23 : vector<16xf32> to vector<16x1xf32>
    %25 = tpu.reciprocal %24 {approx = true} : vector<16x1xf32> -> vector<16x1xf32>
    %26 = vector.broadcast %25 : vector<16x1xf32> to vector<16x16xf32>
    %27 = arith.mulf %22, %26 : vector<16x16xf32>
    %cst_13 = arith.constant dense<0.000000e+00> : vector<16x32xf32>
    %28 = tpu.matmul %27, %14, %cst_13 {dimension_numbers = #tpu.dot_dimension_numbers<[1], [0], [0], [1], [0, 0, 1, 1], [], []>} : vector<16x16xf32>, vector<16x32xf32>, vector<16x32xf32> -> vector<16x32xf32>
    %29 = vector.extract_strided_slice %4 {offsets = [0, 32], sizes = [16, 32], strides = [1, 1]} : vector<16x128xf32> to vector<16x32xf32>
    %30 = vector.extract_strided_slice %5 {offsets = [0, 32], sizes = [16, 32], strides = [1, 1]} : vector<16x128xf32> to vector<16x32xf32>
    %31 = vector.extract_strided_slice %6 {offsets = [0, 32], sizes = [16, 32], strides = [1, 1]} : vector<16x128xf32> to vector<16x32xf32>
    %cst_14 = arith.constant dense<0.000000e+00> : vector<16x16xf32>
    %32 = tpu.matmul %29, %30, %cst_14 {dimension_numbers = #tpu.dot_dimension_numbers<[1], [1], [0], [0], [0, 0, 1, 0], [], []>} : vector<16x32xf32>, vector<16x32xf32>, vector<16x16xf32> -> vector<16x16xf32>
    %cst_15 = arith.constant -1.000000e+20 : f32
    %33 = vector.broadcast %cst_15 : f32 to vector<16x16xf32>
    %34 = arith.select %11, %33, %32 : vector<16x16xi1>, vector<16x16xf32>
    %cst_16 = arith.constant dense<0xFF800000> : vector<16xf32>
    %35 = vector.multi_reduction <maximumf>, %34, %cst_16 [1] : vector<16x16xf32> to vector<16xf32>
    %36 = vector.shape_cast %35 : vector<16xf32> to vector<16x1xf32>
    %37 = vector.broadcast %36 : vector<16x1xf32> to vector<16x16xf32>
    %38 = arith.subf %34, %37 : vector<16x16xf32>
    %39 = math.exp %38 : vector<16x16xf32>
    %cst_17 = arith.constant dense<0.000000e+00> : vector<16xf32>
    %40 = vector.multi_reduction <add>, %39, %cst_17 [1] : vector<16x16xf32> to vector<16xf32>
    %41 = vector.shape_cast %40 : vector<16xf32> to vector<16x1xf32>
    %42 = tpu.reciprocal %41 {approx = true} : vector<16x1xf32> -> vector<16x1xf32>
    %43 = vector.broadcast %42 : vector<16x1xf32> to vector<16x16xf32>
    %44 = arith.mulf %39, %43 : vector<16x16xf32>
    %cst_18 = arith.constant dense<0.000000e+00> : vector<16x32xf32>
    %45 = tpu.matmul %44, %31, %cst_18 {dimension_numbers = #tpu.dot_dimension_numbers<[1], [0], [0], [1], [0, 0, 1, 1], [], []>} : vector<16x16xf32>, vector<16x32xf32>, vector<16x32xf32> -> vector<16x32xf32>
    %46 = vector.extract_strided_slice %4 {offsets = [0, 64], sizes = [16, 32], strides = [1, 1]} : vector<16x128xf32> to vector<16x32xf32>
    %47 = vector.extract_strided_slice %5 {offsets = [0, 64], sizes = [16, 32], strides = [1, 1]} : vector<16x128xf32> to vector<16x32xf32>
    %48 = vector.extract_strided_slice %6 {offsets = [0, 64], sizes = [16, 32], strides = [1, 1]} : vector<16x128xf32> to vector<16x32xf32>
    %cst_19 = arith.constant dense<0.000000e+00> : vector<16x16xf32>
    %49 = tpu.matmul %46, %47, %cst_19 {dimension_numbers = #tpu.dot_dimension_numbers<[1], [1], [0], [0], [0, 0, 1, 0], [], []>} : vector<16x32xf32>, vector<16x32xf32>, vector<16x16xf32> -> vector<16x16xf32>
    %cst_20 = arith.constant -1.000000e+20 : f32
    %50 = vector.broadcast %cst_20 : f32 to vector<16x16xf32>
    %51 = arith.select %11, %50, %49 : vector<16x16xi1>, vector<16x16xf32>
    %cst_21 = arith.constant dense<0xFF800000> : vector<16xf32>
    %52 = vector.multi_reduction <maximumf>, %51, %cst_21 [1] : vector<16x16xf32> to vector<16xf32>
    %53 = vector.shape_cast %52 : vector<16xf32> to vector<16x1xf32>
    %54 = vector.broadcast %53 : vector<16x1xf32> to vector<16x16xf32>
    %55 = arith.subf %51, %54 : vector<16x16xf32>
    %56 = math.exp %55 : vector<16x16xf32>
    %cst_22 = arith.constant dense<0.000000e+00> : vector<16xf32>
    %57 = vector.multi_reduction <add>, %56, %cst_22 [1] : vector<16x16xf32> to vector<16xf32>
    %58 = vector.shape_cast %57 : vector<16xf32> to vector<16x1xf32>
    %59 = tpu.reciprocal %58 {approx = true} : vector<16x1xf32> -> vector<16x1xf32>
    %60 = vector.broadcast %59 : vector<16x1xf32> to vector<16x16xf32>
    %61 = arith.mulf %56, %60 : vector<16x16xf32>
    %cst_23 = arith.constant dense<0.000000e+00> : vector<16x32xf32>
    %62 = tpu.matmul %61, %48, %cst_23 {dimension_numbers = #tpu.dot_dimension_numbers<[1], [0], [0], [1], [0, 0, 1, 1], [], []>} : vector<16x16xf32>, vector<16x32xf32>, vector<16x32xf32> -> vector<16x32xf32>
    %63 = vector.extract_strided_slice %4 {offsets = [0, 96], sizes = [16, 32], strides = [1, 1]} : vector<16x128xf32> to vector<16x32xf32>
    %64 = vector.extract_strided_slice %5 {offsets = [0, 96], sizes = [16, 32], strides = [1, 1]} : vector<16x128xf32> to vector<16x32xf32>
    %65 = vector.extract_strided_slice %6 {offsets = [0, 96], sizes = [16, 32], strides = [1, 1]} : vector<16x128xf32> to vector<16x32xf32>
    %cst_24 = arith.constant dense<0.000000e+00> : vector<16x16xf32>
    %66 = tpu.matmul %63, %64, %cst_24 {dimension_numbers = #tpu.dot_dimension_numbers<[1], [1], [0], [0], [0, 0, 1, 0], [], []>} : vector<16x32xf32>, vector<16x32xf32>, vector<16x16xf32> -> vector<16x16xf32>
    %cst_25 = arith.constant -1.000000e+20 : f32
    %67 = vector.broadcast %cst_25 : f32 to vector<16x16xf32>
    %68 = arith.select %11, %67, %66 : vector<16x16xi1>, vector<16x16xf32>
    %cst_26 = arith.constant dense<0xFF800000> : vector<16xf32>
    %69 = vector.multi_reduction <maximumf>, %68, %cst_26 [1] : vector<16x16xf32> to vector<16xf32>
    %70 = vector.shape_cast %69 : vector<16xf32> to vector<16x1xf32>
    %71 = vector.broadcast %70 : vector<16x1xf32> to vector<16x16xf32>
    %72 = arith.subf %68, %71 : vector<16x16xf32>
    %73 = math.exp %72 : vector<16x16xf32>
    %cst_27 = arith.constant dense<0.000000e+00> : vector<16xf32>
    %74 = vector.multi_reduction <add>, %73, %cst_27 [1] : vector<16x16xf32> to vector<16xf32>
    %75 = vector.shape_cast %74 : vector<16xf32> to vector<16x1xf32>
    %76 = tpu.reciprocal %75 {approx = true} : vector<16x1xf32> -> vector<16x1xf32>
    %77 = vector.broadcast %76 : vector<16x1xf32> to vector<16x16xf32>
    %78 = arith.mulf %73, %77 : vector<16x16xf32>
    %cst_28 = arith.constant dense<0.000000e+00> : vector<16x32xf32>
    %79 = tpu.matmul %78, %65, %cst_28 {dimension_numbers = #tpu.dot_dimension_numbers<[1], [0], [0], [1], [0, 0, 1, 1], [], []>} : vector<16x16xf32>, vector<16x32xf32>, vector<16x32xf32> -> vector<16x32xf32>
    %80 = tpu.concatenate %28, %45, %62, %79 in 1 : vector<16x32xf32>, vector<16x32xf32>, vector<16x32xf32>, vector<16x32xf32> -> vector<16x128xf32>
    %c0_29 = arith.constant 0 : index
    %c0_30 = arith.constant 0 : index
    %81 = vector.load %arg4[%c0_29, %c0_30] : memref<128x128xf32, #tpu.memory_space<vmem>>, vector<128x128xf32>
    %cst_31 = arith.constant dense<0.000000e+00> : vector<16x128xf32>
    %82 = tpu.matmul %80, %81, %cst_31 {dimension_numbers = #tpu.dot_dimension_numbers<[1], [0], [0], [1], [0, 0, 1, 1], [], []>} : vector<16x128xf32>, vector<128x128xf32>, vector<16x128xf32> -> vector<16x128xf32>
    %c0_32 = arith.constant 0 : index
    %c0_33 = arith.constant 0 : index
    %83 = vector.load %arg5[%c0_32, %c0_33] : memref<1x128xf32, #tpu.memory_space<vmem>>, vector<1x128xf32>
    %84 = vector.broadcast %83 : vector<1x128xf32> to vector<16x128xf32>
    %85 = arith.addf %82, %84 : vector<16x128xf32>
    %86 = arith.addf %85, %1 : vector<16x128xf32>
    %c0_34 = arith.constant 0 : index
    %c0_35 = arith.constant 0 : index
    %87 = vector.load %arg6[%c0_34, %c0_35] : memref<1x128xf32, #tpu.memory_space<vmem>>, vector<1x128xf32>
    %c0_36 = arith.constant 0 : index
    %c0_37 = arith.constant 0 : index
    %88 = vector.load %arg7[%c0_36, %c0_37] : memref<1x128xf32, #tpu.memory_space<vmem>>, vector<1x128xf32>
    %cst_38 = arith.constant dense<0.000000e+00> : vector<16xf32>
    %89 = vector.multi_reduction <add>, %86, %cst_38 [1] : vector<16x128xf32> to vector<16xf32>
    %90 = vector.shape_cast %89 : vector<16xf32> to vector<16x1xf32>
    %cst_39 = arith.constant 1.280000e+02 : f32
    %91 = vector.broadcast %cst_39 : f32 to vector<16x1xf32>
    %92 = arith.divf %90, %91 : vector<16x1xf32>
    %93 = vector.broadcast %92 : vector<16x1xf32> to vector<16x128xf32>
    %94 = arith.subf %86, %93 : vector<16x128xf32>
    %95 = arith.mulf %94, %94 : vector<16x128xf32>
    %cst_40 = arith.constant dense<0.000000e+00> : vector<16xf32>
    %96 = vector.multi_reduction <add>, %95, %cst_40 [1] : vector<16x128xf32> to vector<16xf32>
    %97 = vector.shape_cast %96 : vector<16xf32> to vector<16x1xf32>
    %cst_41 = arith.constant 1.280000e+02 : f32
    %98 = vector.broadcast %cst_41 : f32 to vector<16x1xf32>
    %99 = arith.divf %97, %98 : vector<16x1xf32>
    %cst_42 = arith.constant 9.99999974E-6 : f32
    %100 = vector.broadcast %cst_42 : f32 to vector<16x1xf32>
    %101 = arith.addf %99, %100 : vector<16x1xf32>
    %102 = math.rsqrt %101 : vector<16x1xf32>
    %103 = vector.broadcast %102 : vector<16x1xf32> to vector<16x128xf32>
    %104 = arith.mulf %94, %103 : vector<16x128xf32>
    %105 = vector.broadcast %87 : vector<1x128xf32> to vector<16x128xf32>
    %106 = arith.mulf %104, %105 : vector<16x128xf32>
    %107 = vector.broadcast %88 : vector<1x128xf32> to vector<16x128xf32>
    %108 = arith.addf %106, %107 : vector<16x128xf32>
    %c0_43 = arith.constant 0 : index
    %c0_44 = arith.constant 0 : index
    %109 = vector.load %arg8[%c0_43, %c0_44] : memref<128x512xf32, #tpu.memory_space<vmem>>, vector<128x512xf32>
    %cst_45 = arith.constant dense<0.000000e+00> : vector<16x512xf32>
    %110 = tpu.matmul %108, %109, %cst_45 {dimension_numbers = #tpu.dot_dimension_numbers<[1], [0], [0], [1], [0, 0, 1, 1], [], []>} : vector<16x128xf32>, vector<128x512xf32>, vector<16x512xf32> -> vector<16x512xf32>
    %c0_46 = arith.constant 0 : index
    %c0_47 = arith.constant 0 : index
    %111 = vector.load %arg9[%c0_46, %c0_47] : memref<1x512xf32, #tpu.memory_space<vmem>>, vector<1x512xf32>
    %112 = vector.broadcast %111 : vector<1x512xf32> to vector<16x512xf32>
    %113 = arith.addf %110, %112 : vector<16x512xf32>
    %cst_48 = arith.constant 0.000000e+00 : f32
    %114 = vector.broadcast %cst_48 : f32 to vector<16x512xf32>
    %115 = arith.maximumf %113, %114 : vector<16x512xf32>
    %c0_49 = arith.constant 0 : index
    %c0_50 = arith.constant 0 : index
    %116 = vector.load %arg10[%c0_49, %c0_50] : memref<512x128xf32, #tpu.memory_space<vmem>>, vector<512x128xf32>
    %cst_51 = arith.constant dense<0.000000e+00> : vector<16x128xf32>
    %117 = tpu.matmul %115, %116, %cst_51 {dimension_numbers = #tpu.dot_dimension_numbers<[1], [0], [0], [1], [0, 0, 1, 1], [], []>} : vector<16x512xf32>, vector<512x128xf32>, vector<16x128xf32> -> vector<16x128xf32>
    %c0_52 = arith.constant 0 : index
    %c0_53 = arith.constant 0 : index
    %118 = vector.load %arg11[%c0_52, %c0_53] : memref<1x128xf32, #tpu.memory_space<vmem>>, vector<1x128xf32>
    %119 = vector.broadcast %118 : vector<1x128xf32> to vector<16x128xf32>
    %120 = arith.addf %117, %119 : vector<16x128xf32>
    %121 = arith.addf %120, %108 : vector<16x128xf32>
    %c0_54 = arith.constant 0 : index
    %c0_55 = arith.constant 0 : index
    %122 = vector.load %arg12[%c0_54, %c0_55] : memref<1x128xf32, #tpu.memory_space<vmem>>, vector<1x128xf32>
    %c0_56 = arith.constant 0 : index
    %c0_57 = arith.constant 0 : index
    %123 = vector.load %arg13[%c0_56, %c0_57] : memref<1x128xf32, #tpu.memory_space<vmem>>, vector<1x128xf32>
    %cst_58 = arith.constant dense<0.000000e+00> : vector<16xf32>
    %124 = vector.multi_reduction <add>, %121, %cst_58 [1] : vector<16x128xf32> to vector<16xf32>
    %125 = vector.shape_cast %124 : vector<16xf32> to vector<16x1xf32>
    %cst_59 = arith.constant 1.280000e+02 : f32
    %126 = vector.broadcast %cst_59 : f32 to vector<16x1xf32>
    %127 = arith.divf %125, %126 : vector<16x1xf32>
    %128 = vector.broadcast %127 : vector<16x1xf32> to vector<16x128xf32>
    %129 = arith.subf %121, %128 : vector<16x128xf32>
    %130 = arith.mulf %129, %129 : vector<16x128xf32>
    %cst_60 = arith.constant dense<0.000000e+00> : vector<16xf32>
    %131 = vector.multi_reduction <add>, %130, %cst_60 [1] : vector<16x128xf32> to vector<16xf32>
    %132 = vector.shape_cast %131 : vector<16xf32> to vector<16x1xf32>
    %cst_61 = arith.constant 1.280000e+02 : f32
    %133 = vector.broadcast %cst_61 : f32 to vector<16x1xf32>
    %134 = arith.divf %132, %133 : vector<16x1xf32>
    %cst_62 = arith.constant 9.99999974E-6 : f32
    %135 = vector.broadcast %cst_62 : f32 to vector<16x1xf32>
    %136 = arith.addf %134, %135 : vector<16x1xf32>
    %137 = math.rsqrt %136 : vector<16x1xf32>
    %138 = vector.broadcast %137 : vector<16x1xf32> to vector<16x128xf32>
    %139 = arith.mulf %129, %138 : vector<16x128xf32>
    %140 = vector.broadcast %122 : vector<1x128xf32> to vector<16x128xf32>
    %141 = arith.mulf %139, %140 : vector<16x128xf32>
    %142 = vector.broadcast %123 : vector<1x128xf32> to vector<16x128xf32>
    %143 = arith.addf %141, %142 : vector<16x128xf32>
    %c0_63 = arith.constant 0 : index
    %c0_64 = arith.constant 0 : index
    %c0_65 = arith.constant 0 : index
    %144 = vector.load %arg14[%c0_63, %c0_64, %c0_65] : memref<1x16x128xf32, #tpu.memory_space<vmem>>, vector<1x16x128xf32>
    %145 = vector.shape_cast %144 : vector<1x16x128xf32> to vector<16x128xf32>
    %146 = vector.shape_cast %143 : vector<16x128xf32> to vector<1x16x128xf32>
    tpu.vector_store %arg14[%c0_63, %c0_64, %c0_65], %146 {strides = array<i32>} : memref<1x16x128xf32, #tpu.memory_space<vmem>>, vector<1x16x128xf32>,
    return
  }
  func.func @transform_0(%arg0: i32) -> (i32, i32, i32) {
    %c0_i32 = arith.constant 0 : i32
    %c0_i32_0 = arith.constant 0 : i32
    %c0_i32_1 = arith.constant 0 : i32
    return %arg0, %c0_i32, %c0_i32_0 : i32, i32, i32
  }
  func.func @transform_1(%arg0: i32) -> (i32, i32, i32, i32) {
    %c0_i32 = arith.constant 0 : i32
    %c0_i32_0 = arith.constant 0 : i32
    %c0_i32_1 = arith.constant 0 : i32
    %c0_i32_2 = arith.constant 0 : i32
    return %arg0, %c0_i32, %c0_i32_0, %c0_i32_1 : i32, i32, i32, i32
  }
  func.func @transform_2(%arg0: i32) -> (i32, i32) {
    %c0_i32 = arith.constant 0 : i32
    %c0_i32_0 = arith.constant 0 : i32
    %c0_i32_1 = arith.constant 0 : i32
    return %c0_i32, %c0_i32_0 : i32, i32
  }
  func.func @transform_3(%arg0: i32) -> (i32, i32) {
    %c0_i32 = arith.constant 0 : i32
    %c0_i32_0 = arith.constant 0 : i32
    %c0_i32_1 = arith.constant 0 : i32
    return %c0_i32, %c0_i32_0 : i32, i32
  }
  func.func @transform_4(%arg0: i32) -> (i32, i32) {
    %c0_i32 = arith.constant 0 : i32
    %c0_i32_0 = arith.constant 0 : i32
    %c0_i32_1 = arith.constant 0 : i32
    return %c0_i32, %c0_i32_0 : i32, i32
  }
  func.func @transform_5(%arg0: i32) -> (i32, i32) {
    %c0_i32 = arith.constant 0 : i32
    %c0_i32_0 = arith.constant 0 : i32
    %c0_i32_1 = arith.constant 0 : i32
    return %c0_i32, %c0_i32_0 : i32, i32
  }
  func.func @transform_6(%arg0: i32) -> (i32, i32) {
    %c0_i32 = arith.constant 0 : i32
    %c0_i32_0 = arith.constant 0 : i32
    %c0_i32_1 = arith.constant 0 : i32
    return %c0_i32, %c0_i32_0 : i32, i32
  }
  func.func @transform_7(%arg0: i32) -> (i32, i32) {
    %c0_i32 = arith.constant 0 : i32
    %c0_i32_0 = arith.constant 0 : i32
    %c0_i32_1 = arith.constant 0 : i32
    return %c0_i32, %c0_i32_0 : i32, i32
  }
  func.func @transform_8(%arg0: i32) -> (i32, i32) {
    %c0_i32 = arith.constant 0 : i32
    %c0_i32_0 = arith.constant 0 : i32
    %c0_i32_1 = arith.constant 0 : i32
    return %c0_i32, %c0_i32_0 : i32, i32
  }
  func.func @transform_9(%arg0: i32) -> (i32, i32) {
    %c0_i32 = arith.constant 0 : i32
    %c0_i32_0 = arith.constant 0 : i32
    %c0_i32_1 = arith.constant 0 : i32
    return %c0_i32, %c0_i32_0 : i32, i32
  }
  func.func @transform_10(%arg0: i32) -> (i32, i32) {
    %c0_i32 = arith.constant 0 : i32
    %c0_i32_0 = arith.constant 0 : i32
    %c0_i32_1 = arith.constant 0 : i32
    return %c0_i32, %c0_i32_0 : i32, i32
  }
  func.func @transform_11(%arg0: i32) -> (i32, i32) {
    %c0_i32 = arith.constant 0 : i32
    %c0_i32_0 = arith.constant 0 : i32
    %c0_i32_1 = arith.constant 0 : i32
    return %c0_i32, %c0_i32_0 : i32, i32
  }
  func.func @transform_12(%arg0: i32) -> (i32, i32) {
    %c0_i32 = arith.constant 0 : i32
    %c0_i32_0 = arith.constant 0 : i32
    %c0_i32_1 = arith.constant 0 : i32
    return %c0_i32, %c0_i32_0 : i32, i32
  }
  func.func @transform_13(%arg0: i32) -> (i32, i32, i32) {
    %c0_i32 = arith.constant 0 : i32
    %c0_i32_0 = arith.constant 0 : i32
    %c0_i32_1 = arith.constant 0 : i32
    return %arg0, %c0_i32, %c0_i32_0 : i32, i32, i32
  }
}

</mosaic_0001>

<llo_original>
// kernel: gpt2_forward.5
$region0: #{gpt2_forward.5}
  #allocation0 [shape = 'u32[]', space=smem, size = 0x4, offset = 0x4, fixed_abs, tag = 'smem constant byte address 0x4 - core index']
  #allocation1 [shape = 'u32[144,128]{1,0:T(1,128)}', space=vmem, size = 0x12000, scoped, tag = 'internal scratch']
  %s0 = inlined_call_operand.vmem [shape: f32[32,128], index: 0, kind: input, shape index: {}]
  %s1 = inlined_call_operand.vmem [shape: f32[128,512], index: 1, kind: input, shape index: {}]
  %s2 = inlined_call_operand.vmem [shape: f32[1,512], index: 2, kind: input, shape index: {}]
  %s3 = inlined_call_operand.hbm [shape: f32[32,512], index: 3, kind: output, shape index: {}]
  %s4 = sld [smem:[#allocation0]]
  $region68: #{gpt2_forward.5} parent=0
    _
  %s6 = ssub.s32 1, %s4
  %s7 = scalar_select 0, %s6, %s4
  $region1: #{gpt2_forward.5} parent=0
    #allocation2 [shape = 'u8[262144]{0}', space=vmem, size = 0x40000, scoped, tag = 'input window, operand 1']
    #allocation3 [shape = 'u8[65536]{0}', space=vmem, size = 0x10000, scoped, tag = 'output window, operand 0']
    #allocation4 [shape = 's32[2]{0}', space=sflag, size = 0x8, scoped, tag = 'scoped memory for gpt2_forward.5']
    %8 = vsyncpa [#allocation4], 0
    %s9 = scalar_lea.sflag [#allocation4], 1
    %10 = vsyncpa %s9, 0
    loop: start=0, step=1, limit=4
    $region2: #{gpt2_forward.5} parent=1 // loop_pre_header
      _
    $region3: #{gpt2_forward.5} parent=1 // loop_header
      %s12 = sphi 0, %s16
      %p13 = scmp.ge.s32.totalorder %s12, 4
      %s19 = sphi 0, %s31
      %s20 = sphi 0, %s27
      %s21 = sphi 0, %s19
      %s22 = sphi 0, %s20
      %s23 = sphi 0, %s21
      %s24 = sphi 0, %s22
      %s34 = sphi 0, %s36
      %s37 = sphi 0, %s34
      %s38 = sphi 0, %s37
      %s54 = sphi 0, %s38
      %s60 = sphi 0, %s62
      %s63 = sphi 0, %s60
      %s64 = sphi 0, %s63
      %s80 = sphi 0, %s64
      %s86 = sphi 0, %s88
      %s89 = sphi 0, %s86
      %s90 = sphi 0, %s89
      %s106 = sphi 0, %s90
      %s114 = sphi 0, %s116
      %s117 = sphi 0, %s114
      %s118 = sphi 0, %s117
      %s134 = sphi 0, %s118
    $region4: #{gpt2_forward.5} parent=1 // loop_header_branch
      %15 = sbr.rel (%p13) target = $region8
    $region5: #{gpt2_forward.5} parent=1 // loop_body
      %s17 = ssub.s32 %s12, 1
      %s18 = ssub.s32 %s12, 2
      %s25 = sadd.s32 1, %s20
      %p26 = scmp.ge.s32.totalorder %s25, 2
      %s27 = scalar_select %p26, 0, %s25
      %s28 = sadd.s32 1, %s19
      %s29 = scalar_select %p26, %s28, %s19
      %p30 = scmp.ge.s32.totalorder %s29, 1
      %s31 = scalar_select %p30, 0, %s29
      %s32 = ssub.s32 %s19, %s31
      %p33 = scmp.eq.s32.totalorder %s32, 0
      %s35 = sadd.s32 %s34, 1
      %s36 = scalar_select %p33, %s34, %s35
      %p39 = pneg %p33
      %p40 = scmp.eq.s32.totalorder %s12, 1
      %p41 = por %p39, %p40
      %p42 = scmp.ne.s32.totalorder %s34, %s37
      %p43 = scmp.eq.s32.totalorder %s12, 0
      %p44 = por %p42, %p43
      %p45 = scmp.ne.s32.totalorder %s34, %s37
      %p46 = scmp.eq.s32.totalorder %s17, 1
      %p47 = por %p45, %p46
      %p48 = scmp.ne.s32.totalorder %s37, %s38
      %p49 = scmp.eq.s32.totalorder %s17, 0
      %p50 = por %p48, %p49
      %p51 = scmp.ne.s32.totalorder %s37, %s38
      %p52 = scmp.eq.s32.totalorder %s18, 1
      %p53 = por %p51, %p52
      %p55 = scmp.ne.s32.totalorder %s38, %s54
      %p56 = scmp.eq.s32.totalorder %s18, 0
      %p57 = por %p55, %p56
      %s58 = ssub.s32 %s20, %s27
      %p59 = scmp.eq.s32.totalorder %s58, 0
      %s61 = sadd.s32 %s60, 1
      %s62 = scalar_select %p59, %s60, %s61
      %p65 = pneg %p59
      %p66 = scmp.eq.s32.totalorder %s12, 1
      %p67 = por %p65, %p66
      %p68 = scmp.ne.s32.totalorder %s60, %s63
      %p69 = scmp.eq.s32.totalorder %s12, 0
      %p70 = por %p68, %p69
      %p71 = scmp.ne.s32.totalorder %s60, %s63
      %p72 = scmp.eq.s32.totalorder %s17, 1
      %p73 = por %p71, %p72
      %p74 = scmp.ne.s32.totalorder %s63, %s64
      %p75 = scmp.eq.s32.totalorder %s17, 0
      %p76 = por %p74, %p75
      %p77 = scmp.ne.s32.totalorder %s63, %s64
      %p78 = scmp.eq.s32.totalorder %s18, 1
      %p79 = por %p77, %p78
      %p81 = scmp.ne.s32.totalorder %s64, %s80
      %p82 = scmp.eq.s32.totalorder %s18, 0
      %p83 = por %p81, %p82
      %s84 = ssub.s32 %s20, %s27
      %p85 = scmp.eq.s32.totalorder %s84, 0
      %s87 = sadd.s32 %s86, 1
      %s88 = scalar_select %p85, %s86, %s87
      %p91 = pneg %p85
      %p92 = scmp.eq.s32.totalorder %s12, 1
      %p93 = por %p91, %p92
      %p94 = scmp.ne.s32.totalorder %s86, %s89
      %p95 = scmp.eq.s32.totalorder %s12, 0
      %p96 = por %p94, %p95
      %p97 = scmp.ne.s32.totalorder %s86, %s89
      %p98 = scmp.eq.s32.totalorder %s17, 1
      %p99 = por %p97, %p98
      %p100 = scmp.ne.s32.totalorder %s89, %s90
      %p101 = scmp.eq.s32.totalorder %s17, 0
      %p102 = por %p100, %p101
      %p103 = scmp.ne.s32.totalorder %s89, %s90
      %p104 = scmp.eq.s32.totalorder %s18, 1
      %p105 = por %p103, %p104
      %p107 = scmp.ne.s32.totalorder %s90, %s106
      %p108 = scmp.eq.s32.totalorder %s18, 0
      %p109 = por %p107, %p108
      %s110 = ssub.s32 %s19, %s31
      %s111 = ssub.s32 %s20, %s27
      %s112 = sor.u32 %s110, %s111
      %p113 = scmp.eq.s32.totalorder %s112, 0
      %s115 = sadd.s32 %s114, 1
      %s116 = scalar_select %p113, %s114, %s115
      %p119 = pneg %p113
      %p120 = scmp.eq.s32.totalorder %s12, 1
      %p121 = por %p119, %p120
      %p122 = scmp.ne.s32.totalorder %s114, %s117
      %p123 = scmp.eq.s32.totalorder %s12, 0
      %p124 = por %p122, %p123
      %p125 = scmp.ne.s32.totalorder %s114, %s117
      %p126 = scmp.eq.s32.totalorder %s17, 1
      %p127 = por %p125, %p126
      %p128 = scmp.ne.s32.totalorder %s117, %s118
      %p129 = scmp.eq.s32.totalorder %s17, 0
      %p130 = por %p128, %p129
      %p131 = scmp.ne.s32.totalorder %s117, %s118
      %p132 = scmp.eq.s32.totalorder %s18, 1
      %p133 = por %p131, %p132
      %p135 = scmp.ne.s32.totalorder %s118, %s134
      %p136 = scmp.eq.s32.totalorder %s18, 0
      %p137 = por %p135, %p136
      %p138 = scmp.le.s32.totalorder 1, %s12
      %p139 = scmp.lt.s32.totalorder %s12, 3
      %p140 = pnand %p138, %p139
      %p141 = pneg %p140
      // Predicated region
      $region9: #{gpt2_forward.5} parent=5 // pred_check
        _
      $region10: #{gpt2_forward.5} parent=5 // pred_check_branch
        %143 = sbr.rel (%p140) target = $region12
      $region11: #{gpt2_forward.5} parent=5 // pred_region
        %s144 = ssub.s32 %s12, 1
        // Predicated region
        $region13: #{gpt2_forward.5} parent=11 // pred_check
          %p145 = pneg %p50
        $region14: #{gpt2_forward.5} parent=11 // pred_check_branch
          %147 = sbr.rel (%p145) target = $region16
        $region15: #{gpt2_forward.5} parent=11 // pred_region
          %s148 = smul.u32 4, %s21
          %p149 = scmp.lt.s32.totalorder %s148, 3
          %s150 = scalar_select %p149, %s148, 3
          %s151 = smul.addr %s150, 8
          %s152 = scalar_lea.vmem %s0, %s151
          %s153 = smul.u32 4, %s21
        $region16: #{gpt2_forward.5} parent=11 // pred_fallthru
          _
      $region12: #{gpt2_forward.5} parent=5 // pred_fallthru
        _
      %p154 = scmp.lt.s32.totalorder %s12, 2
      // Predicated region
      $region17: #{gpt2_forward.5} parent=5 // pred_check
        %p155 = pneg %p154
      $region18: #{gpt2_forward.5} parent=5 // pred_check_branch
        %157 = sbr.rel (%p155) target = $region20
      $region19: #{gpt2_forward.5} parent=5 // pred_region
        // Predicated region
        $region21: #{gpt2_forward.5} parent=19 // pred_check
          %p158 = pneg %p70
        $region22: #{gpt2_forward.5} parent=19 // pred_check_branch
          %160 = sbr.rel (%p158) target = $region24
        $region23: #{gpt2_forward.5} parent=19 // pred_region
          %s161 = sand.u32 %s60, 1
          %s162 = sand.u32 %s60, 1
          %s163 = smul.addr %s162, 256
          %s164 = scalar_lea.vmem [#allocation2], %s163
          %s165 = smul.u32 2, %s20
          %s166 = smul.addr %s165, 8
          %s167 = scalar_lea.vmem %s1, %s166
          // Predicated region
          $region25: #{gpt2_forward.5} parent=23 // pred_check
            _
          $region26: #{gpt2_forward.5} parent=23 // pred_check_branch
            %169 = sbr.rel (0) target = $region28
          $region27: #{gpt2_forward.5} parent=23 // pred_region
            // Predicated region
            $region29: #{gpt2_forward.5} parent=27 // pred_check
              _
            $region30: #{gpt2_forward.5} parent=27 // pred_check_branch
              %171 = sbr.rel (0) target = $region32
            $region31: #{gpt2_forward.5} parent=27 // pred_region
              loop: start=0, step=1, limit=1
              $region33: #{gpt2_forward.5} parent=31 // loop_pre_header
                _
              $region34: #{gpt2_forward.5} parent=31 // loop_header
                %s173 = sphi 0, %s177
                %p174 = scmp.ge.s32.totalorder %s173, 1
                %s178 = sphi %s167, %s167
                %s179 = sphi %s164, %s164
              $region35: #{gpt2_forward.5} parent=31 // loop_header_branch
                %176 = sbr.rel (%p174) target = $region39
              $region36: #{gpt2_forward.5} parent=31 // loop_body
                %v180 = vld [vmem:[%s178] sm:$0xff]
                %181 = vst [vmem:[%s179] sm:$0xff] %v180
                %v182 = vld [vmem:[%s178 + $0x8] sm:$0xff]
                %183 = vst [vmem:[%s179 + $0x8] sm:$0xff] %v182
                %v184 = vld [vmem:[%s178 + $0x20] sm:$0xff]
                %185 = vst [vmem:[%s179 + $0x10] sm:$0xff] %v184
                %v186 = vld [vmem:[%s178 + $0x28] sm:$0xff]
                %187 = vst [vmem:[%s179 + $0x18] sm:$0xff] %v186
                %v188 = vld [vmem:[%s178 + $0x40] sm:$0xff]
                %189 = vst [vmem:[%s179 + $0x20] sm:$0xff] %v188
                %v190 = vld [vmem:[%s178 + $0x48] sm:$0xff]
                %191 = vst [vmem:[%s179 + $0x28] sm:$0xff] %v190
                %v192 = vld [vmem:[%s178 + $0x60] sm:$0xff]
                %193 = vst [vmem:[%s179 + $0x30] sm:$0xff] %v192
                %v194 = vld [vmem:[%s178 + $0x68] sm:$0xff]
                %195 = vst [vmem:[%s179 + $0x38] sm:$0xff] %v194
                %v196 = vld [vmem:[%s178 + $0x80] sm:$0xff]
                %197 = vst [vmem:[%s179 + $0x40] sm:$0xff] %v196
                %v198 = vld [vmem:[%s178 + $0x88] sm:$0xff]
                %199 = vst [vmem:[%s179 + $0x48] sm:$0xff] %v198
                %v200 = vld [vmem:[%s178 + $0xa0] sm:$0xff]
                %201 = vst [vmem:[%s179 + $0x50] sm:$0xff] %v200
                %v202 = vld [vmem:[%s178 + $0xa8] sm:$0xff]
                %203 = vst [vmem:[%s179 + $0x58] sm:$0xff] %v202
                %v204 = vld [vmem:[%s178 + $0xc0] sm:$0xff]
                %205 = vst [vmem:[%s179 + $0x60] sm:$0xff] %v204
                %v206 = vld [vmem:[%s178 + $0xc8] sm:$0xff]
                %207 = vst [vmem:[%s179 + $0x68] sm:$0xff] %v206
                %v208 = vld [vmem:[%s178 + $0xe0] sm:$0xff]
                %209 = vst [vmem:[%s179 + $0x70] sm:$0xff] %v208
                %v210 = vld [vmem:[%s178 + $0xe8] sm:$0xff]
                %211 = vst [vmem:[%s179 + $0x78] sm:$0xff] %v210
                %v212 = vld [vmem:[%s178 + $0x100] sm:$0xff]
                %213 = vst [vmem:[%s179 + $0x80] sm:$0xff] %v212
                %v214 = vld [vmem:[%s178 + $0x108] sm:$0xff]
                %215 = vst [vmem:[%s179 + $0x88] sm:$0xff] %v214
                %v216 = vld [vmem:[%s178 + $0x120] sm:$0xff]
                %217 = vst [vmem:[%s179 + $0x90] sm:$0xff] %v216
                %v218 = vld [vmem:[%s178 + $0x128] sm:$0xff]
                %219 = vst [vmem:[%s179 + $0x98] sm:$0xff] %v218
                %v220 = vld [vmem:[%s178 + $0x140] sm:$0xff]
                %221 = vst [vmem:[%s179 + $0xa0] sm:$0xff] %v220
                %v222 = vld [vmem:[%s178 + $0x148] sm:$0xff]
                %223 = vst [vmem:[%s179 + $0xa8] sm:$0xff] %v222
                %v224 = vld [vmem:[%s178 + $0x160] sm:$0xff]
                %225 = vst [vmem:[%s179 + $0xb0] sm:$0xff] %v224
                %v226 = vld [vmem:[%s178 + $0x168] sm:$0xff]
                %227 = vst [vmem:[%s179 + $0xb8] sm:$0xff] %v226
                %v228 = vld [vmem:[%s178 + $0x180] sm:$0xff]
                %229 = vst [vmem:[%s179 + $0xc0] sm:$0xff] %v228
                %v230 = vld [vmem:[%s178 + $0x188] sm:$0xff]
                %231 = vst [vmem:[%s179 + $0xc8] sm:$0xff] %v230
                %v232 = vld [vmem:[%s178 + $0x1a0] sm:$0xff]
                %233 = vst [vmem:[%s179 + $0xd0] sm:$0xff] %v232
                %v234 = vld [vmem:[%s178 + $0x1a8] sm:$0xff]
                %235 = vst [vmem:[%s179 + $0xd8] sm:$0xff] %v234
                %v236 = vld [vmem:[%s178 + $0x1c0] sm:$0xff]
                %237 = vst [vmem:[%s179 + $0xe0] sm:$0xff] %v236
                %v238 = vld [vmem:[%s178 + $0x1c8] sm:$0xff]
                %239 = vst [vmem:[%s179 + $0xe8] sm:$0xff] %v238
                %v240 = vld [vmem:[%s178 + $0x1e0] sm:$0xff]
                %241 = vst [vmem:[%s179 + $0xf0] sm:$0xff] %v240
                %v242 = vld [vmem:[%s178 + $0x1e8] sm:$0xff]
                %243 = vst [vmem:[%s179 + $0xf8] sm:$0xff] %v242
              $region37: #{gpt2_forward.5} parent=31 // loop_footer
                %s177 = sadd.s32 1, %s173
              $region38: #{gpt2_forward.5} parent=31 // loop_footer_branch
                %172 = sbr.rel target = $region34
              $region39: #{gpt2_forward.5} parent=31 // loop_exit
                _
            $region32: #{gpt2_forward.5} parent=27 // pred_fallthru
              _
            // Predicated region
            $region40: #{gpt2_forward.5} parent=27 // pred_check
              _
            $region41: #{gpt2_forward.5} parent=27 // pred_check_branch
              %245 = sbr.rel target = $region43
            $region42: #{gpt2_forward.5} parent=27 // pred_region
              _
            $region43: #{gpt2_forward.5} parent=27 // pred_fallthru
              _
          $region28: #{gpt2_forward.5} parent=23 // pred_fallthru
            _
          %246 = vnop
        $region24: #{gpt2_forward.5} parent=19 // pred_fallthru
          _
        // Predicated region
        $region44: #{gpt2_forward.5} parent=19 // pred_check
          %p247 = pneg %p96
        $region45: #{gpt2_forward.5} parent=19 // pred_check_branch
          %249 = sbr.rel (%p247) target = $region47
        $region46: #{gpt2_forward.5} parent=19 // pred_region
          %s250 = smul.u32 2, %s20
          %p251 = scmp.lt.s32.totalorder %s250, 3
          %s252 = scalar_select %p251, %s250, 3
          %s253 = scalar_lea.vmem %s2, %s252
          %s254 = smul.u32 2, %s20
        $region47: #{gpt2_forward.5} parent=19 // pred_fallthru
          _
      $region20: #{gpt2_forward.5} parent=5 // pred_fallthru
        _
      %p255 = scmp.le.s32.totalorder 1, %s12
      %p256 = scmp.lt.s32.totalorder %s12, 3
      %p257 = pnand %p255, %p256
      %p258 = pneg %p257
      // Predicated region
      $region48: #{gpt2_forward.5} parent=5 // pred_check
        _
      $region49: #{gpt2_forward.5} parent=5 // pred_check_branch
        %260 = sbr.rel (%p257) target = $region51
      $region50: #{gpt2_forward.5} parent=5 // pred_region
        %s261 = ssub.s32 %s12, 1
        %s262 = sand.u32 %s63, 1
        %s263 = sand.u32 %s63, 1
        %s264 = smul.addr %s263, 256
        %s265 = scalar_lea.vmem [#allocation2], %s264
        // Predicated region
        $region52: #{gpt2_forward.5} parent=50 // pred_check
          %p266 = pneg %p76
        $region53: #{gpt2_forward.5} parent=50 // pred_check_branch
          %268 = sbr.rel (%p266) target = $region55
        $region54: #{gpt2_forward.5} parent=50 // pred_region
          _
        $region55: #{gpt2_forward.5} parent=50 // pred_fallthru
          _
        %s269 = smul.u32 4, %s21
        %p270 = scmp.lt.s32.totalorder %s269, 3
        %s271 = scalar_select %p270, %s269, 3
        %s272 = smul.addr %s271, 8
        %s273 = scalar_lea.vmem %s0, %s272
        %p274 = pneg %p50
        %p275 = pneg %p47
        %s276 = sand.u32 %s63, 1
        %s277 = sand.u32 %s63, 1
        %s278 = smul.addr %s277, 256
        %s279 = scalar_lea.vmem [#allocation2], %s278
        %p280 = pneg %p76
        %p281 = pneg %p73
        %s282 = smul.u32 2, %s22
        %p283 = scmp.lt.s32.totalorder %s282, 3
        %s284 = scalar_select %p283, %s282, 3
        %s285 = scalar_lea.vmem %s2, %s284
        %p286 = pneg %p102
        %p287 = pneg %p99
        %p288 = pneg %p130
        %p289 = pneg %p127
        %s290 = sand.u32 %s117, 1
        %s291 = scalar_lea.sflag [#allocation4], %s290
        %s292 = sand.u32 %s117, 1
        %s293 = smul.addr %s292, 64
        %s294 = scalar_lea.vmem [#allocation3], %s293
        %s295 = smul.u32 4, %s21
        %p296 = scmp.lt.s32.totalorder %s295, 3
        %s297 = scalar_select %p296, %s295, 3
        %s298 = smul.addr %s297, 8
        %s299 = scalar_lea.vmem %s0, %s298
        %s300 = smul.u32 4, %s21
        %s301 = smul.u32 2, %s22
        %s302 = smul.u32 2, %s22
        %p303 = scmp.lt.s32.totalorder %s302, 3
        %s304 = scalar_select %p303, %s302, 3
        %s305 = scalar_lea.vmem %s2, %s304
        %s306 = smul.u32 2, %s22
        %s307 = smul.u32 4, %s21
        %s308 = smul.u32 2, %s22
        %v309 = vld [vmem:[%s299] sm:$0xff]
        %v310 = vld [vmem:[%s299 + $0x8] sm:$0xff]
        %v311 = vld [vmem:[%s299 + $0x10] sm:$0xff]
        %v312 = vld [vmem:[%s299 + $0x18] sm:$0xff]
        %v313 = vld [vmem:[%s265] sm:$0xff]
        %v314 = vld [vmem:[%s265 + $0x8] sm:$0xff]
        %v315 = vld [vmem:[%s265 + $0x10] sm:$0xff]
        %v316 = vld [vmem:[%s265 + $0x18] sm:$0xff]
        %v317 = vld [vmem:[%s265 + $0x20] sm:$0xff]
        %v318 = vld [vmem:[%s265 + $0x28] sm:$0xff]
        %v319 = vld [vmem:[%s265 + $0x30] sm:$0xff]
        %v320 = vld [vmem:[%s265 + $0x38] sm:$0xff]
        %v321 = vld [vmem:[%s265 + $0x40] sm:$0xff]
        %v322 = vld [vmem:[%s265 + $0x48] sm:$0xff]
        %v323 = vld [vmem:[%s265 + $0x50] sm:$0xff]
        %v324 = vld [vmem:[%s265 + $0x58] sm:$0xff]
        %v325 = vld [vmem:[%s265 + $0x60] sm:$0xff]
        %v326 = vld [vmem:[%s265 + $0x68] sm:$0xff]
        %v327 = vld [vmem:[%s265 + $0x70] sm:$0xff]
        %v328 = vld [vmem:[%s265 + $0x78] sm:$0xff]
        %v329 = vld [vmem:[%s265 + $0x80] sm:$0xff]
        %v330 = vld [vmem:[%s265 + $0x88] sm:$0xff]
        %v331 = vld [vmem:[%s265 + $0x90] sm:$0xff]
        %v332 = vld [vmem:[%s265 + $0x98] sm:$0xff]
        %v333 = vld [vmem:[%s265 + $0xa0] sm:$0xff]
        %v334 = vld [vmem:[%s265 + $0xa8] sm:$0xff]
        %v335 = vld [vmem:[%s265 + $0xb0] sm:$0xff]
        %v336 = vld [vmem:[%s265 + $0xb8] sm:$0xff]
        %v337 = vld [vmem:[%s265 + $0xc0] sm:$0xff]
        %v338 = vld [vmem:[%s265 + $0xc8] sm:$0xff]
        %v339 = vld [vmem:[%s265 + $0xd0] sm:$0xff]
        %v340 = vld [vmem:[%s265 + $0xd8] sm:$0xff]
        %v341 = vld [vmem:[%s265 + $0xe0] sm:$0xff]
        %v342 = vld [vmem:[%s265 + $0xe8] sm:$0xff]
        %v343 = vld [vmem:[%s265 + $0xf0] sm:$0xff]
        %v344 = vld [vmem:[%s265 + $0xf8] sm:$0xff]
        %v345 = vld [vmem:[%s305] sm:$0x3]
        %v347 = vlaneseq
        %v348 = vshrl.u32 %v347, 7
        %v349 = vsub.s32 0, %v348
        %v350 = vrot.slane %v345, %v349
        %v351 = vlaneseq
        %v352 = vshrl.u32 %v351, 7
        %v353 = vsub.s32 1, %v352
        %v354 = vrot.slane %v345, %v353
        %357 = vmatprep.subr.mxu0 %v344
        %358 = vmatpush1.msra.mxu0 %v343
        %359 = vmatprep.subr.mxu0 %v342
        %360 = vmatpush1.msra.mxu0 %v341
        %361 = vmatprep.subr.mxu0 %v340
        %362 = vmatpush1.msra.mxu0 %v339
        %363 = vmatprep.subr.mxu0 %v338
        %364 = vmatpush1.msra.mxu0 %v337
        %365 = vmatprep.subr.mxu0 %v336
        %366 = vmatpush1.msra.mxu0 %v335
        %367 = vmatprep.subr.mxu0 %v334
        %368 = vmatpush1.msra.mxu0 %v333
        %369 = vmatprep.subr.mxu0 %v332
        %370 = vmatpush1.msra.mxu0 %v331
        %371 = vmatprep.subr.mxu0 %v330
        %372 = vmatpush1.msra.mxu0 %v329
        %373 = vmatprep.subr.mxu0 %v328
        %374 = vmatpush1.msra.mxu0 %v327
        %375 = vmatprep.subr.mxu0 %v326
        %376 = vmatpush1.msra.mxu0 %v325
        %377 = vmatprep.subr.mxu0 %v324
        %378 = vmatpush1.msra.mxu0 %v323
        %379 = vmatprep.subr.mxu0 %v322
        %380 = vmatpush1.msra.mxu0 %v321
        %381 = vmatprep.subr.mxu0 %v320
        %382 = vmatpush1.msra.mxu0 %v319
        %383 = vmatprep.subr.mxu0 %v318
        %384 = vmatpush1.msra.mxu0 %v317
        %385 = vmatprep.subr.mxu0 %v316
        %386 = vmatpush1.msra.mxu0 %v315
        %387 = vmatprep.subr.mxu0 %v314
        %388 = vmatpush1.msra.mxu0 %v313
        %389 = vmatprep.subr.mxu0 0.0
        %390 = vmatpush2.msra.mxu0 0.0
        %391 = vmatprep.subr.mxu0 0.0
        %392 = vmatpush2.msra.mxu0 0.0
        %393 = vmatprep.subr.mxu0 0.0
        %394 = vmatpush2.msra.mxu0 0.0
        %395 = vmatprep.subr.mxu0 0.0
        %396 = vmatpush2.msra.mxu0 0.0
        %397 = vmatprep.subr.mxu0 0.0
        %398 = vmatpush2.msra.mxu0 0.0
        %399 = vmatprep.subr.mxu0 0.0
        %400 = vmatpush2.msra.mxu0 0.0
        %401 = vmatprep.subr.mxu0 0.0
        %402 = vmatpush2.msra.mxu0 0.0
        %403 = vmatprep.subr.mxu0 0.0
        %404 = vmatpush2.msra.mxu0 0.0
        %405 = vmatprep.subr.mxu0 0.0
        %406 = vmatpush2.msra.mxu0 0.0
        %407 = vmatprep.subr.mxu0 0.0
        %408 = vmatpush2.msra.mxu0 0.0
        %409 = vmatprep.subr.mxu0 0.0
        %410 = vmatpush2.msra.mxu0 0.0
        %411 = vmatprep.subr.mxu0 0.0
        %412 = vmatpush2.msra.mxu0 0.0
        %413 = vmatprep.subr.mxu0 0.0
        %414 = vmatpush2.msra.mxu0 0.0
        %415 = vmatprep.subr.mxu0 0.0
        %416 = vmatpush2.msra.mxu0 0.0
        %417 = vmatprep.subr.mxu0 0.0
        %418 = vmatpush2.msra.mxu0 0.0
        %419 = vmatprep.subr.mxu0 0.0
        %420 = vmatpush2.msra.mxu0 0.0
        %421 = vmatprep.mubr.f32.mxu0 0.0
        %422 = vmatmul.mubr.f32.gmra.mxu0 %v309
        %v423 = vpop.f32.mrf.mxu0
        %v424 = vadd.f32 %v350, %v423
        %v425 = vpop.f32.mrf.mxu0
        %v426 = vadd.f32 %v354, %v425
        %427 = vmatprep.mubr.f32.mxu0 0.0
        %428 = vmatmul.mubr.f32.gmra.mxu0 %v310
        %v429 = vpop.f32.mrf.mxu0
        %v430 = vadd.f32 %v350, %v429
        %v431 = vpop.f32.mrf.mxu0
        %v432 = vadd.f32 %v354, %v431
        %433 = vmatprep.mubr.f32.mxu0 0.0
        %434 = vmatmul.mubr.f32.gmra.mxu0 %v311
        %v435 = vpop.f32.mrf.mxu0
        %v436 = vadd.f32 %v350, %v435
        %v437 = vpop.f32.mrf.mxu0
        %v438 = vadd.f32 %v354, %v437
        %439 = vmatprep.mubr.f32.mxu0 0.0
        %440 = vmatmul.mubr.f32.gmra.mxu0 %v312
        %v441 = vpop.f32.mrf.mxu0
        %v442 = vadd.f32 %v350, %v441
        %v443 = vpop.f32.mrf.mxu0
        %v444 = vadd.f32 %v354, %v443
        %445 = vdwg.mxu0
        %446 = vst [vmem:[%s294] sm:$0xff] %v424
        %447 = vst [vmem:[%s294 + $0x8] sm:$0xff] %v426
        %448 = vst [vmem:[%s294 + $0x10] sm:$0xff] %v430
        %449 = vst [vmem:[%s294 + $0x18] sm:$0xff] %v432
        %450 = vst [vmem:[%s294 + $0x20] sm:$0xff] %v436
        %451 = vst [vmem:[%s294 + $0x28] sm:$0xff] %v438
        %452 = vst [vmem:[%s294 + $0x30] sm:$0xff] %v442
        %453 = vst [vmem:[%s294 + $0x38] sm:$0xff] %v444
        %s454 = sand.u32 %s117, 1
        %s455 = scalar_lea.sflag [#allocation4], %s454
        %s456 = sand.u32 %s117, 1
        %s457 = smul.addr %s456, 64
        %s458 = scalar_lea.vmem [#allocation3], %s457
        // Predicated region
        $region56: #{gpt2_forward.5} parent=50 // pred_check
          %p459 = pneg %p127
        $region57: #{gpt2_forward.5} parent=50 // pred_check_branch
          %461 = sbr.rel (%p459) target = $region59
        $region58: #{gpt2_forward.5} parent=50 // pred_region
          %s462 = smul.u32 4, %s21
          %s463 = smul.u32 2, %s22
          %s465 = ssub.s32 1024, 1024
          %466 = vsyncadd %s455, %s465
          %s467 = smul.addr %s462, 4
          %s468 = sadd.s32 %s463, %s467
          %s469 = smul.addr %s468, 128
          %s470 = scalar_lea.hbm %s3, %s469
          %s471 = sshll.u32 %s458, 4
          %s472 = int_to_ptr.vmem [resolvable:$true] %s471
          %477 = dma.vmem_to_hbm [thread:$0]  %s472, 1024, %s470, %s455, 256, 512, 16
        $region59: #{gpt2_forward.5} parent=50 // pred_fallthru
          _
      $region51: #{gpt2_forward.5} parent=5 // pred_fallthru
        _
      %p478 = scmp.le.s32.totalorder 2, %s12
      // Predicated region
      $region60: #{gpt2_forward.5} parent=5 // pred_check
        %p479 = pneg %p478
      $region61: #{gpt2_forward.5} parent=5 // pred_check_branch
        %481 = sbr.rel (%p479) target = $region63
      $region62: #{gpt2_forward.5} parent=5 // pred_region
        %s482 = ssub.s32 %s12, 2
        // Predicated region
        $region64: #{gpt2_forward.5} parent=62 // pred_check
          %p483 = pneg %p133
        $region65: #{gpt2_forward.5} parent=62 // pred_check_branch
          %485 = sbr.rel (%p483) target = $region67
        $region66: #{gpt2_forward.5} parent=62 // pred_region
          %s486 = sand.u32 %s118, 1
          %s487 = scalar_lea.sflag [#allocation4], %s486
          %s488 = sand.u32 %s118, 1
          %s489 = smul.addr %s488, 64
          %s490 = scalar_lea.vmem [#allocation3], %s489
          %491 = dma.done %s487, 1024
        $region67: #{gpt2_forward.5} parent=62 // pred_fallthru
          _
      $region63: #{gpt2_forward.5} parent=5 // pred_fallthru
        _
    $region6: #{gpt2_forward.5} parent=1 // loop_footer
      %s16 = sadd.s32 1, %s12
    $region7: #{gpt2_forward.5} parent=1 // loop_footer_branch
      %11 = sbr.rel target = $region3
    $region8: #{gpt2_forward.5} parent=1 // loop_exit
      _
    %492 = vsyncpa [#allocation4], 1
    %s493 = scalar_lea.sflag [#allocation4], 1
    %494 = vsyncpa %s493, 1

// kernel: gpt2_forward.4
$region0: #{gpt2_forward.4}
  #allocation0 [shape = 'u32[]', space=smem, size = 0x4, offset = 0x4, fixed_abs, tag = 'smem constant byte address 0x4 - core index']
  #allocation1 [shape = 'u32[144,128]{1,0:T(1,128)}', space=vmem, size = 0x12000, scoped, tag = 'internal scratch']
  %s0 = inlined_call_operand.vmem [shape: f32[2,16,128], index: 0, kind: input, shape index: {}]
  %s1 = inlined_call_operand.vmem [shape: s8[2,1,16,16], index: 1, kind: input, shape index: {}]
  %s2 = inlined_call_operand.vmem [shape: f32[128,384], index: 2, kind: input, shape index: {}]
  %s3 = inlined_call_operand.vmem [shape: f32[128,128], index: 3, kind: input, shape index: {}]
  %s4 = inlined_call_operand.vmem [shape: f32[1,128], index: 4, kind: input, shape index: {}]
  %s5 = inlined_call_operand.vmem [shape: f32[1,128], index: 5, kind: input, shape index: {}]
  %s6 = inlined_call_operand.vmem [shape: f32[1,128], index: 6, kind: input, shape index: {}]
  %s7 = inlined_call_operand.vmem [shape: f32[128,512], index: 7, kind: input, shape index: {}]
  %s8 = inlined_call_operand.vmem [shape: f32[1,512], index: 8, kind: input, shape index: {}]
  %s9 = inlined_call_operand.vmem [shape: f32[512,128], index: 9, kind: input, shape index: {}]
  %s10 = inlined_call_operand.vmem [shape: f32[1,128], index: 10, kind: input, shape index: {}]
  %s11 = inlined_call_operand.vmem [shape: f32[1,128], index: 11, kind: input, shape index: {}]
  %s12 = inlined_call_operand.vmem [shape: f32[1,128], index: 12, kind: input, shape index: {}]
  %s13 = inlined_call_operand.vmem [shape: f32[2,16,128], index: 13, kind: output, shape index: {}]
  %s14 = sld [smem:[#allocation0]]
  $region85: #{gpt2_forward.4} parent=0
    _
  %s16 = ssub.s32 1, %s14
  %s17 = scalar_select 0, %s16, %s14
  loop: start=0, step=1, limit=4
  $region2: #{gpt2_forward.4} parent=0 // loop_pre_header
    _
  $region3: #{gpt2_forward.4} parent=0 // loop_header
    %s19 = sphi 0, %s23
    %p20 = scmp.ge.s32.totalorder %s19, 4
    %s29 = sphi 0, %s31
    %s32 = sphi 0, %s29
    %s33 = sphi 0, %s32
    %s49 = sphi 0, %s33
    %s55 = sphi 0, %s57
    %s58 = sphi 0, %s55
    %s59 = sphi 0, %s58
    %s75 = sphi 0, %s59
    %s79 = sphi 0, %s79
    %s81 = sphi 0, %s79
    %s82 = sphi 0, %s81
    %s96 = sphi 0, %s82
    %s100 = sphi 0, %s100
    %s102 = sphi 0, %s100
    %s103 = sphi 0, %s102
    %s117 = sphi 0, %s103
    %s121 = sphi 0, %s121
    %s123 = sphi 0, %s121
    %s124 = sphi 0, %s123
    %s138 = sphi 0, %s124
    %s142 = sphi 0, %s142
    %s144 = sphi 0, %s142
    %s145 = sphi 0, %s144
    %s159 = sphi 0, %s145
    %s163 = sphi 0, %s163
    %s165 = sphi 0, %s163
    %s166 = sphi 0, %s165
    %s180 = sphi 0, %s166
    %s184 = sphi 0, %s184
    %s186 = sphi 0, %s184
    %s187 = sphi 0, %s186
    %s201 = sphi 0, %s187
    %s205 = sphi 0, %s205
    %s207 = sphi 0, %s205
    %s208 = sphi 0, %s207
    %s222 = sphi 0, %s208
    %s226 = sphi 0, %s226
    %s228 = sphi 0, %s226
    %s229 = sphi 0, %s228
    %s243 = sphi 0, %s229
    %s247 = sphi 0, %s247
    %s249 = sphi 0, %s247
    %s250 = sphi 0, %s249
    %s264 = sphi 0, %s250
    %s268 = sphi 0, %s268
    %s270 = sphi 0, %s268
    %s271 = sphi 0, %s270
    %s285 = sphi 0, %s271
    %s289 = sphi 0, %s289
    %s291 = sphi 0, %s289
    %s292 = sphi 0, %s291
    %s306 = sphi 0, %s292
    %s312 = sphi 0, %s314
    %s315 = sphi 0, %s312
    %s316 = sphi 0, %s315
    %s332 = sphi 0, %s316
  $region4: #{gpt2_forward.4} parent=0 // loop_header_branch
    %22 = sbr.rel (%p20) target = $region8
  $region5: #{gpt2_forward.4} parent=0 // loop_body
    %s24 = ssub.s32 %s19, 1
    %s25 = ssub.s32 %s19, 2
    %s26 = sadd.s32 %s19, 1
    %s27 = ssub.s32 %s19, %s26
    %p28 = scmp.eq.s32.totalorder %s27, 0
    %s30 = sadd.s32 %s29, 1
    %s31 = scalar_select %p28, %s29, %s30
    %p34 = pneg %p28
    %p35 = scmp.eq.s32.totalorder %s19, 1
    %p36 = por %p34, %p35
    %p37 = scmp.ne.s32.totalorder %s29, %s32
    %p38 = scmp.eq.s32.totalorder %s19, 0
    %p39 = por %p37, %p38
    %p40 = scmp.ne.s32.totalorder %s29, %s32
    %p41 = scmp.eq.s32.totalorder %s24, 1
    %p42 = por %p40, %p41
    %p43 = scmp.ne.s32.totalorder %s32, %s33
    %p44 = scmp.eq.s32.totalorder %s24, 0
    %p45 = por %p43, %p44
    %p46 = scmp.ne.s32.totalorder %s32, %s33
    %p47 = scmp.eq.s32.totalorder %s25, 1
    %p48 = por %p46, %p47
    %p50 = scmp.ne.s32.totalorder %s33, %s49
    %p51 = scmp.eq.s32.totalorder %s25, 0
    %p52 = por %p50, %p51
    %s53 = ssub.s32 %s19, %s26
    %p54 = scmp.eq.s32.totalorder %s53, 0
    %s56 = sadd.s32 %s55, 1
    %s57 = scalar_select %p54, %s55, %s56
    %p60 = pneg %p54
    %p61 = scmp.eq.s32.totalorder %s19, 1
    %p62 = por %p60, %p61
    %p63 = scmp.ne.s32.totalorder %s55, %s58
    %p64 = scmp.eq.s32.totalorder %s19, 0
    %p65 = por %p63, %p64
    %p66 = scmp.ne.s32.totalorder %s55, %s58
    %p67 = scmp.eq.s32.totalorder %s24, 1
    %p68 = por %p66, %p67
    %p69 = scmp.ne.s32.totalorder %s58, %s59
    %p70 = scmp.eq.s32.totalorder %s24, 0
    %p71 = por %p69, %p70
    %p72 = scmp.ne.s32.totalorder %s58, %s59
    %p73 = scmp.eq.s32.totalorder %s25, 1
    %p74 = por %p72, %p73
    %p76 = scmp.ne.s32.totalorder %s59, %s75
    %p77 = scmp.eq.s32.totalorder %s25, 0
    %p78 = por %p76, %p77
    %s80 = sadd.s32 %s79, 1
    %p83 = scmp.eq.s32.totalorder %s19, 1
    %p84 = scmp.ne.s32.totalorder %s79, %s81
    %p85 = scmp.eq.s32.totalorder %s19, 0
    %p86 = por %p84, %p85
    %p87 = scmp.ne.s32.totalorder %s79, %s81
    %p88 = scmp.eq.s32.totalorder %s24, 1
    %p89 = por %p87, %p88
    %p90 = scmp.ne.s32.totalorder %s81, %s82
    %p91 = scmp.eq.s32.totalorder %s24, 0
    %p92 = por %p90, %p91
    %p93 = scmp.ne.s32.totalorder %s81, %s82
    %p94 = scmp.eq.s32.totalorder %s25, 1
    %p95 = por %p93, %p94
    %p97 = scmp.ne.s32.totalorder %s82, %s96
    %p98 = scmp.eq.s32.totalorder %s25, 0
    %p99 = por %p97, %p98
    %s101 = sadd.s32 %s100, 1
    %p104 = scmp.eq.s32.totalorder %s19, 1
    %p105 = scmp.ne.s32.totalorder %s100, %s102
    %p106 = scmp.eq.s32.totalorder %s19, 0
    %p107 = por %p105, %p106
    %p108 = scmp.ne.s32.totalorder %s100, %s102
    %p109 = scmp.eq.s32.totalorder %s24, 1
    %p110 = por %p108, %p109
    %p111 = scmp.ne.s32.totalorder %s102, %s103
    %p112 = scmp.eq.s32.totalorder %s24, 0
    %p113 = por %p111, %p112
    %p114 = scmp.ne.s32.totalorder %s102, %s103
    %p115 = scmp.eq.s32.totalorder %s25, 1
    %p116 = por %p114, %p115
    %p118 = scmp.ne.s32.totalorder %s103, %s117
    %p119 = scmp.eq.s32.totalorder %s25, 0
    %p120 = por %p118, %p119
    %s122 = sadd.s32 %s121, 1
    %p125 = scmp.eq.s32.totalorder %s19, 1
    %p126 = scmp.ne.s32.totalorder %s121, %s123
    %p127 = scmp.eq.s32.totalorder %s19, 0
    %p128 = por %p126, %p127
    %p129 = scmp.ne.s32.totalorder %s121, %s123
    %p130 = scmp.eq.s32.totalorder %s24, 1
    %p131 = por %p129, %p130
    %p132 = scmp.ne.s32.totalorder %s123, %s124
    %p133 = scmp.eq.s32.totalorder %s24, 0
    %p134 = por %p132, %p133
    %p135 = scmp.ne.s32.totalorder %s123, %s124
    %p136 = scmp.eq.s32.totalorder %s25, 1
    %p137 = por %p135, %p136
    %p139 = scmp.ne.s32.totalorder %s124, %s138
    %p140 = scmp.eq.s32.totalorder %s25, 0
    %p141 = por %p139, %p140
    %s143 = sadd.s32 %s142, 1
    %p146 = scmp.eq.s32.totalorder %s19, 1
    %p147 = scmp.ne.s32.totalorder %s142, %s144
    %p148 = scmp.eq.s32.totalorder %s19, 0
    %p149 = por %p147, %p148
    %p150 = scmp.ne.s32.totalorder %s142, %s144
    %p151 = scmp.eq.s32.totalorder %s24, 1
    %p152 = por %p150, %p151
    %p153 = scmp.ne.s32.totalorder %s144, %s145
    %p154 = scmp.eq.s32.totalorder %s24, 0
    %p155 = por %p153, %p154
    %p156 = scmp.ne.s32.totalorder %s144, %s145
    %p157 = scmp.eq.s32.totalorder %s25, 1
    %p158 = por %p156, %p157
    %p160 = scmp.ne.s32.totalorder %s145, %s159
    %p161 = scmp.eq.s32.totalorder %s25, 0
    %p162 = por %p160, %p161
    %s164 = sadd.s32 %s163, 1
    %p167 = scmp.eq.s32.totalorder %s19, 1
    %p168 = scmp.ne.s32.totalorder %s163, %s165
    %p169 = scmp.eq.s32.totalorder %s19, 0
    %p170 = por %p168, %p169
    %p171 = scmp.ne.s32.totalorder %s163, %s165
    %p172 = scmp.eq.s32.totalorder %s24, 1
    %p173 = por %p171, %p172
    %p174 = scmp.ne.s32.totalorder %s165, %s166
    %p175 = scmp.eq.s32.totalorder %s24, 0
    %p176 = por %p174, %p175
    %p177 = scmp.ne.s32.totalorder %s165, %s166
    %p178 = scmp.eq.s32.totalorder %s25, 1
    %p179 = por %p177, %p178
    %p181 = scmp.ne.s32.totalorder %s166, %s180
    %p182 = scmp.eq.s32.totalorder %s25, 0
    %p183 = por %p181, %p182
    %s185 = sadd.s32 %s184, 1
    %p188 = scmp.eq.s32.totalorder %s19, 1
    %p189 = scmp.ne.s32.totalorder %s184, %s186
    %p190 = scmp.eq.s32.totalorder %s19, 0
    %p191 = por %p189, %p190
    %p192 = scmp.ne.s32.totalorder %s184, %s186
    %p193 = scmp.eq.s32.totalorder %s24, 1
    %p194 = por %p192, %p193
    %p195 = scmp.ne.s32.totalorder %s186, %s187
    %p196 = scmp.eq.s32.totalorder %s24, 0
    %p197 = por %p195, %p196
    %p198 = scmp.ne.s32.totalorder %s186, %s187
    %p199 = scmp.eq.s32.totalorder %s25, 1
    %p200 = por %p198, %p199
    %p202 = scmp.ne.s32.totalorder %s187, %s201
    %p203 = scmp.eq.s32.totalorder %s25, 0
    %p204 = por %p202, %p203
    %s206 = sadd.s32 %s205, 1
    %p209 = scmp.eq.s32.totalorder %s19, 1
    %p210 = scmp.ne.s32.totalorder %s205, %s207
    %p211 = scmp.eq.s32.totalorder %s19, 0
    %p212 = por %p210, %p211
    %p213 = scmp.ne.s32.totalorder %s205, %s207
    %p214 = scmp.eq.s32.totalorder %s24, 1
    %p215 = por %p213, %p214
    %p216 = scmp.ne.s32.totalorder %s207, %s208
    %p217 = scmp.eq.s32.totalorder %s24, 0
    %p218 = por %p216, %p217
    %p219 = scmp.ne.s32.totalorder %s207, %s208
    %p220 = scmp.eq.s32.totalorder %s25, 1
    %p221 = por %p219, %p220
    %p223 = scmp.ne.s32.totalorder %s208, %s222
    %p224 = scmp.eq.s32.totalorder %s25, 0
    %p225 = por %p223, %p224
    %s227 = sadd.s32 %s226, 1
    %p230 = scmp.eq.s32.totalorder %s19, 1
    %p231 = scmp.ne.s32.totalorder %s226, %s228
    %p232 = scmp.eq.s32.totalorder %s19, 0
    %p233 = por %p231, %p232
    %p234 = scmp.ne.s32.totalorder %s226, %s228
    %p235 = scmp.eq.s32.totalorder %s24, 1
    %p236 = por %p234, %p235
    %p237 = scmp.ne.s32.totalorder %s228, %s229
    %p238 = scmp.eq.s32.totalorder %s24, 0
    %p239 = por %p237, %p238
    %p240 = scmp.ne.s32.totalorder %s228, %s229
    %p241 = scmp.eq.s32.totalorder %s25, 1
    %p242 = por %p240, %p241
    %p244 = scmp.ne.s32.totalorder %s229, %s243
    %p245 = scmp.eq.s32.totalorder %s25, 0
    %p246 = por %p244, %p245
    %s248 = sadd.s32 %s247, 1
    %p251 = scmp.eq.s32.totalorder %s19, 1
    %p252 = scmp.ne.s32.totalorder %s247, %s249
    %p253 = scmp.eq.s32.totalorder %s19, 0
    %p254 = por %p252, %p253
    %p255 = scmp.ne.s32.totalorder %s247, %s249
    %p256 = scmp.eq.s32.totalorder %s24, 1
    %p257 = por %p255, %p256
    %p258 = scmp.ne.s32.totalorder %s249, %s250
    %p259 = scmp.eq.s32.totalorder %s24, 0
    %p260 = por %p258, %p259
    %p261 = scmp.ne.s32.totalorder %s249, %s250
    %p262 = scmp.eq.s32.totalorder %s25, 1
    %p263 = por %p261, %p262
    %p265 = scmp.ne.s32.totalorder %s250, %s264
    %p266 = scmp.eq.s32.totalorder %s25, 0
    %p267 = por %p265, %p266
    %s269 = sadd.s32 %s268, 1
    %p272 = scmp.eq.s32.totalorder %s19, 1
    %p273 = scmp.ne.s32.totalorder %s268, %s270
    %p274 = scmp.eq.s32.totalorder %s19, 0
    %p275 = por %p273, %p274
    %p276 = scmp.ne.s32.totalorder %s268, %s270
    %p277 = scmp.eq.s32.totalorder %s24, 1
    %p278 = por %p276, %p277
    %p279 = scmp.ne.s32.totalorder %s270, %s271
    %p280 = scmp.eq.s32.totalorder %s24, 0
    %p281 = por %p279, %p280
    %p282 = scmp.ne.s32.totalorder %s270, %s271
    %p283 = scmp.eq.s32.totalorder %s25, 1
    %p284 = por %p282, %p283
    %p286 = scmp.ne.s32.totalorder %s271, %s285
    %p287 = scmp.eq.s32.totalorder %s25, 0
    %p288 = por %p286, %p287
    %s290 = sadd.s32 %s289, 1
    %p293 = scmp.eq.s32.totalorder %s19, 1
    %p294 = scmp.ne.s32.totalorder %s289, %s291
    %p295 = scmp.eq.s32.totalorder %s19, 0
    %p296 = por %p294, %p295
    %p297 = scmp.ne.s32.totalorder %s289, %s291
    %p298 = scmp.eq.s32.totalorder %s24, 1
    %p299 = por %p297, %p298
    %p300 = scmp.ne.s32.totalorder %s291, %s292
    %p301 = scmp.eq.s32.totalorder %s24, 0
    %p302 = por %p300, %p301
    %p303 = scmp.ne.s32.totalorder %s291, %s292
    %p304 = scmp.eq.s32.totalorder %s25, 1
    %p305 = por %p303, %p304
    %p307 = scmp.ne.s32.totalorder %s292, %s306
    %p308 = scmp.eq.s32.totalorder %s25, 0
    %p309 = por %p307, %p308
    %s310 = ssub.s32 %s19, %s26
    %p311 = scmp.eq.s32.totalorder %s310, 0
    %s313 = sadd.s32 %s312, 1
    %s314 = scalar_select %p311, %s312, %s313
    %p317 = pneg %p311
    %p318 = scmp.eq.s32.totalorder %s19, 1
    %p319 = por %p317, %p318
    %p320 = scmp.ne.s32.totalorder %s312, %s315
    %p321 = scmp.eq.s32.totalorder %s19, 0
    %p322 = por %p320, %p321
    %p323 = scmp.ne.s32.totalorder %s312, %s315
    %p324 = scmp.eq.s32.totalorder %s24, 1
    %p325 = por %p323, %p324
    %p326 = scmp.ne.s32.totalorder %s315, %s316
    %p327 = scmp.eq.s32.totalorder %s24, 0
    %p328 = por %p326, %p327
    %p329 = scmp.ne.s32.totalorder %s315, %s316
    %p330 = scmp.eq.s32.totalorder %s25, 1
    %p331 = por %p329, %p330
    %p333 = scmp.ne.s32.totalorder %s316, %s332
    %p334 = scmp.eq.s32.totalorder %s25, 0
    %p335 = por %p333, %p334
    %p336 = scmp.le.s32.totalorder 1, %s19
    %p337 = scmp.lt.s32.totalorder %s19, 3
    %p338 = pnand %p336, %p337
    %p339 = pneg %p338
    // Predicated region
    $region9: #{gpt2_forward.4} parent=5 // pred_check
      _
    $region10: #{gpt2_forward.4} parent=5 // pred_check_branch
      %341 = sbr.rel (%p338) target = $region12
    $region11: #{gpt2_forward.4} parent=5 // pred_region
      %s342 = ssub.s32 %s19, 1
      // Predicated region
      $region13: #{gpt2_forward.4} parent=11 // pred_check
        %p343 = pneg %p92
      $region14: #{gpt2_forward.4} parent=11 // pred_check_branch
        %345 = sbr.rel (%p343) target = $region16
      $region15: #{gpt2_forward.4} parent=11 // pred_region
        _
      $region16: #{gpt2_forward.4} parent=11 // pred_fallthru
        _
      // Predicated region
      $region17: #{gpt2_forward.4} parent=11 // pred_check
        %p346 = pneg %p113
      $region18: #{gpt2_forward.4} parent=11 // pred_check_branch
        %348 = sbr.rel (%p346) target = $region20
      $region19: #{gpt2_forward.4} parent=11 // pred_region
        _
      $region20: #{gpt2_forward.4} parent=11 // pred_fallthru
        _
      // Predicated region
      $region21: #{gpt2_forward.4} parent=11 // pred_check
        %p349 = pneg %p134
      $region22: #{gpt2_forward.4} parent=11 // pred_check_branch
        %351 = sbr.rel (%p349) target = $region24
      $region23: #{gpt2_forward.4} parent=11 // pred_region
        _
      $region24: #{gpt2_forward.4} parent=11 // pred_fallthru
        _
      // Predicated region
      $region25: #{gpt2_forward.4} parent=11 // pred_check
        %p352 = pneg %p155
      $region26: #{gpt2_forward.4} parent=11 // pred_check_branch
        %354 = sbr.rel (%p352) target = $region28
      $region27: #{gpt2_forward.4} parent=11 // pred_region
        _
      $region28: #{gpt2_forward.4} parent=11 // pred_fallthru
        _
      // Predicated region
      $region29: #{gpt2_forward.4} parent=11 // pred_check
        %p355 = pneg %p176
      $region30: #{gpt2_forward.4} parent=11 // pred_check_branch
        %357 = sbr.rel (%p355) target = $region32
      $region31: #{gpt2_forward.4} parent=11 // pred_region
        _
      $region32: #{gpt2_forward.4} parent=11 // pred_fallthru
        _
      // Predicated region
      $region33: #{gpt2_forward.4} parent=11 // pred_check
        %p358 = pneg %p197
      $region34: #{gpt2_forward.4} parent=11 // pred_check_branch
        %360 = sbr.rel (%p358) target = $region36
      $region35: #{gpt2_forward.4} parent=11 // pred_region
        _
      $region36: #{gpt2_forward.4} parent=11 // pred_fallthru
        _
      // Predicated region
      $region37: #{gpt2_forward.4} parent=11 // pred_check
        %p361 = pneg %p218
      $region38: #{gpt2_forward.4} parent=11 // pred_check_branch
        %363 = sbr.rel (%p361) target = $region40
      $region39: #{gpt2_forward.4} parent=11 // pred_region
        _
      $region40: #{gpt2_forward.4} parent=11 // pred_fallthru
        _
      // Predicated region
      $region41: #{gpt2_forward.4} parent=11 // pred_check
        %p364 = pneg %p239
      $region42: #{gpt2_forward.4} parent=11 // pred_check_branch
        %366 = sbr.rel (%p364) target = $region44
      $region43: #{gpt2_forward.4} parent=11 // pred_region
        _
      $region44: #{gpt2_forward.4} parent=11 // pred_fallthru
        _
      // Predicated region
      $region45: #{gpt2_forward.4} parent=11 // pred_check
        %p367 = pneg %p260
      $region46: #{gpt2_forward.4} parent=11 // pred_check_branch
        %369 = sbr.rel (%p367) target = $region48
      $region47: #{gpt2_forward.4} parent=11 // pred_region
        _
      $region48: #{gpt2_forward.4} parent=11 // pred_fallthru
        _
      // Predicated region
      $region49: #{gpt2_forward.4} parent=11 // pred_check
        %p370 = pneg %p281
      $region50: #{gpt2_forward.4} parent=11 // pred_check_branch
        %372 = sbr.rel (%p370) target = $region52
      $region51: #{gpt2_forward.4} parent=11 // pred_region
        _
      $region52: #{gpt2_forward.4} parent=11 // pred_fallthru
        _
      // Predicated region
      $region53: #{gpt2_forward.4} parent=11 // pred_check
        %p373 = pneg %p302
      $region54: #{gpt2_forward.4} parent=11 // pred_check_branch
        %375 = sbr.rel (%p373) target = $region56
      $region55: #{gpt2_forward.4} parent=11 // pred_region
        _
      $region56: #{gpt2_forward.4} parent=11 // pred_fallthru
        _
    $region12: #{gpt2_forward.4} parent=5 // pred_fallthru
      _
    %p376 = scmp.lt.s32.totalorder %s19, 2
    // Predicated region
    $region57: #{gpt2_forward.4} parent=5 // pred_check
      %p377 = pneg %p376
    $region58: #{gpt2_forward.4} parent=5 // pred_check_branch
      %379 = sbr.rel (%p377) target = $region60
    $region59: #{gpt2_forward.4} parent=5 // pred_region
      // Predicated region
      $region61: #{gpt2_forward.4} parent=59 // pred_check
        %p380 = pneg %p39
      $region62: #{gpt2_forward.4} parent=59 // pred_check_branch
        %382 = sbr.rel (%p380) target = $region64
      $region63: #{gpt2_forward.4} parent=59 // pred_region
        %p383 = scmp.lt.s32.totalorder %s19, 1
        %s384 = scalar_select %p383, %s19, 1
        %s385 = smul.addr %s384, 2
        %s386 = smul.addr %s385, 8
        %s387 = scalar_lea.vmem %s0, %s386
      $region64: #{gpt2_forward.4} parent=59 // pred_fallthru
        _
      // Predicated region
      $region65: #{gpt2_forward.4} parent=59 // pred_check
        %p388 = pneg %p65
      $region66: #{gpt2_forward.4} parent=59 // pred_check_branch
        %390 = sbr.rel (%p388) target = $region68
      $region67: #{gpt2_forward.4} parent=59 // pred_region
        %p391 = scmp.lt.s32.totalorder %s19, 1
        %s392 = scalar_select %p391, %s19, 1
        %s393 = smul.addr %s392, 2
        %s394 = smul.addr %s393, 2
        %s395 = scalar_lea.vmem %s1, %s394
      $region68: #{gpt2_forward.4} parent=59 // pred_fallthru
        _
    $region60: #{gpt2_forward.4} parent=5 // pred_fallthru
      _
    %p396 = scmp.le.s32.totalorder 1, %s19
    %p397 = scmp.lt.s32.totalorder %s19, 3
    %p398 = pnand %p396, %p397
    %p399 = pneg %p398
    // Predicated region
    $region69: #{gpt2_forward.4} parent=5 // pred_check
      _
    $region70: #{gpt2_forward.4} parent=5 // pred_check_branch
      %401 = sbr.rel (%p398) target = $region72
    $region71: #{gpt2_forward.4} parent=5 // pred_region
      %s402 = ssub.s32 %s19, 1
      %p403 = scmp.lt.s32.totalorder %s24, 1
      %s404 = scalar_select %p403, %s24, 1
      %s405 = smul.addr %s404, 2
      %s406 = smul.addr %s405, 8
      %s407 = scalar_lea.vmem %s0, %s406
      %p408 = pneg %p45
      %p409 = pneg %p42
      %p410 = scmp.lt.s32.totalorder %s24, 1
      %s411 = scalar_select %p410, %s24, 1
      %s412 = smul.addr %s411, 2
      %s413 = smul.addr %s412, 2
      %s414 = scalar_lea.vmem %s1, %s413
      %p415 = pneg %p71
      %p416 = pneg %p68
      %p417 = pneg %p92
      %p418 = pneg %p89
      %p419 = pneg %p113
      %p420 = pneg %p110
      %p421 = pneg %p134
      %p422 = pneg %p131
      %p423 = pneg %p155
      %p424 = pneg %p152
      %p425 = pneg %p176
      %p426 = pneg %p173
      %p427 = pneg %p197
      %p428 = pneg %p194
      %p429 = pneg %p218
      %p430 = pneg %p215
      %p431 = pneg %p239
      %p432 = pneg %p236
      %p433 = pneg %p260
      %p434 = pneg %p257
      %p435 = pneg %p281
      %p436 = pneg %p278
      %p437 = pneg %p302
      %p438 = pneg %p299
      %p439 = pneg %p328
      %p440 = pneg %p325
      %p441 = scmp.lt.s32.totalorder %s24, 1
      %s442 = scalar_select %p441, %s24, 1
      %s443 = smul.addr %s442, 2
      %s444 = smul.addr %s443, 8
      %s445 = scalar_lea.vmem %s13, %s444
      %p446 = scmp.lt.s32.totalorder %s24, 1
      %s447 = scalar_select %p446, %s24, 1
      %s448 = smul.addr %s447, 2
      %s449 = smul.addr %s448, 8
      %s450 = scalar_lea.vmem %s0, %s449
      %p451 = scmp.lt.s32.totalorder %s24, 1
      %s452 = scalar_select %p451, %s24, 1
      %s453 = smul.addr %s452, 2
      %s454 = smul.addr %s453, 2
      %s455 = scalar_lea.vmem %s1, %s454
      %p456 = scmp.lt.s32.totalorder %s24, 1
      %s457 = scalar_select %p456, %s24, 1
      %s458 = smul.addr %s457, 2
      %s459 = smul.addr %s458, 8
      %s460 = scalar_lea.vmem %s13, %s459
      %v461 = vld [vmem:[%s450] sm:$0xff]
      %v462 = vld [vmem:[%s450 + $0x8] sm:$0xff]
      %v463 = vld [vmem:[%s2] sm:$0xff]
      %v464 = vld [vmem:[%s2 + $0x8] sm:$0xff]
      %v465 = vld [vmem:[%s2 + $0x10] sm:$0xff]
      %v466 = vld [vmem:[%s2 + $0x18] sm:$0xff]
      %v467 = vld [vmem:[%s2 + $0x20] sm:$0xff]
      %v468 = vld [vmem:[%s2 + $0x28] sm:$0xff]
      %v469 = vld [vmem:[%s2 + $0x30] sm:$0xff]
      %v470 = vld [vmem:[%s2 + $0x38] sm:$0xff]
      %v471 = vld [vmem:[%s2 + $0x40] sm:$0xff]
      %v472 = vld [vmem:[%s2 + $0x48] sm:$0xff]
      %v473 = vld [vmem:[%s2 + $0x50] sm:$0xff]
      %v474 = vld [vmem:[%s2 + $0x58] sm:$0xff]
      %v475 = vld [vmem:[%s2 + $0x60] sm:$0xff]
      %v476 = vld [vmem:[%s2 + $0x68] sm:$0xff]
      %v477 = vld [vmem:[%s2 + $0x70] sm:$0xff]
      %v478 = vld [vmem:[%s2 + $0x78] sm:$0xff]
      %v479 = vld [vmem:[%s2 + $0x80] sm:$0xff]
      %v480 = vld [vmem:[%s2 + $0x88] sm:$0xff]
      %v481 = vld [vmem:[%s2 + $0x90] sm:$0xff]
      %v482 = vld [vmem:[%s2 + $0x98] sm:$0xff]
      %v483 = vld [vmem:[%s2 + $0xa0] sm:$0xff]
      %v484 = vld [vmem:[%s2 + $0xa8] sm:$0xff]
      %v485 = vld [vmem:[%s2 + $0xb0] sm:$0xff]
      %v486 = vld [vmem:[%s2 + $0xb8] sm:$0xff]
      %v487 = vld [vmem:[%s2 + $0xc0] sm:$0xff]
      %v488 = vld [vmem:[%s2 + $0xc8] sm:$0xff]
      %v489 = vld [vmem:[%s2 + $0xd0] sm:$0xff]
      %v490 = vld [vmem:[%s2 + $0xd8] sm:$0xff]
      %v491 = vld [vmem:[%s2 + $0xe0] sm:$0xff]
      %v492 = vld [vmem:[%s2 + $0xe8] sm:$0xff]
      %v493 = vld [vmem:[%s2 + $0xf0] sm:$0xff]
      %v494 = vld [vmem:[%s2 + $0xf8] sm:$0xff]
      %v495 = vld [vmem:[%s2 + $0x100] sm:$0xff]
      %v496 = vld [vmem:[%s2 + $0x108] sm:$0xff]
      %v497 = vld [vmem:[%s2 + $0x110] sm:$0xff]
      %v498 = vld [vmem:[%s2 + $0x118] sm:$0xff]
      %v499 = vld [vmem:[%s2 + $0x120] sm:$0xff]
      %v500 = vld [vmem:[%s2 + $0x128] sm:$0xff]
      %v501 = vld [vmem:[%s2 + $0x130] sm:$0xff]
      %v502 = vld [vmem:[%s2 + $0x138] sm:$0xff]
      %v503 = vld [vmem:[%s2 + $0x140] sm:$0xff]
      %v504 = vld [vmem:[%s2 + $0x148] sm:$0xff]
      %v505 = vld [vmem:[%s2 + $0x150] sm:$0xff]
      %v506 = vld [vmem:[%s2 + $0x158] sm:$0xff]
      %v507 = vld [vmem:[%s2 + $0x160] sm:$0xff]
      %v508 = vld [vmem:[%s2 + $0x168] sm:$0xff]
      %v509 = vld [vmem:[%s2 + $0x170] sm:$0xff]
      %v510 = vld [vmem:[%s2 + $0x178] sm:$0xff]
      %511 = vmatprep.subr.mxu0 %v509
      %512 = vmatpush1.msra.mxu0 %v508
      %513 = vmatprep.subr.mxu0 %v506
      %514 = vmatpush1.msra.mxu0 %v505
      %515 = vmatprep.subr.mxu0 %v503
      %516 = vmatpush1.msra.mxu0 %v502
      %517 = vmatprep.subr.mxu0 %v500
      %518 = vmatpush1.msra.mxu0 %v499
      %519 = vmatprep.subr.mxu0 %v497
      %520 = vmatpush1.msra.mxu0 %v496
      %521 = vmatprep.subr.mxu0 %v494
      %522 = vmatpush1.msra.mxu0 %v493
      %523 = vmatprep.subr.mxu0 %v491
      %524 = vmatpush1.msra.mxu0 %v490
      %525 = vmatprep.subr.mxu0 %v488
      %526 = vmatpush1.msra.mxu0 %v487
      %527 = vmatprep.subr.mxu0 %v485
      %528 = vmatpush1.msra.mxu0 %v484
      %529 = vmatprep.subr.mxu0 %v482
      %530 = vmatpush1.msra.mxu0 %v481
      %531 = vmatprep.subr.mxu0 %v479
      %532 = vmatpush1.msra.mxu0 %v478
      %533 = vmatprep.subr.mxu0 %v476
      %534 = vmatpush1.msra.mxu0 %v475
      %535 = vmatprep.subr.mxu0 %v473
      %536 = vmatpush1.msra.mxu0 %v472
      %537 = vmatprep.subr.mxu0 %v470
      %538 = vmatpush1.msra.mxu0 %v469
      %539 = vmatprep.subr.mxu0 %v467
      %540 = vmatpush1.msra.mxu0 %v466
      %541 = vmatprep.subr.mxu0 %v464
      %542 = vmatpush1.msra.mxu0 %v463
      %543 = vmatprep.subr.mxu0 0.0
      %544 = vmatpush2.msra.mxu0 0.0
      %545 = vmatprep.subr.mxu0 0.0
      %546 = vmatpush2.msra.mxu0 0.0
      %547 = vmatprep.subr.mxu0 0.0
      %548 = vmatpush2.msra.mxu0 0.0
      %549 = vmatprep.subr.mxu0 0.0
      %550 = vmatpush2.msra.mxu0 0.0
      %551 = vmatprep.subr.mxu0 0.0
      %552 = vmatpush2.msra.mxu0 0.0
      %553 = vmatprep.subr.mxu0 0.0
      %554 = vmatpush2.msra.mxu0 0.0
      %555 = vmatprep.subr.mxu0 0.0
      %556 = vmatpush2.msra.mxu0 0.0
      %557 = vmatprep.subr.mxu0 0.0
      %558 = vmatpush2.msra.mxu0 0.0
      %559 = vmatprep.subr.mxu0 0.0
      %560 = vmatpush2.msra.mxu0 0.0
      %561 = vmatprep.subr.mxu0 0.0
      %562 = vmatpush2.msra.mxu0 0.0
      %563 = vmatprep.subr.mxu0 0.0
      %564 = vmatpush2.msra.mxu0 0.0
      %565 = vmatprep.subr.mxu0 0.0
      %566 = vmatpush2.msra.mxu0 0.0
      %567 = vmatprep.subr.mxu0 0.0
      %568 = vmatpush2.msra.mxu0 0.0
      %569 = vmatprep.subr.mxu0 0.0
      %570 = vmatpush2.msra.mxu0 0.0
      %571 = vmatprep.subr.mxu0 0.0
      %572 = vmatpush2.msra.mxu0 0.0
      %573 = vmatprep.subr.mxu0 0.0
      %574 = vmatpush2.msra.mxu0 0.0
      %575 = vmatprep.mubr.f32.mxu0 0.0
      %576 = vmatmul.mubr.f32.gmra.mxu0 %v461
      %v577 = vpop.f32.mrf.mxu0
      %v578 = vadd.f32 0.0, %v577
      %v579 = vpop.f32.mrf.mxu0
      %v580 = vadd.f32 0.0, %v579
      %581 = vmatprep.mubr.f32.mxu0 0.0
      %582 = vmatmul.mubr.f32.gmra.mxu0 %v462
      %v583 = vpop.f32.mrf.mxu0
      %v584 = vadd.f32 0.0, %v583
      %v585 = vpop.f32.mrf.mxu0
      %v586 = vadd.f32 0.0, %v585
      %587 = vdwg.mxu0
      %588 = vmatprep.subr.mxu0 0.0
      %589 = vmatpush1.msra.mxu0 %v510
      %590 = vmatprep.subr.mxu0 0.0
      %591 = vmatpush1.msra.mxu0 %v507
      %592 = vmatprep.subr.mxu0 0.0
      %593 = vmatpush1.msra.mxu0 %v504
      %594 = vmatprep.subr.mxu0 0.0
      %595 = vmatpush1.msra.mxu0 %v501
      %596 = vmatprep.subr.mxu0 0.0
      %597 = vmatpush1.msra.mxu0 %v498
      %598 = vmatprep.subr.mxu0 0.0
      %599 = vmatpush1.msra.mxu0 %v495
      %600 = vmatprep.subr.mxu0 0.0
      %601 = vmatpush1.msra.mxu0 %v492
      %602 = vmatprep.subr.mxu0 0.0
      %603 = vmatpush1.msra.mxu0 %v489
      %604 = vmatprep.subr.mxu0 0.0
      %605 = vmatpush1.msra.mxu0 %v486
      %606 = vmatprep.subr.mxu0 0.0
      %607 = vmatpush1.msra.mxu0 %v483
      %608 = vmatprep.subr.mxu0 0.0
      %609 = vmatpush1.msra.mxu0 %v480
      %610 = vmatprep.subr.mxu0 0.0
      %611 = vmatpush1.msra.mxu0 %v477
      %612 = vmatprep.subr.mxu0 0.0
      %613 = vmatpush1.msra.mxu0 %v474
      %614 = vmatprep.subr.mxu0 0.0
      %615 = vmatpush1.msra.mxu0 %v471
      %616 = vmatprep.subr.mxu0 0.0
      %617 = vmatpush1.msra.mxu0 %v468
      %618 = vmatprep.subr.mxu0 0.0
      %619 = vmatpush1.msra.mxu0 %v465
      %620 = vmatprep.subr.mxu0 0.0
      %621 = vmatpush2.msra.mxu0 0.0
      %622 = vmatprep.subr.mxu0 0.0
      %623 = vmatpush2.msra.mxu0 0.0
      %624 = vmatprep.subr.mxu0 0.0
      %625 = vmatpush2.msra.mxu0 0.0
      %626 = vmatprep.subr.mxu0 0.0
      %627 = vmatpush2.msra.mxu0 0.0
      %628 = vmatprep.subr.mxu0 0.0
      %629 = vmatpush2.msra.mxu0 0.0
      %630 = vmatprep.subr.mxu0 0.0
      %631 = vmatpush2.msra.mxu0 0.0
      %632 = vmatprep.subr.mxu0 0.0
      %633 = vmatpush2.msra.mxu0 0.0
      %634 = vmatprep.subr.mxu0 0.0
      %635 = vmatpush2.msra.mxu0 0.0
      %636 = vmatprep.subr.mxu0 0.0
      %637 = vmatpush2.msra.mxu0 0.0
      %638 = vmatprep.subr.mxu0 0.0
      %639 = vmatpush2.msra.mxu0 0.0
      %640 = vmatprep.subr.mxu0 0.0
      %641 = vmatpush2.msra.mxu0 0.0
      %642 = vmatprep.subr.mxu0 0.0
      %643 = vmatpush2.msra.mxu0 0.0
      %644 = vmatprep.subr.mxu0 0.0
      %645 = vmatpush2.msra.mxu0 0.0
      %646 = vmatprep.subr.mxu0 0.0
      %647 = vmatpush2.msra.mxu0 0.0
      %648 = vmatprep.subr.mxu0 0.0
      %649 = vmatpush2.msra.mxu0 0.0
      %650 = vmatprep.subr.mxu0 0.0
      %651 = vmatpush2.msra.mxu0 0.0
      %652 = vmatprep.mubr.f32.mxu0 0.0
      %653 = vmatmul.mubr.f32.gmra.mxu0 %v461
      %v654 = vpop.f32.mrf.mxu0
      %v655 = vadd.f32 0.0, %v654
      %v656 = vpop.f32.mrf.mxu0
      %657 = vmatprep.mubr.f32.mxu0 0.0
      %658 = vmatmul.mubr.f32.gmra.mxu0 %v462
      %v659 = vpop.f32.mrf.mxu0
      %v660 = vadd.f32 0.0, %v659
      %v661 = vpop.f32.mrf.mxu0
      %662 = vdwg.mxu0
      %v663 = vld [vmem:[%s455] sm:$0x3]
      %v664 = vld [vmem:[%s455 + $0x2] sm:$0x3]
      %v665 = vunpack.c.0.s8 %v663
      %v666 = vunpack.c.0.s8 %v664
      %v667 = vcvt.s32.f32 %v665
      %v668 = vcvt.s32.f32 %v666
      %vm669 = vcmp.eq.f32.partialorder %v667, 0.0
      %vm670 = vcmp.eq.f32.partialorder %v668, 0.0
      %vm671 = vcmask 261120
      %v673 = vsel %vm671, %v578, 0
      %v676 = vsel %vm671, %v584, 0
      %v679 = vsel %vm671, %v580, 0
      %v682 = vsel %vm671, %v586, 0
      %684 = vmatprep.subr.mxu0 0.0
      %685 = vmatpush1.xpose.msra.mxu0 0.0
      %686 = vmatprep.subr.mxu0 0.0
      %687 = vmatpush1.xpose.msra.mxu0 0.0
      %688 = vmatprep.subr.mxu0 0.0
      %689 = vmatpush1.xpose.msra.mxu0 0.0
      %690 = vmatprep.subr.mxu0 0.0
      %691 = vmatpush1.xpose.msra.mxu0 0.0
      %692 = vmatprep.subr.mxu0 0.0
      %693 = vmatpush1.xpose.msra.mxu0 0.0
      %694 = vmatprep.subr.mxu0 0.0
      %695 = vmatpush1.xpose.msra.mxu0 0.0
      %696 = vmatprep.subr.mxu0 0.0
      %697 = vmatpush1.xpose.msra.mxu0 0.0
      %698 = vmatprep.subr.mxu0 0.0
      %699 = vmatpush1.xpose.msra.mxu0 0.0
      %700 = vmatprep.subr.mxu0 0.0
      %701 = vmatpush1.xpose.msra.mxu0 0.0
      %702 = vmatprep.subr.mxu0 0.0
      %703 = vmatpush1.xpose.msra.mxu0 0.0
      %704 = vmatprep.subr.mxu0 0.0
      %705 = vmatpush1.xpose.msra.mxu0 0.0
      %706 = vmatprep.subr.mxu0 0.0
      %707 = vmatpush1.xpose.msra.mxu0 0.0
      %708 = vmatprep.subr.mxu0 0.0
      %709 = vmatpush1.xpose.msra.mxu0 0.0
      %710 = vmatprep.subr.mxu0 0.0
      %711 = vmatpush1.xpose.msra.mxu0 0.0
      %712 = vmatprep.subr.mxu0 0.0
      %713 = vmatpush1.xpose.msra.mxu0 %v682
      %714 = vmatprep.subr.mxu0 0.0
      %715 = vmatpush1.xpose.msra.mxu0 %v679
      %716 = vmatprep.subr.mxu0 0.0
      %717 = vmatpush2.xpose.msra.mxu0 0.0
      %718 = vmatprep.subr.mxu0 0.0
      %719 = vmatpush2.xpose.msra.mxu0 0.0
      %720 = vmatprep.subr.mxu0 0.0
      %721 = vmatpush2.xpose.msra.mxu0 0.0
      %722 = vmatprep.subr.mxu0 0.0
      %723 = vmatpush2.xpose.msra.mxu0 0.0
      %724 = vmatprep.subr.mxu0 0.0
      %725 = vmatpush2.xpose.msra.mxu0 0.0
      %726 = vmatprep.subr.mxu0 0.0
      %727 = vmatpush2.xpose.msra.mxu0 0.0
      %728 = vmatprep.subr.mxu0 0.0
      %729 = vmatpush2.xpose.msra.mxu0 0.0
      %730 = vmatprep.subr.mxu0 0.0
      %731 = vmatpush2.xpose.msra.mxu0 0.0
      %732 = vmatprep.subr.mxu0 0.0
      %733 = vmatpush2.xpose.msra.mxu0 0.0
      %734 = vmatprep.subr.mxu0 0.0
      %735 = vmatpush2.xpose.msra.mxu0 0.0
      %736 = vmatprep.subr.mxu0 0.0
      %737 = vmatpush2.xpose.msra.mxu0 0.0
      %738 = vmatprep.subr.mxu0 0.0
      %739 = vmatpush2.xpose.msra.mxu0 0.0
      %740 = vmatprep.subr.mxu0 0.0
      %741 = vmatpush2.xpose.msra.mxu0 0.0
      %742 = vmatprep.subr.mxu0 0.0
      %743 = vmatpush2.xpose.msra.mxu0 0.0
      %744 = vmatprep.subr.mxu0 0.0
      %745 = vmatpush2.xpose.msra.mxu0 0.0
      %746 = vmatprep.subr.mxu0 0.0
      %747 = vmatpush2.xpose.msra.mxu0 0.0
      %748 = vmatprep.mubr.f32.mxu0 0.0
      %749 = vmatmul.mubr.f32.gmra.mxu0 %v673
      %v750 = vpop.f32.mrf.mxu0
      %v751 = vadd.f32 0.0, %v750
      %v752 = vpop.f32.mrf.mxu0
      %753 = vmatprep.mubr.f32.mxu0 0.0
      %754 = vmatmul.mubr.f32.gmra.mxu0 %v676
      %v755 = vpop.f32.mrf.mxu0
      %v756 = vadd.f32 0.0, %v755
      %v757 = vpop.f32.mrf.mxu0
      %758 = vdwg.mxu0
      %v759 = vsel %vm669, -1e+20, %v751
      %v760 = vsel %vm670, -1e+20, %v756
      %vm761 = vcmask 130048
      %v762 = vsel %vm761, %v759, -inf
      %763 = vmax.xlane.f32.xlu0 %v762
      %v764 = vpop.xlane.xlu0 %763
      %v765 = vsel %vm761, %v760, -inf
      %766 = vmax.xlane.f32.xlu0 %v765
      %v767 = vpop.xlane.xlu0 %766
      %v768 = vsub.f32 %v759, %v764
      %v769 = vsub.f32 %v760, %v767
      %v770 = vmul.f32 %v768, 1.442695
      %v771 = vpow.pop %v770
      %v772 = vmul.f32 %v769, 1.442695
      %v773 = vpow.pop %v772
      %v774 = vsel %vm761, %v771, 0.0
      %775 = vadd.xlane.f32.xlu0 %v774
      %v776 = vpop.xlane.xlu0 %775
      %v777 = vsel %vm761, %v773, 0.0
      %778 = vadd.xlane.f32.xlu0 %v777
      %v779 = vpop.xlane.xlu0 %778
      %v780 = vrcp.pop %v776
      %v781 = vrcp.pop %v779
      %v782 = vmul.f32 %v771, %v780
      %v783 = vmul.f32 %v773, %v781
      %v785 = vsel %vm761, %v782, 0
      %v788 = vsel %vm761, %v783, 0
      %790 = vmatprep.subr.mxu0 0.0
      %791 = vmatpush1.msra.mxu0 0.0
      %792 = vmatprep.subr.mxu0 0.0
      %793 = vmatpush1.msra.mxu0 0.0
      %794 = vmatprep.subr.mxu0 0.0
      %795 = vmatpush1.msra.mxu0 0.0
      %796 = vmatprep.subr.mxu0 0.0
      %797 = vmatpush1.msra.mxu0 0.0
      %798 = vmatprep.subr.mxu0 0.0
      %799 = vmatpush1.msra.mxu0 0.0
      %800 = vmatprep.subr.mxu0 0.0
      %801 = vmatpush1.msra.mxu0 0.0
      %802 = vmatprep.subr.mxu0 0.0
      %803 = vmatpush1.msra.mxu0 0.0
      %804 = vmatprep.subr.mxu0 0.0
      %805 = vmatpush1.msra.mxu0 0.0
      %806 = vmatprep.subr.mxu0 0.0
      %807 = vmatpush1.msra.mxu0 0.0
      %808 = vmatprep.subr.mxu0 0.0
      %809 = vmatpush1.msra.mxu0 0.0
      %810 = vmatprep.subr.mxu0 0.0
      %811 = vmatpush1.msra.mxu0 0.0
      %812 = vmatprep.subr.mxu0 0.0
      %813 = vmatpush1.msra.mxu0 0.0
      %814 = vmatprep.subr.mxu0 0.0
      %815 = vmatpush1.msra.mxu0 0.0
      %816 = vmatprep.subr.mxu0 0.0
      %817 = vmatpush1.msra.mxu0 0.0
      %818 = vmatprep.subr.mxu0 0.0
      %819 = vmatpush1.msra.mxu0 %v660
      %820 = vmatprep.subr.mxu0 0.0
      %821 = vmatpush1.msra.mxu0 %v655
      %822 = vmatprep.subr.mxu0 0.0
      %823 = vmatpush2.msra.mxu0 0.0
      %824 = vmatprep.subr.mxu0 0.0
      %825 = vmatpush2.msra.mxu0 0.0
      %826 = vmatprep.subr.mxu0 0.0
      %827 = vmatpush2.msra.mxu0 0.0
      %828 = vmatprep.subr.mxu0 0.0
      %829 = vmatpush2.msra.mxu0 0.0
      %830 = vmatprep.subr.mxu0 0.0
      %831 = vmatpush2.msra.mxu0 0.0
      %832 = vmatprep.subr.mxu0 0.0
      %833 = vmatpush2.msra.mxu0 0.0
      %834 = vmatprep.subr.mxu0 0.0
      %835 = vmatpush2.msra.mxu0 0.0
      %836 = vmatprep.subr.mxu0 0.0
      %837 = vmatpush2.msra.mxu0 0.0
      %838 = vmatprep.subr.mxu0 0.0
      %839 = vmatpush2.msra.mxu0 0.0
      %840 = vmatprep.subr.mxu0 0.0
      %841 = vmatpush2.msra.mxu0 0.0
      %842 = vmatprep.subr.mxu0 0.0
      %843 = vmatpush2.msra.mxu0 0.0
      %844 = vmatprep.subr.mxu0 0.0
      %845 = vmatpush2.msra.mxu0 0.0
      %846 = vmatprep.subr.mxu0 0.0
      %847 = vmatpush2.msra.mxu0 0.0
      %848 = vmatprep.subr.mxu0 0.0
      %849 = vmatpush2.msra.mxu0 0.0
      %850 = vmatprep.subr.mxu0 0.0
      %851 = vmatpush2.msra.mxu0 0.0
      %852 = vmatprep.subr.mxu0 0.0
      %853 = vmatpush2.msra.mxu0 0.0
      %854 = vmatprep.mubr.f32.mxu0 0.0
      %855 = vmatmul.mubr.f32.gmra.mxu0 %v785
      %v856 = vpop.f32.mrf.mxu0
      %v857 = vadd.f32 0.0, %v856
      %v858 = vpop.f32.mrf.mxu0
      %859 = vmatprep.mubr.f32.mxu0 0.0
      %860 = vmatmul.mubr.f32.gmra.mxu0 %v788
      %v861 = vpop.f32.mrf.mxu0
      %v862 = vadd.f32 0.0, %v861
      %v863 = vpop.f32.mrf.mxu0
      %864 = vdwg.mxu0
      %865 = vrot.lane.b32.xlu0 %v578, 96
      %v866 = vpop.permute.xlu0 %865
      %867 = vrot.lane.b32.xlu0 %v584, 96
      %v868 = vpop.permute.xlu0 %867
      %869 = vrot.lane.b32.xlu0 %v580, 96
      %v870 = vpop.permute.xlu0 %869
      %871 = vrot.lane.b32.xlu0 %v586, 96
      %v872 = vpop.permute.xlu0 %871
      %v873 = vsel %vm671, %v866, 0
      %v875 = vsel %vm671, %v868, 0
      %v877 = vsel %vm671, %v870, 0
      %v879 = vsel %vm671, %v872, 0
      %881 = vmatprep.subr.mxu0 0.0
      %882 = vmatpush1.xpose.msra.mxu0 0.0
      %883 = vmatprep.subr.mxu0 0.0
      %884 = vmatpush1.xpose.msra.mxu0 0.0
      %885 = vmatprep.subr.mxu0 0.0
      %886 = vmatpush1.xpose.msra.mxu0 0.0
      %887 = vmatprep.subr.mxu0 0.0
      %888 = vmatpush1.xpose.msra.mxu0 0.0
      %889 = vmatprep.subr.mxu0 0.0
      %890 = vmatpush1.xpose.msra.mxu0 0.0
      %891 = vmatprep.subr.mxu0 0.0
      %892 = vmatpush1.xpose.msra.mxu0 0.0
      %893 = vmatprep.subr.mxu0 0.0
      %894 = vmatpush1.xpose.msra.mxu0 0.0
      %895 = vmatprep.subr.mxu0 0.0
      %896 = vmatpush1.xpose.msra.mxu0 0.0
      %897 = vmatprep.subr.mxu0 0.0
      %898 = vmatpush1.xpose.msra.mxu0 0.0
      %899 = vmatprep.subr.mxu0 0.0
      %900 = vmatpush1.xpose.msra.mxu0 0.0
      %901 = vmatprep.subr.mxu0 0.0
      %902 = vmatpush1.xpose.msra.mxu0 0.0
      %903 = vmatprep.subr.mxu0 0.0
      %904 = vmatpush1.xpose.msra.mxu0 0.0
      %905 = vmatprep.subr.mxu0 0.0
      %906 = vmatpush1.xpose.msra.mxu0 0.0
      %907 = vmatprep.subr.mxu0 0.0
      %908 = vmatpush1.xpose.msra.mxu0 0.0
      %909 = vmatprep.subr.mxu0 0.0
      %910 = vmatpush1.xpose.msra.mxu0 %v879
      %911 = vmatprep.subr.mxu0 0.0
      %912 = vmatpush1.xpose.msra.mxu0 %v877
      %913 = vmatprep.subr.mxu0 0.0
      %914 = vmatpush2.xpose.msra.mxu0 0.0
      %915 = vmatprep.subr.mxu0 0.0
      %916 = vmatpush2.xpose.msra.mxu0 0.0
      %917 = vmatprep.subr.mxu0 0.0
      %918 = vmatpush2.xpose.msra.mxu0 0.0
      %919 = vmatprep.subr.mxu0 0.0
      %920 = vmatpush2.xpose.msra.mxu0 0.0
      %921 = vmatprep.subr.mxu0 0.0
      %922 = vmatpush2.xpose.msra.mxu0 0.0
      %923 = vmatprep.subr.mxu0 0.0
      %924 = vmatpush2.xpose.msra.mxu0 0.0
      %925 = vmatprep.subr.mxu0 0.0
      %926 = vmatpush2.xpose.msra.mxu0 0.0
      %927 = vmatprep.subr.mxu0 0.0
      %928 = vmatpush2.xpose.msra.mxu0 0.0
      %929 = vmatprep.subr.mxu0 0.0
      %930 = vmatpush2.xpose.msra.mxu0 0.0
      %931 = vmatprep.subr.mxu0 0.0
      %932 = vmatpush2.xpose.msra.mxu0 0.0
      %933 = vmatprep.subr.mxu0 0.0
      %934 = vmatpush2.xpose.msra.mxu0 0.0
      %935 = vmatprep.subr.mxu0 0.0
      %936 = vmatpush2.xpose.msra.mxu0 0.0
      %937 = vmatprep.subr.mxu0 0.0
      %938 = vmatpush2.xpose.msra.mxu0 0.0
      %939 = vmatprep.subr.mxu0 0.0
      %940 = vmatpush2.xpose.msra.mxu0 0.0
      %941 = vmatprep.subr.mxu0 0.0
      %942 = vmatpush2.xpose.msra.mxu0 0.0
      %943 = vmatprep.subr.mxu0 0.0
      %944 = vmatpush2.xpose.msra.mxu0 0.0
      %945 = vmatprep.mubr.f32.mxu0 0.0
      %946 = vmatmul.mubr.f32.gmra.mxu0 %v873
      %v947 = vpop.f32.mrf.mxu0
      %v948 = vadd.f32 0.0, %v947
      %v949 = vpop.f32.mrf.mxu0
      %950 = vmatprep.mubr.f32.mxu0 0.0
      %951 = vmatmul.mubr.f32.gmra.mxu0 %v875
      %v952 = vpop.f32.mrf.mxu0
      %v953 = vadd.f32 0.0, %v952
      %v954 = vpop.f32.mrf.mxu0
      %955 = vdwg.mxu0
      %v956 = vsel %vm669, -1e+20, %v948
      %v957 = vsel %vm670, -1e+20, %v953
      %v958 = vsel %vm761, %v956, -inf
      %959 = vmax.xlane.f32.xlu0 %v958
      %v960 = vpop.xlane.xlu0 %959
      %v961 = vsel %vm761, %v957, -inf
      %962 = vmax.xlane.f32.xlu0 %v961
      %v963 = vpop.xlane.xlu0 %962
      %v964 = vsub.f32 %v956, %v960
      %v965 = vsub.f32 %v957, %v963
      %v966 = vmul.f32 %v964, 1.442695
      %v967 = vpow.pop %v966
      %v968 = vmul.f32 %v965, 1.442695
      %v969 = vpow.pop %v968
      %v970 = vsel %vm761, %v967, 0.0
      %971 = vadd.xlane.f32.xlu0 %v970
      %v972 = vpop.xlane.xlu0 %971
      %v973 = vsel %vm761, %v969, 0.0
      %974 = vadd.xlane.f32.xlu0 %v973
      %v975 = vpop.xlane.xlu0 %974
      %v976 = vrcp.pop %v972
      %v977 = vrcp.pop %v975
      %v978 = vmul.f32 %v967, %v976
      %v979 = vmul.f32 %v969, %v977
      %982 = vrot.lane.b32.xlu0 %v655, 96
      %v983 = vpop.permute.xlu0 %982
      %984 = vrot.lane.b32.xlu0 %v660, 96
      %v985 = vpop.permute.xlu0 %984
      %v989 = vsel %vm761, %v978, 0
      %v992 = vsel %vm761, %v979, 0
      %994 = vmatprep.subr.mxu0 0.0
      %995 = vmatpush1.msra.mxu0 0.0
      %996 = vmatprep.subr.mxu0 0.0
      %997 = vmatpush1.msra.mxu0 0.0
      %998 = vmatprep.subr.mxu0 0.0
      %999 = vmatpush1.msra.mxu0 0.0
      %1000 = vmatprep.subr.mxu0 0.0
      %1001 = vmatpush1.msra.mxu0 0.0
      %1002 = vmatprep.subr.mxu0 0.0
      %1003 = vmatpush1.msra.mxu0 0.0
      %1004 = vmatprep.subr.mxu0 0.0
      %1005 = vmatpush1.msra.mxu0 0.0
      %1006 = vmatprep.subr.mxu0 0.0
      %1007 = vmatpush1.msra.mxu0 0.0
      %1008 = vmatprep.subr.mxu0 0.0
      %1009 = vmatpush1.msra.mxu0 0.0
      %1010 = vmatprep.subr.mxu0 0.0
      %1011 = vmatpush1.msra.mxu0 0.0
      %1012 = vmatprep.subr.mxu0 0.0
      %1013 = vmatpush1.msra.mxu0 0.0
      %1014 = vmatprep.subr.mxu0 0.0
      %1015 = vmatpush1.msra.mxu0 0.0
      %1016 = vmatprep.subr.mxu0 0.0
      %1017 = vmatpush1.msra.mxu0 0.0
      %1018 = vmatprep.subr.mxu0 0.0
      %1019 = vmatpush1.msra.mxu0 0.0
      %1020 = vmatprep.subr.mxu0 0.0
      %1021 = vmatpush1.msra.mxu0 0.0
      %1022 = vmatprep.subr.mxu0 0.0
      %1023 = vmatpush1.msra.mxu0 %v985
      %1024 = vmatprep.subr.mxu0 0.0
      %1025 = vmatpush1.msra.mxu0 %v983
      %1026 = vmatprep.subr.mxu0 0.0
      %1027 = vmatpush2.msra.mxu0 0.0
      %1028 = vmatprep.subr.mxu0 0.0
      %1029 = vmatpush2.msra.mxu0 0.0
      %1030 = vmatprep.subr.mxu0 0.0
      %1031 = vmatpush2.msra.mxu0 0.0
      %1032 = vmatprep.subr.mxu0 0.0
      %1033 = vmatpush2.msra.mxu0 0.0
      %1034 = vmatprep.subr.mxu0 0.0
      %1035 = vmatpush2.msra.mxu0 0.0
      %1036 = vmatprep.subr.mxu0 0.0
      %1037 = vmatpush2.msra.mxu0 0.0
      %1038 = vmatprep.subr.mxu0 0.0
      %1039 = vmatpush2.msra.mxu0 0.0
      %1040 = vmatprep.subr.mxu0 0.0
      %1041 = vmatpush2.msra.mxu0 0.0
      %1042 = vmatprep.subr.mxu0 0.0
      %1043 = vmatpush2.msra.mxu0 0.0
      %1044 = vmatprep.subr.mxu0 0.0
      %1045 = vmatpush2.msra.mxu0 0.0
      %1046 = vmatprep.subr.mxu0 0.0
      %1047 = vmatpush2.msra.mxu0 0.0
      %1048 = vmatprep.subr.mxu0 0.0
      %1049 = vmatpush2.msra.mxu0 0.0
      %1050 = vmatprep.subr.mxu0 0.0
      %1051 = vmatpush2.msra.mxu0 0.0
      %1052 = vmatprep.subr.mxu0 0.0
      %1053 = vmatpush2.msra.mxu0 0.0
      %1054 = vmatprep.subr.mxu0 0.0
      %1055 = vmatpush2.msra.mxu0 0.0
      %1056 = vmatprep.subr.mxu0 0.0
      %1057 = vmatpush2.msra.mxu0 0.0
      %1058 = vmatprep.mubr.f32.mxu0 0.0
      %1059 = vmatmul.mubr.f32.gmra.mxu0 %v989
      %v1060 = vpop.f32.mrf.mxu0
      %v1061 = vadd.f32 0.0, %v1060
      %v1062 = vpop.f32.mrf.mxu0
      %1063 = vmatprep.mubr.f32.mxu0 0.0
      %1064 = vmatmul.mubr.f32.gmra.mxu0 %v992
      %v1065 = vpop.f32.mrf.mxu0
      %v1066 = vadd.f32 0.0, %v1065
      %v1067 = vpop.f32.mrf.mxu0
      %1068 = vdwg.mxu0
      %1069 = vrot.lane.b32.xlu0 %v578, 64
      %v1070 = vpop.permute.xlu0 %1069
      %1071 = vrot.lane.b32.xlu0 %v584, 64
      %v1072 = vpop.permute.xlu0 %1071
      %1073 = vrot.lane.b32.xlu0 %v580, 64
      %v1074 = vpop.permute.xlu0 %1073
      %1075 = vrot.lane.b32.xlu0 %v586, 64
      %v1076 = vpop.permute.xlu0 %1075
      %v1077 = vsel %vm671, %v1070, 0
      %v1079 = vsel %vm671, %v1072, 0
      %v1081 = vsel %vm671, %v1074, 0
      %v1083 = vsel %vm671, %v1076, 0
      %1085 = vmatprep.subr.mxu0 0.0
      %1086 = vmatpush1.xpose.msra.mxu0 0.0
      %1087 = vmatprep.subr.mxu0 0.0
      %1088 = vmatpush1.xpose.msra.mxu0 0.0
      %1089 = vmatprep.subr.mxu0 0.0
      %1090 = vmatpush1.xpose.msra.mxu0 0.0
      %1091 = vmatprep.subr.mxu0 0.0
      %1092 = vmatpush1.xpose.msra.mxu0 0.0
      %1093 = vmatprep.subr.mxu0 0.0
      %1094 = vmatpush1.xpose.msra.mxu0 0.0
      %1095 = vmatprep.subr.mxu0 0.0
      %1096 = vmatpush1.xpose.msra.mxu0 0.0
      %1097 = vmatprep.subr.mxu0 0.0
      %1098 = vmatpush1.xpose.msra.mxu0 0.0
      %1099 = vmatprep.subr.mxu0 0.0
      %1100 = vmatpush1.xpose.msra.mxu0 0.0
      %1101 = vmatprep.subr.mxu0 0.0
      %1102 = vmatpush1.xpose.msra.mxu0 0.0
      %1103 = vmatprep.subr.mxu0 0.0
      %1104 = vmatpush1.xpose.msra.mxu0 0.0
      %1105 = vmatprep.subr.mxu0 0.0
      %1106 = vmatpush1.xpose.msra.mxu0 0.0
      %1107 = vmatprep.subr.mxu0 0.0
      %1108 = vmatpush1.xpose.msra.mxu0 0.0
      %1109 = vmatprep.subr.mxu0 0.0
      %1110 = vmatpush1.xpose.msra.mxu0 0.0
      %1111 = vmatprep.subr.mxu0 0.0
      %1112 = vmatpush1.xpose.msra.mxu0 0.0
      %1113 = vmatprep.subr.mxu0 0.0
      %1114 = vmatpush1.xpose.msra.mxu0 %v1083
      %1115 = vmatprep.subr.mxu0 0.0
      %1116 = vmatpush1.xpose.msra.mxu0 %v1081
      %1117 = vmatprep.subr.mxu0 0.0
      %1118 = vmatpush2.xpose.msra.mxu0 0.0
      %1119 = vmatprep.subr.mxu0 0.0
      %1120 = vmatpush2.xpose.msra.mxu0 0.0
      %1121 = vmatprep.subr.mxu0 0.0
      %1122 = vmatpush2.xpose.msra.mxu0 0.0
      %1123 = vmatprep.subr.mxu0 0.0
      %1124 = vmatpush2.xpose.msra.mxu0 0.0
      %1125 = vmatprep.subr.mxu0 0.0
      %1126 = vmatpush2.xpose.msra.mxu0 0.0
      %1127 = vmatprep.subr.mxu0 0.0
      %1128 = vmatpush2.xpose.msra.mxu0 0.0
      %1129 = vmatprep.subr.mxu0 0.0
      %1130 = vmatpush2.xpose.msra.mxu0 0.0
      %1131 = vmatprep.subr.mxu0 0.0
      %1132 = vmatpush2.xpose.msra.mxu0 0.0
      %1133 = vmatprep.subr.mxu0 0.0
      %1134 = vmatpush2.xpose.msra.mxu0 0.0
      %1135 = vmatprep.subr.mxu0 0.0
      %1136 = vmatpush2.xpose.msra.mxu0 0.0
      %1137 = vmatprep.subr.mxu0 0.0
      %1138 = vmatpush2.xpose.msra.mxu0 0.0
      %1139 = vmatprep.subr.mxu0 0.0
      %1140 = vmatpush2.xpose.msra.mxu0 0.0
      %1141 = vmatprep.subr.mxu0 0.0
      %1142 = vmatpush2.xpose.msra.mxu0 0.0
      %1143 = vmatprep.subr.mxu0 0.0
      %1144 = vmatpush2.xpose.msra.mxu0 0.0
      %1145 = vmatprep.subr.mxu0 0.0
      %1146 = vmatpush2.xpose.msra.mxu0 0.0
      %1147 = vmatprep.subr.mxu0 0.0
      %1148 = vmatpush2.xpose.msra.mxu0 0.0
      %1149 = vmatprep.mubr.f32.mxu0 0.0
      %1150 = vmatmul.mubr.f32.gmra.mxu0 %v1077
      %v1151 = vpop.f32.mrf.mxu0
      %v1152 = vadd.f32 0.0, %v1151
      %v1153 = vpop.f32.mrf.mxu0
      %1154 = vmatprep.mubr.f32.mxu0 0.0
      %1155 = vmatmul.mubr.f32.gmra.mxu0 %v1079
      %v1156 = vpop.f32.mrf.mxu0
      %v1157 = vadd.f32 0.0, %v1156
      %v1158 = vpop.f32.mrf.mxu0
      %1159 = vdwg.mxu0
      %v1160 = vsel %vm669, -1e+20, %v1152
      %v1161 = vsel %vm670, -1e+20, %v1157
      %v1162 = vsel %vm761, %v1160, -inf
      %1163 = vmax.xlane.f32.xlu0 %v1162
      %v1164 = vpop.xlane.xlu0 %1163
      %v1165 = vsel %vm761, %v1161, -inf
      %1166 = vmax.xlane.f32.xlu0 %v1165
      %v1167 = vpop.xlane.xlu0 %1166
      %v1168 = vsub.f32 %v1160, %v1164
      %v1169 = vsub.f32 %v1161, %v1167
      %v1170 = vmul.f32 %v1168, 1.442695
      %v1171 = vpow.pop %v1170
      %v1172 = vmul.f32 %v1169, 1.442695
      %v1173 = vpow.pop %v1172
      %v1174 = vsel %vm761, %v1171, 0.0
      %1175 = vadd.xlane.f32.xlu0 %v1174
      %v1176 = vpop.xlane.xlu0 %1175
      %v1177 = vsel %vm761, %v1173, 0.0
      %1178 = vadd.xlane.f32.xlu0 %v1177
      %v1179 = vpop.xlane.xlu0 %1178
      %v1180 = vrcp.pop %v1176
      %v1181 = vrcp.pop %v1179
      %v1182 = vmul.f32 %v1171, %v1180
      %v1183 = vmul.f32 %v1173, %v1181
      %1184 = vrot.lane.b32.xlu0 %v655, 64
      %v1185 = vpop.permute.xlu0 %1184
      %1186 = vrot.lane.b32.xlu0 %v660, 64
      %v1187 = vpop.permute.xlu0 %1186
      %v1191 = vsel %vm761, %v1182, 0
      %v1194 = vsel %vm761, %v1183, 0
      %1196 = vmatprep.subr.mxu0 0.0
      %1197 = vmatpush1.msra.mxu0 0.0
      %1198 = vmatprep.subr.mxu0 0.0
      %1199 = vmatpush1.msra.mxu0 0.0
      %1200 = vmatprep.subr.mxu0 0.0
      %1201 = vmatpush1.msra.mxu0 0.0
      %1202 = vmatprep.subr.mxu0 0.0
      %1203 = vmatpush1.msra.mxu0 0.0
      %1204 = vmatprep.subr.mxu0 0.0
      %1205 = vmatpush1.msra.mxu0 0.0
      %1206 = vmatprep.subr.mxu0 0.0
      %1207 = vmatpush1.msra.mxu0 0.0
      %1208 = vmatprep.subr.mxu0 0.0
      %1209 = vmatpush1.msra.mxu0 0.0
      %1210 = vmatprep.subr.mxu0 0.0
      %1211 = vmatpush1.msra.mxu0 0.0
      %1212 = vmatprep.subr.mxu0 0.0
      %1213 = vmatpush1.msra.mxu0 0.0
      %1214 = vmatprep.subr.mxu0 0.0
      %1215 = vmatpush1.msra.mxu0 0.0
      %1216 = vmatprep.subr.mxu0 0.0
      %1217 = vmatpush1.msra.mxu0 0.0
      %1218 = vmatprep.subr.mxu0 0.0
      %1219 = vmatpush1.msra.mxu0 0.0
      %1220 = vmatprep.subr.mxu0 0.0
      %1221 = vmatpush1.msra.mxu0 0.0
      %1222 = vmatprep.subr.mxu0 0.0
      %1223 = vmatpush1.msra.mxu0 0.0
      %1224 = vmatprep.subr.mxu0 0.0
      %1225 = vmatpush1.msra.mxu0 %v1187
      %1226 = vmatprep.subr.mxu0 0.0
      %1227 = vmatpush1.msra.mxu0 %v1185
      %1228 = vmatprep.subr.mxu0 0.0
      %1229 = vmatpush2.msra.mxu0 0.0
      %1230 = vmatprep.subr.mxu0 0.0
      %1231 = vmatpush2.msra.mxu0 0.0
      %1232 = vmatprep.subr.mxu0 0.0
      %1233 = vmatpush2.msra.mxu0 0.0
      %1234 = vmatprep.subr.mxu0 0.0
      %1235 = vmatpush2.msra.mxu0 0.0
      %1236 = vmatprep.subr.mxu0 0.0
      %1237 = vmatpush2.msra.mxu0 0.0
      %1238 = vmatprep.subr.mxu0 0.0
      %1239 = vmatpush2.msra.mxu0 0.0
      %1240 = vmatprep.subr.mxu0 0.0
      %1241 = vmatpush2.msra.mxu0 0.0
      %1242 = vmatprep.subr.mxu0 0.0
      %1243 = vmatpush2.msra.mxu0 0.0
      %1244 = vmatprep.subr.mxu0 0.0
      %1245 = vmatpush2.msra.mxu0 0.0
      %1246 = vmatprep.subr.mxu0 0.0
      %1247 = vmatpush2.msra.mxu0 0.0
      %1248 = vmatprep.subr.mxu0 0.0
      %1249 = vmatpush2.msra.mxu0 0.0
      %1250 = vmatprep.subr.mxu0 0.0
      %1251 = vmatpush2.msra.mxu0 0.0
      %1252 = vmatprep.subr.mxu0 0.0
      %1253 = vmatpush2.msra.mxu0 0.0
      %1254 = vmatprep.subr.mxu0 0.0
      %1255 = vmatpush2.msra.mxu0 0.0
      %1256 = vmatprep.subr.mxu0 0.0
      %1257 = vmatpush2.msra.mxu0 0.0
      %1258 = vmatprep.subr.mxu0 0.0
      %1259 = vmatpush2.msra.mxu0 0.0
      %1260 = vmatprep.mubr.f32.mxu0 0.0
      %1261 = vmatmul.mubr.f32.gmra.mxu0 %v1191
      %v1262 = vpop.f32.mrf.mxu0
      %v1263 = vadd.f32 0.0, %v1262
      %v1264 = vpop.f32.mrf.mxu0
      %1265 = vmatprep.mubr.f32.mxu0 0.0
      %1266 = vmatmul.mubr.f32.gmra.mxu0 %v1194
      %v1267 = vpop.f32.mrf.mxu0
      %v1268 = vadd.f32 0.0, %v1267
      %v1269 = vpop.f32.mrf.mxu0
      %1270 = vdwg.mxu0
      %1271 = vrot.lane.b32.xlu0 %v578, 32
      %v1272 = vpop.permute.xlu0 %1271
      %1273 = vrot.lane.b32.xlu0 %v584, 32
      %v1274 = vpop.permute.xlu0 %1273
      %1275 = vrot.lane.b32.xlu0 %v580, 32
      %v1276 = vpop.permute.xlu0 %1275
      %1277 = vrot.lane.b32.xlu0 %v586, 32
      %v1278 = vpop.permute.xlu0 %1277
      %v1279 = vsel %vm671, %v1272, 0
      %v1281 = vsel %vm671, %v1274, 0
      %v1283 = vsel %vm671, %v1276, 0
      %v1285 = vsel %vm671, %v1278, 0
      %1287 = vmatprep.subr.mxu0 0.0
      %1288 = vmatpush1.xpose.msra.mxu0 0.0
      %1289 = vmatprep.subr.mxu0 0.0
      %1290 = vmatpush1.xpose.msra.mxu0 0.0
      %1291 = vmatprep.subr.mxu0 0.0
      %1292 = vmatpush1.xpose.msra.mxu0 0.0
      %1293 = vmatprep.subr.mxu0 0.0
      %1294 = vmatpush1.xpose.msra.mxu0 0.0
      %1295 = vmatprep.subr.mxu0 0.0
      %1296 = vmatpush1.xpose.msra.mxu0 0.0
      %1297 = vmatprep.subr.mxu0 0.0
      %1298 = vmatpush1.xpose.msra.mxu0 0.0
      %1299 = vmatprep.subr.mxu0 0.0
      %1300 = vmatpush1.xpose.msra.mxu0 0.0
      %1301 = vmatprep.subr.mxu0 0.0
      %1302 = vmatpush1.xpose.msra.mxu0 0.0
      %1303 = vmatprep.subr.mxu0 0.0
      %1304 = vmatpush1.xpose.msra.mxu0 0.0
      %1305 = vmatprep.subr.mxu0 0.0
      %1306 = vmatpush1.xpose.msra.mxu0 0.0
      %1307 = vmatprep.subr.mxu0 0.0
      %1308 = vmatpush1.xpose.msra.mxu0 0.0
      %1309 = vmatprep.subr.mxu0 0.0
      %1310 = vmatpush1.xpose.msra.mxu0 0.0
      %1311 = vmatprep.subr.mxu0 0.0
      %1312 = vmatpush1.xpose.msra.mxu0 0.0
      %1313 = vmatprep.subr.mxu0 0.0
      %1314 = vmatpush1.xpose.msra.mxu0 0.0
      %1315 = vmatprep.subr.mxu0 0.0
      %1316 = vmatpush1.xpose.msra.mxu0 %v1285
      %1317 = vmatprep.subr.mxu0 0.0
      %1318 = vmatpush1.xpose.msra.mxu0 %v1283
      %1319 = vmatprep.subr.mxu0 0.0
      %1320 = vmatpush2.xpose.msra.mxu0 0.0
      %1321 = vmatprep.subr.mxu0 0.0
      %1322 = vmatpush2.xpose.msra.mxu0 0.0
      %1323 = vmatprep.subr.mxu0 0.0
      %1324 = vmatpush2.xpose.msra.mxu0 0.0
      %1325 = vmatprep.subr.mxu0 0.0
      %1326 = vmatpush2.xpose.msra.mxu0 0.0
      %1327 = vmatprep.subr.mxu0 0.0
      %1328 = vmatpush2.xpose.msra.mxu0 0.0
      %1329 = vmatprep.subr.mxu0 0.0
      %1330 = vmatpush2.xpose.msra.mxu0 0.0
      %1331 = vmatprep.subr.mxu0 0.0
      %1332 = vmatpush2.xpose.msra.mxu0 0.0
      %1333 = vmatprep.subr.mxu0 0.0
      %1334 = vmatpush2.xpose.msra.mxu0 0.0
      %1335 = vmatprep.subr.mxu0 0.0
      %1336 = vmatpush2.xpose.msra.mxu0 0.0
      %1337 = vmatprep.subr.mxu0 0.0
      %1338 = vmatpush2.xpose.msra.mxu0 0.0
      %1339 = vmatprep.subr.mxu0 0.0
      %1340 = vmatpush2.xpose.msra.mxu0 0.0
      %1341 = vmatprep.subr.mxu0 0.0
      %1342 = vmatpush2.xpose.msra.mxu0 0.0
      %1343 = vmatprep.subr.mxu0 0.0
      %1344 = vmatpush2.xpose.msra.mxu0 0.0
      %1345 = vmatprep.subr.mxu0 0.0
      %1346 = vmatpush2.xpose.msra.mxu0 0.0
      %1347 = vmatprep.subr.mxu0 0.0
      %1348 = vmatpush2.xpose.msra.mxu0 0.0
      %1349 = vmatprep.subr.mxu0 0.0
      %1350 = vmatpush2.xpose.msra.mxu0 0.0
      %1351 = vmatprep.mubr.f32.mxu0 0.0
      %1352 = vmatmul.mubr.f32.gmra.mxu0 %v1279
      %v1353 = vpop.f32.mrf.mxu0
      %v1354 = vadd.f32 0.0, %v1353
      %v1355 = vpop.f32.mrf.mxu0
      %1356 = vmatprep.mubr.f32.mxu0 0.0
      %1357 = vmatmul.mubr.f32.gmra.mxu0 %v1281
      %v1358 = vpop.f32.mrf.mxu0
      %v1359 = vadd.f32 0.0, %v1358
      %v1360 = vpop.f32.mrf.mxu0
      %1361 = vdwg.mxu0
      %v1362 = vsel %vm669, -1e+20, %v1354
      %v1363 = vsel %vm670, -1e+20, %v1359
      %v1364 = vsel %vm761, %v1362, -inf
      %1365 = vmax.xlane.f32.xlu0 %v1364
      %v1366 = vpop.xlane.xlu0 %1365
      %v1367 = vsel %vm761, %v1363, -inf
      %1368 = vmax.xlane.f32.xlu0 %v1367
      %v1369 = vpop.xlane.xlu0 %1368
      %v1370 = vsub.f32 %v1362, %v1366
      %v1371 = vsub.f32 %v1363, %v1369
      %v1372 = vmul.f32 %v1370, 1.442695
      %v1373 = vpow.pop %v1372
      %v1374 = vmul.f32 %v1371, 1.442695
      %v1375 = vpow.pop %v1374
      %v1376 = vsel %vm761, %v1373, 0.0
      %1377 = vadd.xlane.f32.xlu0 %v1376
      %v1378 = vpop.xlane.xlu0 %1377
      %v1379 = vsel %vm761, %v1375, 0.0
      %1380 = vadd.xlane.f32.xlu0 %v1379
      %v1381 = vpop.xlane.xlu0 %1380
      %v1382 = vrcp.pop %v1378
      %v1383 = vrcp.pop %v1381
      %v1384 = vmul.f32 %v1373, %v1382
      %v1385 = vmul.f32 %v1375, %v1383
      %1386 = vrot.lane.b32.xlu0 %v655, 32
      %v1387 = vpop.permute.xlu0 %1386
      %1388 = vrot.lane.b32.xlu0 %v660, 32
      %v1389 = vpop.permute.xlu0 %1388
      %v1393 = vsel %vm761, %v1384, 0
      %v1396 = vsel %vm761, %v1385, 0
      %1398 = vmatprep.subr.mxu0 0.0
      %1399 = vmatpush1.msra.mxu0 0.0
      %1400 = vmatprep.subr.mxu0 0.0
      %1401 = vmatpush1.msra.mxu0 0.0
      %1402 = vmatprep.subr.mxu0 0.0
      %1403 = vmatpush1.msra.mxu0 0.0
      %1404 = vmatprep.subr.mxu0 0.0
      %1405 = vmatpush1.msra.mxu0 0.0
      %1406 = vmatprep.subr.mxu0 0.0
      %1407 = vmatpush1.msra.mxu0 0.0
      %1408 = vmatprep.subr.mxu0 0.0
      %1409 = vmatpush1.msra.mxu0 0.0
      %1410 = vmatprep.subr.mxu0 0.0
      %1411 = vmatpush1.msra.mxu0 0.0
      %1412 = vmatprep.subr.mxu0 0.0
      %1413 = vmatpush1.msra.mxu0 0.0
      %1414 = vmatprep.subr.mxu0 0.0
      %1415 = vmatpush1.msra.mxu0 0.0
      %1416 = vmatprep.subr.mxu0 0.0
      %1417 = vmatpush1.msra.mxu0 0.0
      %1418 = vmatprep.subr.mxu0 0.0
      %1419 = vmatpush1.msra.mxu0 0.0
      %1420 = vmatprep.subr.mxu0 0.0
      %1421 = vmatpush1.msra.mxu0 0.0
      %1422 = vmatprep.subr.mxu0 0.0
      %1423 = vmatpush1.msra.mxu0 0.0
      %1424 = vmatprep.subr.mxu0 0.0
      %1425 = vmatpush1.msra.mxu0 0.0
      %1426 = vmatprep.subr.mxu0 0.0
      %1427 = vmatpush1.msra.mxu0 %v1389
      %1428 = vmatprep.subr.mxu0 0.0
      %1429 = vmatpush1.msra.mxu0 %v1387
      %1430 = vmatprep.subr.mxu0 0.0
      %1431 = vmatpush2.msra.mxu0 0.0
      %1432 = vmatprep.subr.mxu0 0.0
      %1433 = vmatpush2.msra.mxu0 0.0
      %1434 = vmatprep.subr.mxu0 0.0
      %1435 = vmatpush2.msra.mxu0 0.0
      %1436 = vmatprep.subr.mxu0 0.0
      %1437 = vmatpush2.msra.mxu0 0.0
      %1438 = vmatprep.subr.mxu0 0.0
      %1439 = vmatpush2.msra.mxu0 0.0
      %1440 = vmatprep.subr.mxu0 0.0
      %1441 = vmatpush2.msra.mxu0 0.0
      %1442 = vmatprep.subr.mxu0 0.0
      %1443 = vmatpush2.msra.mxu0 0.0
      %1444 = vmatprep.subr.mxu0 0.0
      %1445 = vmatpush2.msra.mxu0 0.0
      %1446 = vmatprep.subr.mxu0 0.0
      %1447 = vmatpush2.msra.mxu0 0.0
      %1448 = vmatprep.subr.mxu0 0.0
      %1449 = vmatpush2.msra.mxu0 0.0
      %1450 = vmatprep.subr.mxu0 0.0
      %1451 = vmatpush2.msra.mxu0 0.0
      %1452 = vmatprep.subr.mxu0 0.0
      %1453 = vmatpush2.msra.mxu0 0.0
      %1454 = vmatprep.subr.mxu0 0.0
      %1455 = vmatpush2.msra.mxu0 0.0
      %1456 = vmatprep.subr.mxu0 0.0
      %1457 = vmatpush2.msra.mxu0 0.0
      %1458 = vmatprep.subr.mxu0 0.0
      %1459 = vmatpush2.msra.mxu0 0.0
      %1460 = vmatprep.subr.mxu0 0.0
      %1461 = vmatpush2.msra.mxu0 0.0
      %1462 = vmatprep.mubr.f32.mxu0 0.0
      %1463 = vmatmul.mubr.f32.gmra.mxu0 %v1393
      %v1464 = vpop.f32.mrf.mxu0
      %v1465 = vadd.f32 0.0, %v1464
      %v1466 = vpop.f32.mrf.mxu0
      %1467 = vmatprep.mubr.f32.mxu0 0.0
      %1468 = vmatmul.mubr.f32.gmra.mxu0 %v1396
      %v1469 = vpop.f32.mrf.mxu0
      %v1470 = vadd.f32 0.0, %v1469
      %v1471 = vpop.f32.mrf.mxu0
      %1472 = vdwg.mxu0
      %1475 = vrot.lane.b32.xlu0 %v1061, 32
      %v1476 = vpop.permute.xlu0 %1475
      %1477 = vrot.lane.b32.xlu0 %v1066, 32
      %v1478 = vpop.permute.xlu0 %1477
      %1483 = vrot.lane.b32.xlu0 %v1263, 64
      %v1484 = vpop.permute.xlu0 %1483
      %1485 = vrot.lane.b32.xlu0 %v1268, 64
      %v1486 = vpop.permute.xlu0 %1485
      %1491 = vrot.lane.b32.xlu0 %v1465, 96
      %v1492 = vpop.permute.xlu0 %1491
      %1493 = vrot.lane.b32.xlu0 %v1470, 96
      %v1494 = vpop.permute.xlu0 %1493
      %v1497 = vsel %vm671, %v857, %v1476
      %v1498 = vsel %vm671, %v862, %v1478
      %vm1499 = vcmask 523264
      %v1500 = vsel %vm1499, %v1497, %v1484
      %v1501 = vsel %vm1499, %v1498, %v1486
      %vm1502 = vcmask 785408
      %v1503 = vsel %vm1502, %v1500, %v1492
      %v1504 = vsel %vm1502, %v1501, %v1494
      %v1505 = vld [vmem:[%s3] sm:$0xff]
      %v1506 = vld [vmem:[%s3 + $0x8] sm:$0xff]
      %v1507 = vld [vmem:[%s3 + $0x10] sm:$0xff]
      %v1508 = vld [vmem:[%s3 + $0x18] sm:$0xff]
      %v1509 = vld [vmem:[%s3 + $0x20] sm:$0xff]
      %v1510 = vld [vmem:[%s3 + $0x28] sm:$0xff]
      %v1511 = vld [vmem:[%s3 + $0x30] sm:$0xff]
      %v1512 = vld [vmem:[%s3 + $0x38] sm:$0xff]
      %v1513 = vld [vmem:[%s3 + $0x40] sm:$0xff]
      %v1514 = vld [vmem:[%s3 + $0x48] sm:$0xff]
      %v1515 = vld [vmem:[%s3 + $0x50] sm:$0xff]
      %v1516 = vld [vmem:[%s3 + $0x58] sm:$0xff]
      %v1517 = vld [vmem:[%s3 + $0x60] sm:$0xff]
      %v1518 = vld [vmem:[%s3 + $0x68] sm:$0xff]
      %v1519 = vld [vmem:[%s3 + $0x70] sm:$0xff]
      %v1520 = vld [vmem:[%s3 + $0x78] sm:$0xff]
      %v1521 = vld [vmem:[%s4] sm:$0x1]
      %v1523 = vlaneseq
      %v1524 = vshrl.u32 %v1523, 7
      %v1525 = vsub.s32 0, %v1524
      %v1526 = vrot.slane %v1521, %v1525
      %1528 = vmatprep.subr.mxu0 0.0
      %1529 = vmatpush1.msra.mxu0 %v1520
      %1530 = vmatprep.subr.mxu0 0.0
      %1531 = vmatpush1.msra.mxu0 %v1519
      %1532 = vmatprep.subr.mxu0 0.0
      %1533 = vmatpush1.msra.mxu0 %v1518
      %1534 = vmatprep.subr.mxu0 0.0
      %1535 = vmatpush1.msra.mxu0 %v1517
      %1536 = vmatprep.subr.mxu0 0.0
      %1537 = vmatpush1.msra.mxu0 %v1516
      %1538 = vmatprep.subr.mxu0 0.0
      %1539 = vmatpush1.msra.mxu0 %v1515
      %1540 = vmatprep.subr.mxu0 0.0
      %1541 = vmatpush1.msra.mxu0 %v1514
      %1542 = vmatprep.subr.mxu0 0.0
      %1543 = vmatpush1.msra.mxu0 %v1513
      %1544 = vmatprep.subr.mxu0 0.0
      %1545 = vmatpush1.msra.mxu0 %v1512
      %1546 = vmatprep.subr.mxu0 0.0
      %1547 = vmatpush1.msra.mxu0 %v1511
      %1548 = vmatprep.subr.mxu0 0.0
      %1549 = vmatpush1.msra.mxu0 %v1510
      %1550 = vmatprep.subr.mxu0 0.0
      %1551 = vmatpush1.msra.mxu0 %v1509
      %1552 = vmatprep.subr.mxu0 0.0
      %1553 = vmatpush1.msra.mxu0 %v1508
      %1554 = vmatprep.subr.mxu0 0.0
      %1555 = vmatpush1.msra.mxu0 %v1507
      %1556 = vmatprep.subr.mxu0 0.0
      %1557 = vmatpush1.msra.mxu0 %v1506
      %1558 = vmatprep.subr.mxu0 0.0
      %1559 = vmatpush1.msra.mxu0 %v1505
      %1560 = vmatprep.subr.mxu0 0.0
      %1561 = vmatpush2.msra.mxu0 0.0
      %1562 = vmatprep.subr.mxu0 0.0
      %1563 = vmatpush2.msra.mxu0 0.0
      %1564 = vmatprep.subr.mxu0 0.0
      %1565 = vmatpush2.msra.mxu0 0.0
      %1566 = vmatprep.subr.mxu0 0.0
      %1567 = vmatpush2.msra.mxu0 0.0
      %1568 = vmatprep.subr.mxu0 0.0
      %1569 = vmatpush2.msra.mxu0 0.0
      %1570 = vmatprep.subr.mxu0 0.0
      %1571 = vmatpush2.msra.mxu0 0.0
      %1572 = vmatprep.subr.mxu0 0.0
      %1573 = vmatpush2.msra.mxu0 0.0
      %1574 = vmatprep.subr.mxu0 0.0
      %1575 = vmatpush2.msra.mxu0 0.0
      %1576 = vmatprep.subr.mxu0 0.0
      %1577 = vmatpush2.msra.mxu0 0.0
      %1578 = vmatprep.subr.mxu0 0.0
      %1579 = vmatpush2.msra.mxu0 0.0
      %1580 = vmatprep.subr.mxu0 0.0
      %1581 = vmatpush2.msra.mxu0 0.0
      %1582 = vmatprep.subr.mxu0 0.0
      %1583 = vmatpush2.msra.mxu0 0.0
      %1584 = vmatprep.subr.mxu0 0.0
      %1585 = vmatpush2.msra.mxu0 0.0
      %1586 = vmatprep.subr.mxu0 0.0
      %1587 = vmatpush2.msra.mxu0 0.0
      %1588 = vmatprep.subr.mxu0 0.0
      %1589 = vmatpush2.msra.mxu0 0.0
      %1590 = vmatprep.subr.mxu0 0.0
      %1591 = vmatpush2.msra.mxu0 0.0
      %1592 = vmatprep.mubr.f32.mxu0 0.0
      %1593 = vmatmul.mubr.f32.gmra.mxu0 %v1503
      %v1594 = vpop.f32.mrf.mxu0
      %v1595 = vadd.f32 %v1526, %v1594
      %v1596 = vpop.f32.mrf.mxu0
      %1597 = vmatprep.mubr.f32.mxu0 0.0
      %1598 = vmatmul.mubr.f32.gmra.mxu0 %v1504
      %v1599 = vpop.f32.mrf.mxu0
      %v1600 = vadd.f32 %v1526, %v1599
      %v1601 = vpop.f32.mrf.mxu0
      %1602 = vdwg.mxu0
      %v1603 = vadd.f32 %v1595, %v461
      %v1604 = vadd.f32 %v1600, %v462
      %v1605 = vld [vmem:[%s5] sm:$0x1]
      %v1606 = vld [vmem:[%s6] sm:$0x1]
      %1607 = vadd.xlane.f32.xlu0 %v1603
      %v1608 = vpop.xlane.xlu0 %1607
      %1609 = vadd.xlane.f32.xlu0 %v1604
      %v1610 = vpop.xlane.xlu0 %1609
      %v1611 = vrcp.pop 128.0
      %v1612 = vmul.f32 %v1608, %v1611
      %v1613 = vmul.f32 %v1610, %v1611
      %v1614 = vsub.f32 %v1603, %v1612
      %v1615 = vsub.f32 %v1604, %v1613
      %v1616 = vmul.f32 %v1614, %v1614
      %v1617 = vmul.f32 %v1615, %v1615
      %1618 = vadd.xlane.f32.xlu0 %v1616
      %v1619 = vpop.xlane.xlu0 %1618
      %1620 = vadd.xlane.f32.xlu0 %v1617
      %v1621 = vpop.xlane.xlu0 %1620
      %v1622 = vmul.f32 %v1619, %v1611
      %v1623 = vmul.f32 %v1621, %v1611
      %v1624 = vadd.f32 %v1622, 1e-05
      %v1625 = vadd.f32 %v1623, 1e-05
      %v1626 = vrsqrt.pop %v1624
      %v1627 = vrsqrt.pop %v1625
      %v1628 = vmul.f32 %v1614, %v1626
      %v1629 = vmul.f32 %v1615, %v1627
      %v1631 = vlaneseq
      %v1632 = vshrl.u32 %v1631, 7
      %v1633 = vsub.s32 0, %v1632
      %v1634 = vrot.slane %v1605, %v1633
      %v1636 = vmul.f32 %v1628, %v1634
      %v1637 = vmul.f32 %v1629, %v1634
      %v1639 = vlaneseq
      %v1640 = vshrl.u32 %v1639, 7
      %v1641 = vsub.s32 0, %v1640
      %v1642 = vrot.slane %v1606, %v1641
      %v1644 = vadd.f32 %v1636, %v1642
      %v1645 = vadd.f32 %v1637, %v1642
      %v1646 = vld [vmem:[%s7] sm:$0xff]
      %v1647 = vld [vmem:[%s7 + $0x8] sm:$0xff]
      %v1648 = vld [vmem:[%s7 + $0x10] sm:$0xff]
      %v1649 = vld [vmem:[%s7 + $0x18] sm:$0xff]
      %v1650 = vld [vmem:[%s7 + $0x20] sm:$0xff]
      %v1651 = vld [vmem:[%s7 + $0x28] sm:$0xff]
      %v1652 = vld [vmem:[%s7 + $0x30] sm:$0xff]
      %v1653 = vld [vmem:[%s7 + $0x38] sm:$0xff]
      %v1654 = vld [vmem:[%s7 + $0x40] sm:$0xff]
      %v1655 = vld [vmem:[%s7 + $0x48] sm:$0xff]
      %v1656 = vld [vmem:[%s7 + $0x50] sm:$0xff]
      %v1657 = vld [vmem:[%s7 + $0x58] sm:$0xff]
      %v1658 = vld [vmem:[%s7 + $0x60] sm:$0xff]
      %v1659 = vld [vmem:[%s7 + $0x68] sm:$0xff]
      %v1660 = vld [vmem:[%s7 + $0x70] sm:$0xff]
      %v1661 = vld [vmem:[%s7 + $0x78] sm:$0xff]
      %v1662 = vld [vmem:[%s7 + $0x80] sm:$0xff]
      %v1663 = vld [vmem:[%s7 + $0x88] sm:$0xff]
      %v1664 = vld [vmem:[%s7 + $0x90] sm:$0xff]
      %v1665 = vld [vmem:[%s7 + $0x98] sm:$0xff]
      %v1666 = vld [vmem:[%s7 + $0xa0] sm:$0xff]
      %v1667 = vld [vmem:[%s7 + $0xa8] sm:$0xff]
      %v1668 = vld [vmem:[%s7 + $0xb0] sm:$0xff]
      %v1669 = vld [vmem:[%s7 + $0xb8] sm:$0xff]
      %v1670 = vld [vmem:[%s7 + $0xc0] sm:$0xff]
      %v1671 = vld [vmem:[%s7 + $0xc8] sm:$0xff]
      %v1672 = vld [vmem:[%s7 + $0xd0] sm:$0xff]
      %v1673 = vld [vmem:[%s7 + $0xd8] sm:$0xff]
      %v1674 = vld [vmem:[%s7 + $0xe0] sm:$0xff]
      %v1675 = vld [vmem:[%s7 + $0xe8] sm:$0xff]
      %v1676 = vld [vmem:[%s7 + $0xf0] sm:$0xff]
      %v1677 = vld [vmem:[%s7 + $0xf8] sm:$0xff]
      %v1678 = vld [vmem:[%s7 + $0x100] sm:$0xff]
      %v1679 = vld [vmem:[%s7 + $0x108] sm:$0xff]
      %v1680 = vld [vmem:[%s7 + $0x110] sm:$0xff]
      %v1681 = vld [vmem:[%s7 + $0x118] sm:$0xff]
      %v1682 = vld [vmem:[%s7 + $0x120] sm:$0xff]
      %v1683 = vld [vmem:[%s7 + $0x128] sm:$0xff]
      %v1684 = vld [vmem:[%s7 + $0x130] sm:$0xff]
      %v1685 = vld [vmem:[%s7 + $0x138] sm:$0xff]
      %v1686 = vld [vmem:[%s7 + $0x140] sm:$0xff]
      %v1687 = vld [vmem:[%s7 + $0x148] sm:$0xff]
      %v1688 = vld [vmem:[%s7 + $0x150] sm:$0xff]
      %v1689 = vld [vmem:[%s7 + $0x158] sm:$0xff]
      %v1690 = vld [vmem:[%s7 + $0x160] sm:$0xff]
      %v1691 = vld [vmem:[%s7 + $0x168] sm:$0xff]
      %v1692 = vld [vmem:[%s7 + $0x170] sm:$0xff]
      %v1693 = vld [vmem:[%s7 + $0x178] sm:$0xff]
      %v1694 = vld [vmem:[%s7 + $0x180] sm:$0xff]
      %v1695 = vld [vmem:[%s7 + $0x188] sm:$0xff]
      %v1696 = vld [vmem:[%s7 + $0x190] sm:$0xff]
      %v1697 = vld [vmem:[%s7 + $0x198] sm:$0xff]
      %v1698 = vld [vmem:[%s7 + $0x1a0] sm:$0xff]
      %v1699 = vld [vmem:[%s7 + $0x1a8] sm:$0xff]
      %v1700 = vld [vmem:[%s7 + $0x1b0] sm:$0xff]
      %v1701 = vld [vmem:[%s7 + $0x1b8] sm:$0xff]
      %v1702 = vld [vmem:[%s7 + $0x1c0] sm:$0xff]
      %v1703 = vld [vmem:[%s7 + $0x1c8] sm:$0xff]
      %v1704 = vld [vmem:[%s7 + $0x1d0] sm:$0xff]
      %v1705 = vld [vmem:[%s7 + $0x1d8] sm:$0xff]
      %v1706 = vld [vmem:[%s7 + $0x1e0] sm:$0xff]
      %v1707 = vld [vmem:[%s7 + $0x1e8] sm:$0xff]
      %v1708 = vld [vmem:[%s7 + $0x1f0] sm:$0xff]
      %v1709 = vld [vmem:[%s7 + $0x1f8] sm:$0xff]
      %v1710 = vld [vmem:[%s8] sm:$0xf]
      %v1712 = vlaneseq
      %v1713 = vshrl.u32 %v1712, 7
      %v1714 = vsub.s32 0, %v1713
      %v1715 = vrot.slane %v1710, %v1714
      %v1716 = vlaneseq
      %v1717 = vshrl.u32 %v1716, 7
      %v1718 = vsub.s32 1, %v1717
      %v1719 = vrot.slane %v1710, %v1718
      %v1720 = vlaneseq
      %v1721 = vshrl.u32 %v1720, 7
      %v1722 = vsub.s32 2, %v1721
      %v1723 = vrot.slane %v1710, %v1722
      %v1724 = vlaneseq
      %v1725 = vshrl.u32 %v1724, 7
      %v1726 = vsub.s32 3, %v1725
      %v1727 = vrot.slane %v1710, %v1726
      %1732 = vmatprep.subr.mxu0 %v1707
      %1733 = vmatpush1.msra.mxu0 %v1706
      %1734 = vmatprep.subr.mxu0 %v1703
      %1735 = vmatpush1.msra.mxu0 %v1702
      %1736 = vmatprep.subr.mxu0 %v1699
      %1737 = vmatpush1.msra.mxu0 %v1698
      %1738 = vmatprep.subr.mxu0 %v1695
      %1739 = vmatpush1.msra.mxu0 %v1694
      %1740 = vmatprep.subr.mxu0 %v1691
      %1741 = vmatpush1.msra.mxu0 %v1690
      %1742 = vmatprep.subr.mxu0 %v1687
      %1743 = vmatpush1.msra.mxu0 %v1686
      %1744 = vmatprep.subr.mxu0 %v1683
      %1745 = vmatpush1.msra.mxu0 %v1682
      %1746 = vmatprep.subr.mxu0 %v1679
      %1747 = vmatpush1.msra.mxu0 %v1678
      %1748 = vmatprep.subr.mxu0 %v1675
      %1749 = vmatpush1.msra.mxu0 %v1674
      %1750 = vmatprep.subr.mxu0 %v1671
      %1751 = vmatpush1.msra.mxu0 %v1670
      %1752 = vmatprep.subr.mxu0 %v1667
      %1753 = vmatpush1.msra.mxu0 %v1666
      %1754 = vmatprep.subr.mxu0 %v1663
      %1755 = vmatpush1.msra.mxu0 %v1662
      %1756 = vmatprep.subr.mxu0 %v1659
      %1757 = vmatpush1.msra.mxu0 %v1658
      %1758 = vmatprep.subr.mxu0 %v1655
      %1759 = vmatpush1.msra.mxu0 %v1654
      %1760 = vmatprep.subr.mxu0 %v1651
      %1761 = vmatpush1.msra.mxu0 %v1650
      %1762 = vmatprep.subr.mxu0 %v1647
      %1763 = vmatpush1.msra.mxu0 %v1646
      %1764 = vmatprep.subr.mxu0 0.0
      %1765 = vmatpush2.msra.mxu0 0.0
      %1766 = vmatprep.subr.mxu0 0.0
      %1767 = vmatpush2.msra.mxu0 0.0
      %1768 = vmatprep.subr.mxu0 0.0
      %1769 = vmatpush2.msra.mxu0 0.0
      %1770 = vmatprep.subr.mxu0 0.0
      %1771 = vmatpush2.msra.mxu0 0.0
      %1772 = vmatprep.subr.mxu0 0.0
      %1773 = vmatpush2.msra.mxu0 0.0
      %1774 = vmatprep.subr.mxu0 0.0
      %1775 = vmatpush2.msra.mxu0 0.0
      %1776 = vmatprep.subr.mxu0 0.0
      %1777 = vmatpush2.msra.mxu0 0.0
      %1778 = vmatprep.subr.mxu0 0.0
      %1779 = vmatpush2.msra.mxu0 0.0
      %1780 = vmatprep.subr.mxu0 0.0
      %1781 = vmatpush2.msra.mxu0 0.0
      %1782 = vmatprep.subr.mxu0 0.0
      %1783 = vmatpush2.msra.mxu0 0.0
      %1784 = vmatprep.subr.mxu0 0.0
      %1785 = vmatpush2.msra.mxu0 0.0
      %1786 = vmatprep.subr.mxu0 0.0
      %1787 = vmatpush2.msra.mxu0 0.0
      %1788 = vmatprep.subr.mxu0 0.0
      %1789 = vmatpush2.msra.mxu0 0.0
      %1790 = vmatprep.subr.mxu0 0.0
      %1791 = vmatpush2.msra.mxu0 0.0
      %1792 = vmatprep.subr.mxu0 0.0
      %1793 = vmatpush2.msra.mxu0 0.0
      %1794 = vmatprep.subr.mxu0 0.0
      %1795 = vmatpush2.msra.mxu0 0.0
      %1796 = vmatprep.mubr.f32.mxu0 0.0
      %1797 = vmatmul.mubr.f32.gmra.mxu0 %v1644
      %v1798 = vpop.f32.mrf.mxu0
      %v1799 = vadd.f32 %v1715, %v1798
      %v1800 = vpop.f32.mrf.mxu0
      %v1801 = vadd.f32 %v1719, %v1800
      %1802 = vmatprep.mubr.f32.mxu0 0.0
      %1803 = vmatmul.mubr.f32.gmra.mxu0 %v1645
      %v1804 = vpop.f32.mrf.mxu0
      %v1805 = vadd.f32 %v1715, %v1804
      %v1806 = vpop.f32.mrf.mxu0
      %v1807 = vadd.f32 %v1719, %v1806
      %1808 = vdwg.mxu0
      %1809 = vmatprep.subr.mxu0 %v1709
      %1810 = vmatpush1.msra.mxu0 %v1708
      %1811 = vmatprep.subr.mxu0 %v1705
      %1812 = vmatpush1.msra.mxu0 %v1704
      %1813 = vmatprep.subr.mxu0 %v1701
      %1814 = vmatpush1.msra.mxu0 %v1700
      %1815 = vmatprep.subr.mxu0 %v1697
      %1816 = vmatpush1.msra.mxu0 %v1696
      %1817 = vmatprep.subr.mxu0 %v1693
      %1818 = vmatpush1.msra.mxu0 %v1692
      %1819 = vmatprep.subr.mxu0 %v1689
      %1820 = vmatpush1.msra.mxu0 %v1688
      %1821 = vmatprep.subr.mxu0 %v1685
      %1822 = vmatpush1.msra.mxu0 %v1684
      %1823 = vmatprep.subr.mxu0 %v1681
      %1824 = vmatpush1.msra.mxu0 %v1680
      %1825 = vmatprep.subr.mxu0 %v1677
      %1826 = vmatpush1.msra.mxu0 %v1676
      %1827 = vmatprep.subr.mxu0 %v1673
      %1828 = vmatpush1.msra.mxu0 %v1672
      %1829 = vmatprep.subr.mxu0 %v1669
      %1830 = vmatpush1.msra.mxu0 %v1668
      %1831 = vmatprep.subr.mxu0 %v1665
      %1832 = vmatpush1.msra.mxu0 %v1664
      %1833 = vmatprep.subr.mxu0 %v1661
      %1834 = vmatpush1.msra.mxu0 %v1660
      %1835 = vmatprep.subr.mxu0 %v1657
      %1836 = vmatpush1.msra.mxu0 %v1656
      %1837 = vmatprep.subr.mxu0 %v1653
      %1838 = vmatpush1.msra.mxu0 %v1652
      %1839 = vmatprep.subr.mxu0 %v1649
      %1840 = vmatpush1.msra.mxu0 %v1648
      %1841 = vmatprep.subr.mxu0 0.0
      %1842 = vmatpush2.msra.mxu0 0.0
      %1843 = vmatprep.subr.mxu0 0.0
      %1844 = vmatpush2.msra.mxu0 0.0
      %1845 = vmatprep.subr.mxu0 0.0
      %1846 = vmatpush2.msra.mxu0 0.0
      %1847 = vmatprep.subr.mxu0 0.0
      %1848 = vmatpush2.msra.mxu0 0.0
      %1849 = vmatprep.subr.mxu0 0.0
      %1850 = vmatpush2.msra.mxu0 0.0
      %1851 = vmatprep.subr.mxu0 0.0
      %1852 = vmatpush2.msra.mxu0 0.0
      %1853 = vmatprep.subr.mxu0 0.0
      %1854 = vmatpush2.msra.mxu0 0.0
      %1855 = vmatprep.subr.mxu0 0.0
      %1856 = vmatpush2.msra.mxu0 0.0
      %1857 = vmatprep.subr.mxu0 0.0
      %1858 = vmatpush2.msra.mxu0 0.0
      %1859 = vmatprep.subr.mxu0 0.0
      %1860 = vmatpush2.msra.mxu0 0.0
      %1861 = vmatprep.subr.mxu0 0.0
      %1862 = vmatpush2.msra.mxu0 0.0
      %1863 = vmatprep.subr.mxu0 0.0
      %1864 = vmatpush2.msra.mxu0 0.0
      %1865 = vmatprep.subr.mxu0 0.0
      %1866 = vmatpush2.msra.mxu0 0.0
      %1867 = vmatprep.subr.mxu0 0.0
      %1868 = vmatpush2.msra.mxu0 0.0
      %1869 = vmatprep.subr.mxu0 0.0
      %1870 = vmatpush2.msra.mxu0 0.0
      %1871 = vmatprep.subr.mxu0 0.0
      %1872 = vmatpush2.msra.mxu0 0.0
      %1873 = vmatprep.mubr.f32.mxu0 0.0
      %1874 = vmatmul.mubr.f32.gmra.mxu0 %v1644
      %v1875 = vpop.f32.mrf.mxu0
      %v1876 = vadd.f32 %v1723, %v1875
      %v1877 = vpop.f32.mrf.mxu0
      %v1878 = vadd.f32 %v1727, %v1877
      %1879 = vmatprep.mubr.f32.mxu0 0.0
      %1880 = vmatmul.mubr.f32.gmra.mxu0 %v1645
      %v1881 = vpop.f32.mrf.mxu0
      %v1882 = vadd.f32 %v1723, %v1881
      %v1883 = vpop.f32.mrf.mxu0
      %v1884 = vadd.f32 %v1727, %v1883
      %1885 = vdwg.mxu0
      %v1886 = vmax.f32 %v1799, 0.0
      %v1887 = vmax.f32 %v1801, 0.0
      %v1888 = vmax.f32 %v1876, 0.0
      %v1889 = vmax.f32 %v1878, 0.0
      %v1890 = vmax.f32 %v1805, 0.0
      %v1891 = vmax.f32 %v1807, 0.0
      %v1892 = vmax.f32 %v1882, 0.0
      %v1893 = vmax.f32 %v1884, 0.0
      %v1894 = vld [vmem:[%s9] sm:$0xff]
      %v1895 = vld [vmem:[%s9 + $0x8] sm:$0xff]
      %v1896 = vld [vmem:[%s9 + $0x10] sm:$0xff]
      %v1897 = vld [vmem:[%s9 + $0x18] sm:$0xff]
      %v1898 = vld [vmem:[%s9 + $0x20] sm:$0xff]
      %v1899 = vld [vmem:[%s9 + $0x28] sm:$0xff]
      %v1900 = vld [vmem:[%s9 + $0x30] sm:$0xff]
      %v1901 = vld [vmem:[%s9 + $0x38] sm:$0xff]
      %v1902 = vld [vmem:[%s9 + $0x40] sm:$0xff]
      %v1903 = vld [vmem:[%s9 + $0x48] sm:$0xff]
      %v1904 = vld [vmem:[%s9 + $0x50] sm:$0xff]
      %v1905 = vld [vmem:[%s9 + $0x58] sm:$0xff]
      %v1906 = vld [vmem:[%s9 + $0x60] sm:$0xff]
      %v1907 = vld [vmem:[%s9 + $0x68] sm:$0xff]
      %v1908 = vld [vmem:[%s9 + $0x70] sm:$0xff]
      %v1909 = vld [vmem:[%s9 + $0x78] sm:$0xff]
      %v1910 = vld [vmem:[%s9 + $0x80] sm:$0xff]
      %v1911 = vld [vmem:[%s9 + $0x88] sm:$0xff]
      %v1912 = vld [vmem:[%s9 + $0x90] sm:$0xff]
      %v1913 = vld [vmem:[%s9 + $0x98] sm:$0xff]
      %v1914 = vld [vmem:[%s9 + $0xa0] sm:$0xff]
      %v1915 = vld [vmem:[%s9 + $0xa8] sm:$0xff]
      %v1916 = vld [vmem:[%s9 + $0xb0] sm:$0xff]
      %v1917 = vld [vmem:[%s9 + $0xb8] sm:$0xff]
      %v1918 = vld [vmem:[%s9 + $0xc0] sm:$0xff]
      %v1919 = vld [vmem:[%s9 + $0xc8] sm:$0xff]
      %v1920 = vld [vmem:[%s9 + $0xd0] sm:$0xff]
      %v1921 = vld [vmem:[%s9 + $0xd8] sm:$0xff]
      %v1922 = vld [vmem:[%s9 + $0xe0] sm:$0xff]
      %v1923 = vld [vmem:[%s9 + $0xe8] sm:$0xff]
      %v1924 = vld [vmem:[%s9 + $0xf0] sm:$0xff]
      %v1925 = vld [vmem:[%s9 + $0xf8] sm:$0xff]
      %v1926 = vld [vmem:[%s9 + $0x100] sm:$0xff]
      %v1927 = vld [vmem:[%s9 + $0x108] sm:$0xff]
      %v1928 = vld [vmem:[%s9 + $0x110] sm:$0xff]
      %v1929 = vld [vmem:[%s9 + $0x118] sm:$0xff]
      %v1930 = vld [vmem:[%s9 + $0x120] sm:$0xff]
      %v1931 = vld [vmem:[%s9 + $0x128] sm:$0xff]
      %v1932 = vld [vmem:[%s9 + $0x130] sm:$0xff]
      %v1933 = vld [vmem:[%s9 + $0x138] sm:$0xff]
      %v1934 = vld [vmem:[%s9 + $0x140] sm:$0xff]
      %v1935 = vld [vmem:[%s9 + $0x148] sm:$0xff]
      %v1936 = vld [vmem:[%s9 + $0x150] sm:$0xff]
      %v1937 = vld [vmem:[%s9 + $0x158] sm:$0xff]
      %v1938 = vld [vmem:[%s9 + $0x160] sm:$0xff]
      %v1939 = vld [vmem:[%s9 + $0x168] sm:$0xff]
      %v1940 = vld [vmem:[%s9 + $0x170] sm:$0xff]
      %v1941 = vld [vmem:[%s9 + $0x178] sm:$0xff]
      %v1942 = vld [vmem:[%s9 + $0x180] sm:$0xff]
      %v1943 = vld [vmem:[%s9 + $0x188] sm:$0xff]
      %v1944 = vld [vmem:[%s9 + $0x190] sm:$0xff]
      %v1945 = vld [vmem:[%s9 + $0x198] sm:$0xff]
      %v1946 = vld [vmem:[%s9 + $0x1a0] sm:$0xff]
      %v1947 = vld [vmem:[%s9 + $0x1a8] sm:$0xff]
      %v1948 = vld [vmem:[%s9 + $0x1b0] sm:$0xff]
      %v1949 = vld [vmem:[%s9 + $0x1b8] sm:$0xff]
      %v1950 = vld [vmem:[%s9 + $0x1c0] sm:$0xff]
      %v1951 = vld [vmem:[%s9 + $0x1c8] sm:$0xff]
      %v1952 = vld [vmem:[%s9 + $0x1d0] sm:$0xff]
      %v1953 = vld [vmem:[%s9 + $0x1d8] sm:$0xff]
      %v1954 = vld [vmem:[%s9 + $0x1e0] sm:$0xff]
      %v1955 = vld [vmem:[%s9 + $0x1e8] sm:$0xff]
      %v1956 = vld [vmem:[%s9 + $0x1f0] sm:$0xff]
      %v1957 = vld [vmem:[%s9 + $0x1f8] sm:$0xff]
      %v1958 = vld [vmem:[%s10] sm:$0x1]
      %v1960 = vlaneseq
      %v1961 = vshrl.u32 %v1960, 7
      %v1962 = vsub.s32 0, %v1961
      %v1963 = vrot.slane %v1958, %v1962
      %1965 = vmatprep.subr.mxu0 0.0
      %1966 = vmatpush1.msra.mxu0 %v1909
      %1967 = vmatprep.subr.mxu0 0.0
      %1968 = vmatpush1.msra.mxu0 %v1908
      %1969 = vmatprep.subr.mxu0 0.0
      %1970 = vmatpush1.msra.mxu0 %v1907
      %1971 = vmatprep.subr.mxu0 0.0
      %1972 = vmatpush1.msra.mxu0 %v1906
      %1973 = vmatprep.subr.mxu0 0.0
      %1974 = vmatpush1.msra.mxu0 %v1905
      %1975 = vmatprep.subr.mxu0 0.0
      %1976 = vmatpush1.msra.mxu0 %v1904
      %1977 = vmatprep.subr.mxu0 0.0
      %1978 = vmatpush1.msra.mxu0 %v1903
      %1979 = vmatprep.subr.mxu0 0.0
      %1980 = vmatpush1.msra.mxu0 %v1902
      %1981 = vmatprep.subr.mxu0 0.0
      %1982 = vmatpush1.msra.mxu0 %v1901
      %1983 = vmatprep.subr.mxu0 0.0
      %1984 = vmatpush1.msra.mxu0 %v1900
      %1985 = vmatprep.subr.mxu0 0.0
      %1986 = vmatpush1.msra.mxu0 %v1899
      %1987 = vmatprep.subr.mxu0 0.0
      %1988 = vmatpush1.msra.mxu0 %v1898
      %1989 = vmatprep.subr.mxu0 0.0
      %1990 = vmatpush1.msra.mxu0 %v1897
      %1991 = vmatprep.subr.mxu0 0.0
      %1992 = vmatpush1.msra.mxu0 %v1896
      %1993 = vmatprep.subr.mxu0 0.0
      %1994 = vmatpush1.msra.mxu0 %v1895
      %1995 = vmatprep.subr.mxu0 0.0
      %1996 = vmatpush1.msra.mxu0 %v1894
      %1997 = vmatprep.subr.mxu0 0.0
      %1998 = vmatpush2.msra.mxu0 %v1925
      %1999 = vmatprep.subr.mxu0 0.0
      %2000 = vmatpush2.msra.mxu0 %v1924
      %2001 = vmatprep.subr.mxu0 0.0
      %2002 = vmatpush2.msra.mxu0 %v1923
      %2003 = vmatprep.subr.mxu0 0.0
      %2004 = vmatpush2.msra.mxu0 %v1922
      %2005 = vmatprep.subr.mxu0 0.0
      %2006 = vmatpush2.msra.mxu0 %v1921
      %2007 = vmatprep.subr.mxu0 0.0
      %2008 = vmatpush2.msra.mxu0 %v1920
      %2009 = vmatprep.subr.mxu0 0.0
      %2010 = vmatpush2.msra.mxu0 %v1919
      %2011 = vmatprep.subr.mxu0 0.0
      %2012 = vmatpush2.msra.mxu0 %v1918
      %2013 = vmatprep.subr.mxu0 0.0
      %2014 = vmatpush2.msra.mxu0 %v1917
      %2015 = vmatprep.subr.mxu0 0.0
      %2016 = vmatpush2.msra.mxu0 %v1916
      %2017 = vmatprep.subr.mxu0 0.0
      %2018 = vmatpush2.msra.mxu0 %v1915
      %2019 = vmatprep.subr.mxu0 0.0
      %2020 = vmatpush2.msra.mxu0 %v1914
      %2021 = vmatprep.subr.mxu0 0.0
      %2022 = vmatpush2.msra.mxu0 %v1913
      %2023 = vmatprep.subr.mxu0 0.0
      %2024 = vmatpush2.msra.mxu0 %v1912
      %2025 = vmatprep.subr.mxu0 0.0
      %2026 = vmatpush2.msra.mxu0 %v1911
      %2027 = vmatprep.subr.mxu0 0.0
      %2028 = vmatpush2.msra.mxu0 %v1910
      %2029 = vmatprep.mubr.f32.mxu0 %v1887
      %2030 = vmatmul.mubr.f32.gmra.mxu0 %v1886
      %v2031 = vpop.f32.mrf.mxu0
      %v2032 = vadd.f32 %v1963, %v2031
      %v2033 = vpop.f32.mrf.mxu0
      %2034 = vmatprep.mubr.f32.mxu0 %v1891
      %2035 = vmatmul.mubr.f32.gmra.mxu0 %v1890
      %v2036 = vpop.f32.mrf.mxu0
      %v2037 = vadd.f32 %v1963, %v2036
      %v2038 = vpop.f32.mrf.mxu0
      %2039 = vdwg.mxu0
      %2040 = vmatprep.subr.mxu0 0.0
      %2041 = vmatpush1.msra.mxu0 %v1941
      %2042 = vmatprep.subr.mxu0 0.0
      %2043 = vmatpush1.msra.mxu0 %v1940
      %2044 = vmatprep.subr.mxu0 0.0
      %2045 = vmatpush1.msra.mxu0 %v1939
      %2046 = vmatprep.subr.mxu0 0.0
      %2047 = vmatpush1.msra.mxu0 %v1938
      %2048 = vmatprep.subr.mxu0 0.0
      %2049 = vmatpush1.msra.mxu0 %v1937
      %2050 = vmatprep.subr.mxu0 0.0
      %2051 = vmatpush1.msra.mxu0 %v1936
      %2052 = vmatprep.subr.mxu0 0.0
      %2053 = vmatpush1.msra.mxu0 %v1935
      %2054 = vmatprep.subr.mxu0 0.0
      %2055 = vmatpush1.msra.mxu0 %v1934
      %2056 = vmatprep.subr.mxu0 0.0
      %2057 = vmatpush1.msra.mxu0 %v1933
      %2058 = vmatprep.subr.mxu0 0.0
      %2059 = vmatpush1.msra.mxu0 %v1932
      %2060 = vmatprep.subr.mxu0 0.0
      %2061 = vmatpush1.msra.mxu0 %v1931
      %2062 = vmatprep.subr.mxu0 0.0
      %2063 = vmatpush1.msra.mxu0 %v1930
      %2064 = vmatprep.subr.mxu0 0.0
      %2065 = vmatpush1.msra.mxu0 %v1929
      %2066 = vmatprep.subr.mxu0 0.0
      %2067 = vmatpush1.msra.mxu0 %v1928
      %2068 = vmatprep.subr.mxu0 0.0
      %2069 = vmatpush1.msra.mxu0 %v1927
      %2070 = vmatprep.subr.mxu0 0.0
      %2071 = vmatpush1.msra.mxu0 %v1926
      %2072 = vmatprep.subr.mxu0 0.0
      %2073 = vmatpush2.msra.mxu0 %v1957
      %2074 = vmatprep.subr.mxu0 0.0
      %2075 = vmatpush2.msra.mxu0 %v1956
      %2076 = vmatprep.subr.mxu0 0.0
      %2077 = vmatpush2.msra.mxu0 %v1955
      %2078 = vmatprep.subr.mxu0 0.0
      %2079 = vmatpush2.msra.mxu0 %v1954
      %2080 = vmatprep.subr.mxu0 0.0
      %2081 = vmatpush2.msra.mxu0 %v1953
      %2082 = vmatprep.subr.mxu0 0.0
      %2083 = vmatpush2.msra.mxu0 %v1952
      %2084 = vmatprep.subr.mxu0 0.0
      %2085 = vmatpush2.msra.mxu0 %v1951
      %2086 = vmatprep.subr.mxu0 0.0
      %2087 = vmatpush2.msra.mxu0 %v1950
      %2088 = vmatprep.subr.mxu0 0.0
      %2089 = vmatpush2.msra.mxu0 %v1949
      %2090 = vmatprep.subr.mxu0 0.0
      %2091 = vmatpush2.msra.mxu0 %v1948
      %2092 = vmatprep.subr.mxu0 0.0
      %2093 = vmatpush2.msra.mxu0 %v1947
      %2094 = vmatprep.subr.mxu0 0.0
      %2095 = vmatpush2.msra.mxu0 %v1946
      %2096 = vmatprep.subr.mxu0 0.0
      %2097 = vmatpush2.msra.mxu0 %v1945
      %2098 = vmatprep.subr.mxu0 0.0
      %2099 = vmatpush2.msra.mxu0 %v1944
      %2100 = vmatprep.subr.mxu0 0.0
      %2101 = vmatpush2.msra.mxu0 %v1943
      %2102 = vmatprep.subr.mxu0 0.0
      %2103 = vmatpush2.msra.mxu0 %v1942
      %2104 = vmatprep.mubr.f32.mxu0 %v1889
      %2105 = vmatmul.mubr.f32.gmra.mxu0 %v1888
      %v2106 = vpop.f32.mrf.mxu0
      %v2107 = vadd.f32 %v2032, %v2106
      %v2108 = vpop.f32.mrf.mxu0
      %2109 = vmatprep.mubr.f32.mxu0 %v1893
      %2110 = vmatmul.mubr.f32.gmra.mxu0 %v1892
      %v2111 = vpop.f32.mrf.mxu0
      %v2112 = vadd.f32 %v2037, %v2111
      %v2113 = vpop.f32.mrf.mxu0
      %2114 = vdwg.mxu0
      %v2115 = vadd.f32 %v2107, %v1644
      %v2116 = vadd.f32 %v2112, %v1645
      %v2117 = vld [vmem:[%s11] sm:$0x1]
      %v2118 = vld [vmem:[%s12] sm:$0x1]
      %2119 = vadd.xlane.f32.xlu0 %v2115
      %v2120 = vpop.xlane.xlu0 %2119
      %2121 = vadd.xlane.f32.xlu0 %v2116
      %v2122 = vpop.xlane.xlu0 %2121
      %v2123 = vmul.f32 %v2120, %v1611
      %v2124 = vmul.f32 %v2122, %v1611
      %v2125 = vsub.f32 %v2115, %v2123
      %v2126 = vsub.f32 %v2116, %v2124
      %v2127 = vmul.f32 %v2125, %v2125
      %v2128 = vmul.f32 %v2126, %v2126
      %2129 = vadd.xlane.f32.xlu0 %v2127
      %v2130 = vpop.xlane.xlu0 %2129
      %2131 = vadd.xlane.f32.xlu0 %v2128
      %v2132 = vpop.xlane.xlu0 %2131
      %v2133 = vmul.f32 %v2130, %v1611
      %v2134 = vmul.f32 %v2132, %v1611
      %v2135 = vadd.f32 %v2133, 1e-05
      %v2136 = vadd.f32 %v2134, 1e-05
      %v2137 = vrsqrt.pop %v2135
      %v2138 = vrsqrt.pop %v2136
      %v2139 = vmul.f32 %v2125, %v2137
      %v2140 = vmul.f32 %v2126, %v2138
      %v2142 = vlaneseq
      %v2143 = vshrl.u32 %v2142, 7
      %v2144 = vsub.s32 0, %v2143
      %v2145 = vrot.slane %v2117, %v2144
      %v2147 = vmul.f32 %v2139, %v2145
      %v2148 = vmul.f32 %v2140, %v2145
      %v2150 = vlaneseq
      %v2151 = vshrl.u32 %v2150, 7
      %v2152 = vsub.s32 0, %v2151
      %v2153 = vrot.slane %v2118, %v2152
      %v2155 = vadd.f32 %v2147, %v2153
      %v2156 = vadd.f32 %v2148, %v2153
      %2157 = vst [vmem:[%s460] sm:$0xff] %v2155
      %2158 = vst [vmem:[%s460 + $0x8] sm:$0xff] %v2156
      %p2159 = scmp.lt.s32.totalorder %s24, 1
      %s2160 = scalar_select %p2159, %s24, 1
      %s2161 = smul.addr %s2160, 2
      %s2162 = smul.addr %s2161, 8
      %s2163 = scalar_lea.vmem %s13, %s2162
      // Predicated region
      $region73: #{gpt2_forward.4} parent=71 // pred_check
        %p2164 = pneg %p325
      $region74: #{gpt2_forward.4} parent=71 // pred_check_branch
        %2166 = sbr.rel (%p2164) target = $region76
      $region75: #{gpt2_forward.4} parent=71 // pred_region
        _
      $region76: #{gpt2_forward.4} parent=71 // pred_fallthru
        _
    $region72: #{gpt2_forward.4} parent=5 // pred_fallthru
      _
    %p2167 = scmp.le.s32.totalorder 2, %s19
    // Predicated region
    $region77: #{gpt2_forward.4} parent=5 // pred_check
      %p2168 = pneg %p2167
    $region78: #{gpt2_forward.4} parent=5 // pred_check_branch
      %2170 = sbr.rel (%p2168) target = $region80
    $region79: #{gpt2_forward.4} parent=5 // pred_region
      %s2171 = ssub.s32 %s19, 2
      // Predicated region
      $region81: #{gpt2_forward.4} parent=79 // pred_check
        %p2172 = pneg %p331
      $region82: #{gpt2_forward.4} parent=79 // pred_check_branch
        %2174 = sbr.rel (%p2172) target = $region84
      $region83: #{gpt2_forward.4} parent=79 // pred_region
        %p2175 = scmp.lt.s32.totalorder %s25, 1
        %s2176 = scalar_select %p2175, %s25, 1
        %s2177 = smul.addr %s2176, 2
        %s2178 = smul.addr %s2177, 8
        %s2179 = scalar_lea.vmem %s13, %s2178
      $region84: #{gpt2_forward.4} parent=79 // pred_fallthru
        _
    $region80: #{gpt2_forward.4} parent=5 // pred_fallthru
      _
  $region6: #{gpt2_forward.4} parent=0 // loop_footer
    %s23 = sadd.s32 1, %s19
  $region7: #{gpt2_forward.4} parent=0 // loop_footer_branch
    %18 = sbr.rel target = $region3
  $region8: #{gpt2_forward.4} parent=0 // loop_exit
    _

// kernel: gpt2_forward.3
$region0: #{gpt2_forward.3}
  #allocation0 [shape = 'u32[]', space=smem, size = 0x4, offset = 0x4, fixed_abs, tag = 'smem constant byte address 0x4 - core index']
  #allocation1 [shape = 'u32[144,128]{1,0:T(1,128)}', space=vmem, size = 0x12000, scoped, tag = 'internal scratch']
  %s0 = inlined_call_operand.vmem [shape: f32[2,16,128], index: 0, kind: input, shape index: {}]
  %s1 = inlined_call_operand.vmem [shape: s8[2,1,16,16], index: 1, kind: input, shape index: {}]
  %s2 = inlined_call_operand.vmem [shape: f32[128,384], index: 2, kind: input, shape index: {}]
  %s3 = inlined_call_operand.hbm [shape: f32[128,128], index: 3, kind: input, shape index: {}]
  %s4 = inlined_call_operand.vmem [shape: f32[1,128], index: 4, kind: input, shape index: {}]
  %s5 = inlined_call_operand.vmem [shape: f32[1,128], index: 5, kind: input, shape index: {}]
  %s6 = inlined_call_operand.vmem [shape: f32[1,128], index: 6, kind: input, shape index: {}]
  %s7 = inlined_call_operand.hbm [shape: f32[128,512], index: 7, kind: input, shape index: {}]
  %s8 = inlined_call_operand.vmem [shape: f32[1,512], index: 8, kind: input, shape index: {}]
  %s9 = inlined_call_operand.hbm [shape: f32[512,128], index: 9, kind: input, shape index: {}]
  %s10 = inlined_call_operand.vmem [shape: f32[1,128], index: 10, kind: input, shape index: {}]
  %s11 = inlined_call_operand.vmem [shape: f32[1,128], index: 11, kind: input, shape index: {}]
  %s12 = inlined_call_operand.vmem [shape: f32[1,128], index: 12, kind: input, shape index: {}]
  %s13 = inlined_call_operand.vmem [shape: f32[2,16,128], index: 13, kind: output, shape index: {}]
  %s14 = sld [smem:[#allocation0]]
  $region97: #{gpt2_forward.3} parent=0
    _
  %s16 = ssub.s32 1, %s14
  %s17 = scalar_select 0, %s16, %s14
  $region1: #{gpt2_forward.3} parent=0
    #allocation2 [shape = 'u8[65536]{0}', space=vmem, size = 0x10000, scoped, tag = 'input window, operand 3, single buffered']
    #allocation3 [shape = 's32[2]{0}', space=sflag, size = 0x8, scoped, tag = 'scoped memory for gpt2_forward.3']
    #allocation4 [shape = 'u8[262144]{0}', space=vmem, size = 0x40000, scoped, tag = 'input window, operand 7, single buffered']
    #allocation5 [shape = 's32[1]{0}', space=sflag, size = 0x4, scoped, tag = 'scoped memory for gpt2_forward.3']
    #allocation6 [shape = 'u8[262144]{0}', space=vmem, size = 0x40000, scoped, tag = 'input window, operand 9, single buffered']
    %18 = vsyncpa [#allocation3], 0
    %19 = vsyncpa [#allocation5], 0
    loop: start=0, step=1, limit=4
    $region2: #{gpt2_forward.3} parent=1 // loop_pre_header
      _
    $region3: #{gpt2_forward.3} parent=1 // loop_header
      %s21 = sphi 0, %s25
      %p22 = scmp.ge.s32.totalorder %s21, 4
      %s31 = sphi 0, %s33
      %s34 = sphi 0, %s31
      %s35 = sphi 0, %s34
      %s51 = sphi 0, %s35
      %s57 = sphi 0, %s59
      %s60 = sphi 0, %s57
      %s61 = sphi 0, %s60
      %s77 = sphi 0, %s61
      %s81 = sphi 0, %s81
      %s83 = sphi 0, %s81
      %s84 = sphi 0, %s83
      %s98 = sphi 0, %s84
      %s102 = sphi 0, %s102
      %s104 = sphi 0, %s102
      %s105 = sphi 0, %s104
      %s119 = sphi 0, %s105
      %s123 = sphi 0, %s123
      %s125 = sphi 0, %s123
      %s126 = sphi 0, %s125
      %s140 = sphi 0, %s126
      %s144 = sphi 0, %s144
      %s146 = sphi 0, %s144
      %s147 = sphi 0, %s146
      %s161 = sphi 0, %s147
      %s165 = sphi 0, %s165
      %s167 = sphi 0, %s165
      %s168 = sphi 0, %s167
      %s182 = sphi 0, %s168
      %s186 = sphi 0, %s186
      %s188 = sphi 0, %s186
      %s189 = sphi 0, %s188
      %s203 = sphi 0, %s189
      %s207 = sphi 0, %s207
      %s209 = sphi 0, %s207
      %s210 = sphi 0, %s209
      %s224 = sphi 0, %s210
      %s228 = sphi 0, %s228
      %s230 = sphi 0, %s228
      %s231 = sphi 0, %s230
      %s245 = sphi 0, %s231
      %s249 = sphi 0, %s249
      %s251 = sphi 0, %s249
      %s252 = sphi 0, %s251
      %s266 = sphi 0, %s252
      %s270 = sphi 0, %s270
      %s272 = sphi 0, %s270
      %s273 = sphi 0, %s272
      %s287 = sphi 0, %s273
      %s291 = sphi 0, %s291
      %s293 = sphi 0, %s291
      %s294 = sphi 0, %s293
      %s308 = sphi 0, %s294
      %s314 = sphi 0, %s316
      %s317 = sphi 0, %s314
      %s318 = sphi 0, %s317
      %s334 = sphi 0, %s318
    $region4: #{gpt2_forward.3} parent=1 // loop_header_branch
      %24 = sbr.rel (%p22) target = $region8
    $region5: #{gpt2_forward.3} parent=1 // loop_body
      %s26 = ssub.s32 %s21, 1
      %s27 = ssub.s32 %s21, 2
      %s28 = sadd.s32 %s21, 1
      %s29 = ssub.s32 %s21, %s28
      %p30 = scmp.eq.s32.totalorder %s29, 0
      %s32 = sadd.s32 %s31, 1
      %s33 = scalar_select %p30, %s31, %s32
      %p36 = pneg %p30
      %p37 = scmp.eq.s32.totalorder %s21, 1
      %p38 = por %p36, %p37
      %p39 = scmp.ne.s32.totalorder %s31, %s34
      %p40 = scmp.eq.s32.totalorder %s21, 0
      %p41 = por %p39, %p40
      %p42 = scmp.ne.s32.totalorder %s31, %s34
      %p43 = scmp.eq.s32.totalorder %s26, 1
      %p44 = por %p42, %p43
      %p45 = scmp.ne.s32.totalorder %s34, %s35
      %p46 = scmp.eq.s32.totalorder %s26, 0
      %p47 = por %p45, %p46
      %p48 = scmp.ne.s32.totalorder %s34, %s35
      %p49 = scmp.eq.s32.totalorder %s27, 1
      %p50 = por %p48, %p49
      %p52 = scmp.ne.s32.totalorder %s35, %s51
      %p53 = scmp.eq.s32.totalorder %s27, 0
      %p54 = por %p52, %p53
      %s55 = ssub.s32 %s21, %s28
      %p56 = scmp.eq.s32.totalorder %s55, 0
      %s58 = sadd.s32 %s57, 1
      %s59 = scalar_select %p56, %s57, %s58
      %p62 = pneg %p56
      %p63 = scmp.eq.s32.totalorder %s21, 1
      %p64 = por %p62, %p63
      %p65 = scmp.ne.s32.totalorder %s57, %s60
      %p66 = scmp.eq.s32.totalorder %s21, 0
      %p67 = por %p65, %p66
      %p68 = scmp.ne.s32.totalorder %s57, %s60
      %p69 = scmp.eq.s32.totalorder %s26, 1
      %p70 = por %p68, %p69
      %p71 = scmp.ne.s32.totalorder %s60, %s61
      %p72 = scmp.eq.s32.totalorder %s26, 0
      %p73 = por %p71, %p72
      %p74 = scmp.ne.s32.totalorder %s60, %s61
      %p75 = scmp.eq.s32.totalorder %s27, 1
      %p76 = por %p74, %p75
      %p78 = scmp.ne.s32.totalorder %s61, %s77
      %p79 = scmp.eq.s32.totalorder %s27, 0
      %p80 = por %p78, %p79
      %s82 = sadd.s32 %s81, 1
      %p85 = scmp.eq.s32.totalorder %s21, 1
      %p86 = scmp.ne.s32.totalorder %s81, %s83
      %p87 = scmp.eq.s32.totalorder %s21, 0
      %p88 = por %p86, %p87
      %p89 = scmp.ne.s32.totalorder %s81, %s83
      %p90 = scmp.eq.s32.totalorder %s26, 1
      %p91 = por %p89, %p90
      %p92 = scmp.ne.s32.totalorder %s83, %s84
      %p93 = scmp.eq.s32.totalorder %s26, 0
      %p94 = por %p92, %p93
      %p95 = scmp.ne.s32.totalorder %s83, %s84
      %p96 = scmp.eq.s32.totalorder %s27, 1
      %p97 = por %p95, %p96
      %p99 = scmp.ne.s32.totalorder %s84, %s98
      %p100 = scmp.eq.s32.totalorder %s27, 0
      %p101 = por %p99, %p100
      %s103 = sadd.s32 %s102, 1
      %p106 = scmp.eq.s32.totalorder %s21, 1
      %p107 = scmp.ne.s32.totalorder %s102, %s104
      %p108 = scmp.eq.s32.totalorder %s21, 0
      %p109 = por %p107, %p108
      %p110 = scmp.ne.s32.totalorder %s102, %s104
      %p111 = scmp.eq.s32.totalorder %s26, 1
      %p112 = por %p110, %p111
      %p113 = scmp.ne.s32.totalorder %s104, %s105
      %p114 = scmp.eq.s32.totalorder %s26, 0
      %p115 = por %p113, %p114
      %p116 = scmp.ne.s32.totalorder %s104, %s105
      %p117 = scmp.eq.s32.totalorder %s27, 1
      %p118 = por %p116, %p117
      %p120 = scmp.ne.s32.totalorder %s105, %s119
      %p121 = scmp.eq.s32.totalorder %s27, 0
      %p122 = por %p120, %p121
      %s124 = sadd.s32 %s123, 1
      %p127 = scmp.eq.s32.totalorder %s21, 1
      %p128 = scmp.ne.s32.totalorder %s123, %s125
      %p129 = scmp.eq.s32.totalorder %s21, 0
      %p130 = por %p128, %p129
      %p131 = scmp.ne.s32.totalorder %s123, %s125
      %p132 = scmp.eq.s32.totalorder %s26, 1
      %p133 = por %p131, %p132
      %p134 = scmp.ne.s32.totalorder %s125, %s126
      %p135 = scmp.eq.s32.totalorder %s26, 0
      %p136 = por %p134, %p135
      %p137 = scmp.ne.s32.totalorder %s125, %s126
      %p138 = scmp.eq.s32.totalorder %s27, 1
      %p139 = por %p137, %p138
      %p141 = scmp.ne.s32.totalorder %s126, %s140
      %p142 = scmp.eq.s32.totalorder %s27, 0
      %p143 = por %p141, %p142
      %s145 = sadd.s32 %s144, 1
      %p148 = scmp.eq.s32.totalorder %s21, 1
      %p149 = scmp.ne.s32.totalorder %s144, %s146
      %p150 = scmp.eq.s32.totalorder %s21, 0
      %p151 = por %p149, %p150
      %p152 = scmp.ne.s32.totalorder %s144, %s146
      %p153 = scmp.eq.s32.totalorder %s26, 1
      %p154 = por %p152, %p153
      %p155 = scmp.ne.s32.totalorder %s146, %s147
      %p156 = scmp.eq.s32.totalorder %s26, 0
      %p157 = por %p155, %p156
      %p158 = scmp.ne.s32.totalorder %s146, %s147
      %p159 = scmp.eq.s32.totalorder %s27, 1
      %p160 = por %p158, %p159
      %p162 = scmp.ne.s32.totalorder %s147, %s161
      %p163 = scmp.eq.s32.totalorder %s27, 0
      %p164 = por %p162, %p163
      %s166 = sadd.s32 %s165, 1
      %p169 = scmp.eq.s32.totalorder %s21, 1
      %p170 = scmp.ne.s32.totalorder %s165, %s167
      %p171 = scmp.eq.s32.totalorder %s21, 0
      %p172 = por %p170, %p171
      %p173 = scmp.ne.s32.totalorder %s165, %s167
      %p174 = scmp.eq.s32.totalorder %s26, 1
      %p175 = por %p173, %p174
      %p176 = scmp.ne.s32.totalorder %s167, %s168
      %p177 = scmp.eq.s32.totalorder %s26, 0
      %p178 = por %p176, %p177
      %p179 = scmp.ne.s32.totalorder %s167, %s168
      %p180 = scmp.eq.s32.totalorder %s27, 1
      %p181 = por %p179, %p180
      %p183 = scmp.ne.s32.totalorder %s168, %s182
      %p184 = scmp.eq.s32.totalorder %s27, 0
      %p185 = por %p183, %p184
      %s187 = sadd.s32 %s186, 1
      %p190 = scmp.eq.s32.totalorder %s21, 1
      %p191 = scmp.ne.s32.totalorder %s186, %s188
      %p192 = scmp.eq.s32.totalorder %s21, 0
      %p193 = por %p191, %p192
      %p194 = scmp.ne.s32.totalorder %s186, %s188
      %p195 = scmp.eq.s32.totalorder %s26, 1
      %p196 = por %p194, %p195
      %p197 = scmp.ne.s32.totalorder %s188, %s189
      %p198 = scmp.eq.s32.totalorder %s26, 0
      %p199 = por %p197, %p198
      %p200 = scmp.ne.s32.totalorder %s188, %s189
      %p201 = scmp.eq.s32.totalorder %s27, 1
      %p202 = por %p200, %p201
      %p204 = scmp.ne.s32.totalorder %s189, %s203
      %p205 = scmp.eq.s32.totalorder %s27, 0
      %p206 = por %p204, %p205
      %s208 = sadd.s32 %s207, 1
      %p211 = scmp.eq.s32.totalorder %s21, 1
      %p212 = scmp.ne.s32.totalorder %s207, %s209
      %p213 = scmp.eq.s32.totalorder %s21, 0
      %p214 = por %p212, %p213
      %p215 = scmp.ne.s32.totalorder %s207, %s209
      %p216 = scmp.eq.s32.totalorder %s26, 1
      %p217 = por %p215, %p216
      %p218 = scmp.ne.s32.totalorder %s209, %s210
      %p219 = scmp.eq.s32.totalorder %s26, 0
      %p220 = por %p218, %p219
      %p221 = scmp.ne.s32.totalorder %s209, %s210
      %p222 = scmp.eq.s32.totalorder %s27, 1
      %p223 = por %p221, %p222
      %p225 = scmp.ne.s32.totalorder %s210, %s224
      %p226 = scmp.eq.s32.totalorder %s27, 0
      %p227 = por %p225, %p226
      %s229 = sadd.s32 %s228, 1
      %p232 = scmp.eq.s32.totalorder %s21, 1
      %p233 = scmp.ne.s32.totalorder %s228, %s230
      %p234 = scmp.eq.s32.totalorder %s21, 0
      %p235 = por %p233, %p234
      %p236 = scmp.ne.s32.totalorder %s228, %s230
      %p237 = scmp.eq.s32.totalorder %s26, 1
      %p238 = por %p236, %p237
      %p239 = scmp.ne.s32.totalorder %s230, %s231
      %p240 = scmp.eq.s32.totalorder %s26, 0
      %p241 = por %p239, %p240
      %p242 = scmp.ne.s32.totalorder %s230, %s231
      %p243 = scmp.eq.s32.totalorder %s27, 1
      %p244 = por %p242, %p243
      %p246 = scmp.ne.s32.totalorder %s231, %s245
      %p247 = scmp.eq.s32.totalorder %s27, 0
      %p248 = por %p246, %p247
      %s250 = sadd.s32 %s249, 1
      %p253 = scmp.eq.s32.totalorder %s21, 1
      %p254 = scmp.ne.s32.totalorder %s249, %s251
      %p255 = scmp.eq.s32.totalorder %s21, 0
      %p256 = por %p254, %p255
      %p257 = scmp.ne.s32.totalorder %s249, %s251
      %p258 = scmp.eq.s32.totalorder %s26, 1
      %p259 = por %p257, %p258
      %p260 = scmp.ne.s32.totalorder %s251, %s252
      %p261 = scmp.eq.s32.totalorder %s26, 0
      %p262 = por %p260, %p261
      %p263 = scmp.ne.s32.totalorder %s251, %s252
      %p264 = scmp.eq.s32.totalorder %s27, 1
      %p265 = por %p263, %p264
      %p267 = scmp.ne.s32.totalorder %s252, %s266
      %p268 = scmp.eq.s32.totalorder %s27, 0
      %p269 = por %p267, %p268
      %s271 = sadd.s32 %s270, 1
      %p274 = scmp.eq.s32.totalorder %s21, 1
      %p275 = scmp.ne.s32.totalorder %s270, %s272
      %p276 = scmp.eq.s32.totalorder %s21, 0
      %p277 = por %p275, %p276
      %p278 = scmp.ne.s32.totalorder %s270, %s272
      %p279 = scmp.eq.s32.totalorder %s26, 1
      %p280 = por %p278, %p279
      %p281 = scmp.ne.s32.totalorder %s272, %s273
      %p282 = scmp.eq.s32.totalorder %s26, 0
      %p283 = por %p281, %p282
      %p284 = scmp.ne.s32.totalorder %s272, %s273
      %p285 = scmp.eq.s32.totalorder %s27, 1
      %p286 = por %p284, %p285
      %p288 = scmp.ne.s32.totalorder %s273, %s287
      %p289 = scmp.eq.s32.totalorder %s27, 0
      %p290 = por %p288, %p289
      %s292 = sadd.s32 %s291, 1
      %p295 = scmp.eq.s32.totalorder %s21, 1
      %p296 = scmp.ne.s32.totalorder %s291, %s293
      %p297 = scmp.eq.s32.totalorder %s21, 0
      %p298 = por %p296, %p297
      %p299 = scmp.ne.s32.totalorder %s291, %s293
      %p300 = scmp.eq.s32.totalorder %s26, 1
      %p301 = por %p299, %p300
      %p302 = scmp.ne.s32.totalorder %s293, %s294
      %p303 = scmp.eq.s32.totalorder %s26, 0
      %p304 = por %p302, %p303
      %p305 = scmp.ne.s32.totalorder %s293, %s294
      %p306 = scmp.eq.s32.totalorder %s27, 1
      %p307 = por %p305, %p306
      %p309 = scmp.ne.s32.totalorder %s294, %s308
      %p310 = scmp.eq.s32.totalorder %s27, 0
      %p311 = por %p309, %p310
      %s312 = ssub.s32 %s21, %s28
      %p313 = scmp.eq.s32.totalorder %s312, 0
      %s315 = sadd.s32 %s314, 1
      %s316 = scalar_select %p313, %s314, %s315
      %p319 = pneg %p313
      %p320 = scmp.eq.s32.totalorder %s21, 1
      %p321 = por %p319, %p320
      %p322 = scmp.ne.s32.totalorder %s314, %s317
      %p323 = scmp.eq.s32.totalorder %s21, 0
      %p324 = por %p322, %p323
      %p325 = scmp.ne.s32.totalorder %s314, %s317
      %p326 = scmp.eq.s32.totalorder %s26, 1
      %p327 = por %p325, %p326
      %p328 = scmp.ne.s32.totalorder %s317, %s318
      %p329 = scmp.eq.s32.totalorder %s26, 0
      %p330 = por %p328, %p329
      %p331 = scmp.ne.s32.totalorder %s317, %s318
      %p332 = scmp.eq.s32.totalorder %s27, 1
      %p333 = por %p331, %p332
      %p335 = scmp.ne.s32.totalorder %s318, %s334
      %p336 = scmp.eq.s32.totalorder %s27, 0
      %p337 = por %p335, %p336
      %p338 = scmp.le.s32.totalorder 1, %s21
      %p339 = scmp.lt.s32.totalorder %s21, 3
      %p340 = pnand %p338, %p339
      %p341 = pneg %p340
      // Predicated region
      $region9: #{gpt2_forward.3} parent=5 // pred_check
        _
      $region10: #{gpt2_forward.3} parent=5 // pred_check_branch
        %343 = sbr.rel (%p340) target = $region12
      $region11: #{gpt2_forward.3} parent=5 // pred_region
        %s344 = ssub.s32 %s21, 1
        // Predicated region
        $region13: #{gpt2_forward.3} parent=11 // pred_check
          %p345 = pneg %p94
        $region14: #{gpt2_forward.3} parent=11 // pred_check_branch
          %347 = sbr.rel (%p345) target = $region16
        $region15: #{gpt2_forward.3} parent=11 // pred_region
          _
        $region16: #{gpt2_forward.3} parent=11 // pred_fallthru
          _
        // Predicated region
        $region17: #{gpt2_forward.3} parent=11 // pred_check
          %p348 = pneg %p115
        $region18: #{gpt2_forward.3} parent=11 // pred_check_branch
          %350 = sbr.rel (%p348) target = $region20
        $region19: #{gpt2_forward.3} parent=11 // pred_region
          %s352 = ssub.s32 2048, 2048
          %353 = vsyncadd [#allocation3], %s352
          %s354 = sshll.u32 [#allocation2], 4
          %s355 = int_to_ptr.vmem [resolvable:$true] %s354
          %360 = dma.hbm_to_vmem [thread:$0]  %s3, 2048, %s355, [#allocation3], 128, 128, 8
        $region20: #{gpt2_forward.3} parent=11 // pred_fallthru
          _
        // Predicated region
        $region21: #{gpt2_forward.3} parent=11 // pred_check
          %p361 = pneg %p136
        $region22: #{gpt2_forward.3} parent=11 // pred_check_branch
          %363 = sbr.rel (%p361) target = $region24
        $region23: #{gpt2_forward.3} parent=11 // pred_region
          _
        $region24: #{gpt2_forward.3} parent=11 // pred_fallthru
          _
        // Predicated region
        $region25: #{gpt2_forward.3} parent=11 // pred_check
          %p364 = pneg %p157
        $region26: #{gpt2_forward.3} parent=11 // pred_check_branch
          %366 = sbr.rel (%p364) target = $region28
        $region27: #{gpt2_forward.3} parent=11 // pred_region
          _
        $region28: #{gpt2_forward.3} parent=11 // pred_fallthru
          _
        // Predicated region
        $region29: #{gpt2_forward.3} parent=11 // pred_check
          %p367 = pneg %p178
        $region30: #{gpt2_forward.3} parent=11 // pred_check_branch
          %369 = sbr.rel (%p367) target = $region32
        $region31: #{gpt2_forward.3} parent=11 // pred_region
          _
        $region32: #{gpt2_forward.3} parent=11 // pred_fallthru
          _
        // Predicated region
        $region33: #{gpt2_forward.3} parent=11 // pred_check
          %p370 = pneg %p199
        $region34: #{gpt2_forward.3} parent=11 // pred_check_branch
          %372 = sbr.rel (%p370) target = $region36
        $region35: #{gpt2_forward.3} parent=11 // pred_region
          %s374 = ssub.s32 8192, 8192
          %375 = vsyncadd [#allocation5], %s374
          %s376 = sshll.u32 [#allocation4], 4
          %s377 = int_to_ptr.vmem [resolvable:$true] %s376
          %382 = dma.hbm_to_vmem [thread:$0]  %s7, 8192, %s377, [#allocation5], 512, 512, 32
        $region36: #{gpt2_forward.3} parent=11 // pred_fallthru
          _
        // Predicated region
        $region37: #{gpt2_forward.3} parent=11 // pred_check
          %p383 = pneg %p220
        $region38: #{gpt2_forward.3} parent=11 // pred_check_branch
          %385 = sbr.rel (%p383) target = $region40
        $region39: #{gpt2_forward.3} parent=11 // pred_region
          _
        $region40: #{gpt2_forward.3} parent=11 // pred_fallthru
          _
        // Predicated region
        $region41: #{gpt2_forward.3} parent=11 // pred_check
          %p386 = pneg %p241
        $region42: #{gpt2_forward.3} parent=11 // pred_check_branch
          %388 = sbr.rel (%p386) target = $region44
        $region43: #{gpt2_forward.3} parent=11 // pred_region
          %s390 = ssub.s32 8192, 8192
          %391 = vsyncadd [#allocation5], %s390
          %s392 = sshll.u32 [#allocation6], 4
          %s393 = int_to_ptr.vmem [resolvable:$true] %s392
          %398 = dma.hbm_to_vmem [thread:$0]  %s9, 8192, %s393, [#allocation5], 128, 128, 8
        $region44: #{gpt2_forward.3} parent=11 // pred_fallthru
          _
        // Predicated region
        $region45: #{gpt2_forward.3} parent=11 // pred_check
          %p399 = pneg %p262
        $region46: #{gpt2_forward.3} parent=11 // pred_check_branch
          %401 = sbr.rel (%p399) target = $region48
        $region47: #{gpt2_forward.3} parent=11 // pred_region
          _
        $region48: #{gpt2_forward.3} parent=11 // pred_fallthru
          _
        // Predicated region
        $region49: #{gpt2_forward.3} parent=11 // pred_check
          %p402 = pneg %p283
        $region50: #{gpt2_forward.3} parent=11 // pred_check_branch
          %404 = sbr.rel (%p402) target = $region52
        $region51: #{gpt2_forward.3} parent=11 // pred_region
          _
        $region52: #{gpt2_forward.3} parent=11 // pred_fallthru
          _
        // Predicated region
        $region53: #{gpt2_forward.3} parent=11 // pred_check
          %p405 = pneg %p304
        $region54: #{gpt2_forward.3} parent=11 // pred_check_branch
          %407 = sbr.rel (%p405) target = $region56
        $region55: #{gpt2_forward.3} parent=11 // pred_region
          _
        $region56: #{gpt2_forward.3} parent=11 // pred_fallthru
          _
      $region12: #{gpt2_forward.3} parent=5 // pred_fallthru
        _
      %p408 = scmp.lt.s32.totalorder %s21, 2
      // Predicated region
      $region57: #{gpt2_forward.3} parent=5 // pred_check
        %p409 = pneg %p408
      $region58: #{gpt2_forward.3} parent=5 // pred_check_branch
        %411 = sbr.rel (%p409) target = $region60
      $region59: #{gpt2_forward.3} parent=5 // pred_region
        // Predicated region
        $region61: #{gpt2_forward.3} parent=59 // pred_check
          %p412 = pneg %p41
        $region62: #{gpt2_forward.3} parent=59 // pred_check_branch
          %414 = sbr.rel (%p412) target = $region64
        $region63: #{gpt2_forward.3} parent=59 // pred_region
          %p415 = scmp.lt.s32.totalorder %s21, 1
          %s416 = scalar_select %p415, %s21, 1
          %s417 = smul.addr %s416, 2
          %s418 = smul.addr %s417, 8
          %s419 = scalar_lea.vmem %s0, %s418
        $region64: #{gpt2_forward.3} parent=59 // pred_fallthru
          _
        // Predicated region
        $region65: #{gpt2_forward.3} parent=59 // pred_check
          %p420 = pneg %p67
        $region66: #{gpt2_forward.3} parent=59 // pred_check_branch
          %422 = sbr.rel (%p420) target = $region68
        $region67: #{gpt2_forward.3} parent=59 // pred_region
          %p423 = scmp.lt.s32.totalorder %s21, 1
          %s424 = scalar_select %p423, %s21, 1
          %s425 = smul.addr %s424, 2
          %s426 = smul.addr %s425, 2
          %s427 = scalar_lea.vmem %s1, %s426
        $region68: #{gpt2_forward.3} parent=59 // pred_fallthru
          _
      $region60: #{gpt2_forward.3} parent=5 // pred_fallthru
        _
      %p428 = scmp.le.s32.totalorder 1, %s21
      %p429 = scmp.lt.s32.totalorder %s21, 3
      %p430 = pnand %p428, %p429
      %p431 = pneg %p430
      // Predicated region
      $region69: #{gpt2_forward.3} parent=5 // pred_check
        _
      $region70: #{gpt2_forward.3} parent=5 // pred_check_branch
        %433 = sbr.rel (%p430) target = $region72
      $region71: #{gpt2_forward.3} parent=5 // pred_region
        %s434 = ssub.s32 %s21, 1
        // Predicated region
        $region73: #{gpt2_forward.3} parent=71 // pred_check
          %p435 = pneg %p115
        $region74: #{gpt2_forward.3} parent=71 // pred_check_branch
          %437 = sbr.rel (%p435) target = $region76
        $region75: #{gpt2_forward.3} parent=71 // pred_region
          %438 = dma.done [#allocation3], 2048
        $region76: #{gpt2_forward.3} parent=71 // pred_fallthru
          _
        // Predicated region
        $region77: #{gpt2_forward.3} parent=71 // pred_check
          %p439 = pneg %p199
        $region78: #{gpt2_forward.3} parent=71 // pred_check_branch
          %441 = sbr.rel (%p439) target = $region80
        $region79: #{gpt2_forward.3} parent=71 // pred_region
          %442 = dma.done [#allocation5], 8192
        $region80: #{gpt2_forward.3} parent=71 // pred_fallthru
          _
        // Predicated region
        $region81: #{gpt2_forward.3} parent=71 // pred_check
          %p443 = pneg %p241
        $region82: #{gpt2_forward.3} parent=71 // pred_check_branch
          %445 = sbr.rel (%p443) target = $region84
        $region83: #{gpt2_forward.3} parent=71 // pred_region
          %446 = dma.done [#allocation5], 8192
        $region84: #{gpt2_forward.3} parent=71 // pred_fallthru
          _
        %p447 = scmp.lt.s32.totalorder %s26, 1
        %s448 = scalar_select %p447, %s26, 1
        %s449 = smul.addr %s448, 2
        %s450 = smul.addr %s449, 8
        %s451 = scalar_lea.vmem %s0, %s450
        %p452 = pneg %p47
        %p453 = pneg %p44
        %p454 = scmp.lt.s32.totalorder %s26, 1
        %s455 = scalar_select %p454, %s26, 1
        %s456 = smul.addr %s455, 2
        %s457 = smul.addr %s456, 2
        %s458 = scalar_lea.vmem %s1, %s457
        %p459 = pneg %p73
        %p460 = pneg %p70
        %p461 = pneg %p94
        %p462 = pneg %p91
        %p463 = pneg %p115
        %p464 = pneg %p112
        %p465 = pneg %p136
        %p466 = pneg %p133
        %p467 = pneg %p157
        %p468 = pneg %p154
        %p469 = pneg %p178
        %p470 = pneg %p175
        %p471 = pneg %p199
        %p472 = pneg %p196
        %p473 = pneg %p220
        %p474 = pneg %p217
        %p475 = pneg %p241
        %p476 = pneg %p238
        %p477 = pneg %p262
        %p478 = pneg %p259
        %p479 = pneg %p283
        %p480 = pneg %p280
        %p481 = pneg %p304
        %p482 = pneg %p301
        %p483 = pneg %p330
        %p484 = pneg %p327
        %p485 = scmp.lt.s32.totalorder %s26, 1
        %s486 = scalar_select %p485, %s26, 1
        %s487 = smul.addr %s486, 2
        %s488 = smul.addr %s487, 8
        %s489 = scalar_lea.vmem %s13, %s488
        %p490 = scmp.lt.s32.totalorder %s26, 1
        %s491 = scalar_select %p490, %s26, 1
        %s492 = smul.addr %s491, 2
        %s493 = smul.addr %s492, 8
        %s494 = scalar_lea.vmem %s0, %s493
        %p495 = scmp.lt.s32.totalorder %s26, 1
        %s496 = scalar_select %p495, %s26, 1
        %s497 = smul.addr %s496, 2
        %s498 = smul.addr %s497, 2
        %s499 = scalar_lea.vmem %s1, %s498
        %p500 = scmp.lt.s32.totalorder %s26, 1
        %s501 = scalar_select %p500, %s26, 1
        %s502 = smul.addr %s501, 2
        %s503 = smul.addr %s502, 8
        %s504 = scalar_lea.vmem %s13, %s503
        %v505 = vld [vmem:[%s494] sm:$0xff]
        %v506 = vld [vmem:[%s494 + $0x8] sm:$0xff]
        %v507 = vld [vmem:[%s2] sm:$0xff]
        %v508 = vld [vmem:[%s2 + $0x8] sm:$0xff]
        %v509 = vld [vmem:[%s2 + $0x10] sm:$0xff]
        %v510 = vld [vmem:[%s2 + $0x18] sm:$0xff]
        %v511 = vld [vmem:[%s2 + $0x20] sm:$0xff]
        %v512 = vld [vmem:[%s2 + $0x28] sm:$0xff]
        %v513 = vld [vmem:[%s2 + $0x30] sm:$0xff]
        %v514 = vld [vmem:[%s2 + $0x38] sm:$0xff]
        %v515 = vld [vmem:[%s2 + $0x40] sm:$0xff]
        %v516 = vld [vmem:[%s2 + $0x48] sm:$0xff]
        %v517 = vld [vmem:[%s2 + $0x50] sm:$0xff]
        %v518 = vld [vmem:[%s2 + $0x58] sm:$0xff]
        %v519 = vld [vmem:[%s2 + $0x60] sm:$0xff]
        %v520 = vld [vmem:[%s2 + $0x68] sm:$0xff]
        %v521 = vld [vmem:[%s2 + $0x70] sm:$0xff]
        %v522 = vld [vmem:[%s2 + $0x78] sm:$0xff]
        %v523 = vld [vmem:[%s2 + $0x80] sm:$0xff]
        %v524 = vld [vmem:[%s2 + $0x88] sm:$0xff]
        %v525 = vld [vmem:[%s2 + $0x90] sm:$0xff]
        %v526 = vld [vmem:[%s2 + $0x98] sm:$0xff]
        %v527 = vld [vmem:[%s2 + $0xa0] sm:$0xff]
        %v528 = vld [vmem:[%s2 + $0xa8] sm:$0xff]
        %v529 = vld [vmem:[%s2 + $0xb0] sm:$0xff]
        %v530 = vld [vmem:[%s2 + $0xb8] sm:$0xff]
        %v531 = vld [vmem:[%s2 + $0xc0] sm:$0xff]
        %v532 = vld [vmem:[%s2 + $0xc8] sm:$0xff]
        %v533 = vld [vmem:[%s2 + $0xd0] sm:$0xff]
        %v534 = vld [vmem:[%s2 + $0xd8] sm:$0xff]
        %v535 = vld [vmem:[%s2 + $0xe0] sm:$0xff]
        %v536 = vld [vmem:[%s2 + $0xe8] sm:$0xff]
        %v537 = vld [vmem:[%s2 + $0xf0] sm:$0xff]
        %v538 = vld [vmem:[%s2 + $0xf8] sm:$0xff]
        %v539 = vld [vmem:[%s2 + $0x100] sm:$0xff]
        %v540 = vld [vmem:[%s2 + $0x108] sm:$0xff]
        %v541 = vld [vmem:[%s2 + $0x110] sm:$0xff]
        %v542 = vld [vmem:[%s2 + $0x118] sm:$0xff]
        %v543 = vld [vmem:[%s2 + $0x120] sm:$0xff]
        %v544 = vld [vmem:[%s2 + $0x128] sm:$0xff]
        %v545 = vld [vmem:[%s2 + $0x130] sm:$0xff]
        %v546 = vld [vmem:[%s2 + $0x138] sm:$0xff]
        %v547 = vld [vmem:[%s2 + $0x140] sm:$0xff]
        %v548 = vld [vmem:[%s2 + $0x148] sm:$0xff]
        %v549 = vld [vmem:[%s2 + $0x150] sm:$0xff]
        %v550 = vld [vmem:[%s2 + $0x158] sm:$0xff]
        %v551 = vld [vmem:[%s2 + $0x160] sm:$0xff]
        %v552 = vld [vmem:[%s2 + $0x168] sm:$0xff]
        %v553 = vld [vmem:[%s2 + $0x170] sm:$0xff]
        %v554 = vld [vmem:[%s2 + $0x178] sm:$0xff]
        %555 = vmatprep.subr.mxu0 %v553
        %556 = vmatpush1.msra.mxu0 %v552
        %557 = vmatprep.subr.mxu0 %v550
        %558 = vmatpush1.msra.mxu0 %v549
        %559 = vmatprep.subr.mxu0 %v547
        %560 = vmatpush1.msra.mxu0 %v546
        %561 = vmatprep.subr.mxu0 %v544
        %562 = vmatpush1.msra.mxu0 %v543
        %563 = vmatprep.subr.mxu0 %v541
        %564 = vmatpush1.msra.mxu0 %v540
        %565 = vmatprep.subr.mxu0 %v538
        %566 = vmatpush1.msra.mxu0 %v537
        %567 = vmatprep.subr.mxu0 %v535
        %568 = vmatpush1.msra.mxu0 %v534
        %569 = vmatprep.subr.mxu0 %v532
        %570 = vmatpush1.msra.mxu0 %v531
        %571 = vmatprep.subr.mxu0 %v529
        %572 = vmatpush1.msra.mxu0 %v528
        %573 = vmatprep.subr.mxu0 %v526
        %574 = vmatpush1.msra.mxu0 %v525
        %575 = vmatprep.subr.mxu0 %v523
        %576 = vmatpush1.msra.mxu0 %v522
        %577 = vmatprep.subr.mxu0 %v520
        %578 = vmatpush1.msra.mxu0 %v519
        %579 = vmatprep.subr.mxu0 %v517
        %580 = vmatpush1.msra.mxu0 %v516
        %581 = vmatprep.subr.mxu0 %v514
        %582 = vmatpush1.msra.mxu0 %v513
        %583 = vmatprep.subr.mxu0 %v511
        %584 = vmatpush1.msra.mxu0 %v510
        %585 = vmatprep.subr.mxu0 %v508
        %586 = vmatpush1.msra.mxu0 %v507
        %587 = vmatprep.subr.mxu0 0.0
        %588 = vmatpush2.msra.mxu0 0.0
        %589 = vmatprep.subr.mxu0 0.0
        %590 = vmatpush2.msra.mxu0 0.0
        %591 = vmatprep.subr.mxu0 0.0
        %592 = vmatpush2.msra.mxu0 0.0
        %593 = vmatprep.subr.mxu0 0.0
        %594 = vmatpush2.msra.mxu0 0.0
        %595 = vmatprep.subr.mxu0 0.0
        %596 = vmatpush2.msra.mxu0 0.0
        %597 = vmatprep.subr.mxu0 0.0
        %598 = vmatpush2.msra.mxu0 0.0
        %599 = vmatprep.subr.mxu0 0.0
        %600 = vmatpush2.msra.mxu0 0.0
        %601 = vmatprep.subr.mxu0 0.0
        %602 = vmatpush2.msra.mxu0 0.0
        %603 = vmatprep.subr.mxu0 0.0
        %604 = vmatpush2.msra.mxu0 0.0
        %605 = vmatprep.subr.mxu0 0.0
        %606 = vmatpush2.msra.mxu0 0.0
        %607 = vmatprep.subr.mxu0 0.0
        %608 = vmatpush2.msra.mxu0 0.0
        %609 = vmatprep.subr.mxu0 0.0
        %610 = vmatpush2.msra.mxu0 0.0
        %611 = vmatprep.subr.mxu0 0.0
        %612 = vmatpush2.msra.mxu0 0.0
        %613 = vmatprep.subr.mxu0 0.0
        %614 = vmatpush2.msra.mxu0 0.0
        %615 = vmatprep.subr.mxu0 0.0
        %616 = vmatpush2.msra.mxu0 0.0
        %617 = vmatprep.subr.mxu0 0.0
        %618 = vmatpush2.msra.mxu0 0.0
        %619 = vmatprep.mubr.f32.mxu0 0.0
        %620 = vmatmul.mubr.f32.gmra.mxu0 %v505
        %v621 = vpop.f32.mrf.mxu0
        %v622 = vadd.f32 0.0, %v621
        %v623 = vpop.f32.mrf.mxu0
        %v624 = vadd.f32 0.0, %v623
        %625 = vmatprep.mubr.f32.mxu0 0.0
        %626 = vmatmul.mubr.f32.gmra.mxu0 %v506
        %v627 = vpop.f32.mrf.mxu0
        %v628 = vadd.f32 0.0, %v627
        %v629 = vpop.f32.mrf.mxu0
        %v630 = vadd.f32 0.0, %v629
        %631 = vdwg.mxu0
        %632 = vmatprep.subr.mxu0 0.0
        %633 = vmatpush1.msra.mxu0 %v554
        %634 = vmatprep.subr.mxu0 0.0
        %635 = vmatpush1.msra.mxu0 %v551
        %636 = vmatprep.subr.mxu0 0.0
        %637 = vmatpush1.msra.mxu0 %v548
        %638 = vmatprep.subr.mxu0 0.0
        %639 = vmatpush1.msra.mxu0 %v545
        %640 = vmatprep.subr.mxu0 0.0
        %641 = vmatpush1.msra.mxu0 %v542
        %642 = vmatprep.subr.mxu0 0.0
        %643 = vmatpush1.msra.mxu0 %v539
        %644 = vmatprep.subr.mxu0 0.0
        %645 = vmatpush1.msra.mxu0 %v536
        %646 = vmatprep.subr.mxu0 0.0
        %647 = vmatpush1.msra.mxu0 %v533
        %648 = vmatprep.subr.mxu0 0.0
        %649 = vmatpush1.msra.mxu0 %v530
        %650 = vmatprep.subr.mxu0 0.0
        %651 = vmatpush1.msra.mxu0 %v527
        %652 = vmatprep.subr.mxu0 0.0
        %653 = vmatpush1.msra.mxu0 %v524
        %654 = vmatprep.subr.mxu0 0.0
        %655 = vmatpush1.msra.mxu0 %v521
        %656 = vmatprep.subr.mxu0 0.0
        %657 = vmatpush1.msra.mxu0 %v518
        %658 = vmatprep.subr.mxu0 0.0
        %659 = vmatpush1.msra.mxu0 %v515
        %660 = vmatprep.subr.mxu0 0.0
        %661 = vmatpush1.msra.mxu0 %v512
        %662 = vmatprep.subr.mxu0 0.0
        %663 = vmatpush1.msra.mxu0 %v509
        %664 = vmatprep.subr.mxu0 0.0
        %665 = vmatpush2.msra.mxu0 0.0
        %666 = vmatprep.subr.mxu0 0.0
        %667 = vmatpush2.msra.mxu0 0.0
        %668 = vmatprep.subr.mxu0 0.0
        %669 = vmatpush2.msra.mxu0 0.0
        %670 = vmatprep.subr.mxu0 0.0
        %671 = vmatpush2.msra.mxu0 0.0
        %672 = vmatprep.subr.mxu0 0.0
        %673 = vmatpush2.msra.mxu0 0.0
        %674 = vmatprep.subr.mxu0 0.0
        %675 = vmatpush2.msra.mxu0 0.0
        %676 = vmatprep.subr.mxu0 0.0
        %677 = vmatpush2.msra.mxu0 0.0
        %678 = vmatprep.subr.mxu0 0.0
        %679 = vmatpush2.msra.mxu0 0.0
        %680 = vmatprep.subr.mxu0 0.0
        %681 = vmatpush2.msra.mxu0 0.0
        %682 = vmatprep.subr.mxu0 0.0
        %683 = vmatpush2.msra.mxu0 0.0
        %684 = vmatprep.subr.mxu0 0.0
        %685 = vmatpush2.msra.mxu0 0.0
        %686 = vmatprep.subr.mxu0 0.0
        %687 = vmatpush2.msra.mxu0 0.0
        %688 = vmatprep.subr.mxu0 0.0
        %689 = vmatpush2.msra.mxu0 0.0
        %690 = vmatprep.subr.mxu0 0.0
        %691 = vmatpush2.msra.mxu0 0.0
        %692 = vmatprep.subr.mxu0 0.0
        %693 = vmatpush2.msra.mxu0 0.0
        %694 = vmatprep.subr.mxu0 0.0
        %695 = vmatpush2.msra.mxu0 0.0
        %696 = vmatprep.mubr.f32.mxu0 0.0
        %697 = vmatmul.mubr.f32.gmra.mxu0 %v505
        %v698 = vpop.f32.mrf.mxu0
        %v699 = vadd.f32 0.0, %v698
        %v700 = vpop.f32.mrf.mxu0
        %701 = vmatprep.mubr.f32.mxu0 0.0
        %702 = vmatmul.mubr.f32.gmra.mxu0 %v506
        %v703 = vpop.f32.mrf.mxu0
        %v704 = vadd.f32 0.0, %v703
        %v705 = vpop.f32.mrf.mxu0
        %706 = vdwg.mxu0
        %v707 = vld [vmem:[%s499] sm:$0x3]
        %v708 = vld [vmem:[%s499 + $0x2] sm:$0x3]
        %v709 = vunpack.c.0.s8 %v707
        %v710 = vunpack.c.0.s8 %v708
        %v711 = vcvt.s32.f32 %v709
        %v712 = vcvt.s32.f32 %v710
        %vm713 = vcmp.eq.f32.partialorder %v711, 0.0
        %vm714 = vcmp.eq.f32.partialorder %v712, 0.0
        %vm715 = vcmask 261120
        %v717 = vsel %vm715, %v622, 0
        %v720 = vsel %vm715, %v628, 0
        %v723 = vsel %vm715, %v624, 0
        %v726 = vsel %vm715, %v630, 0
        %728 = vmatprep.subr.mxu0 0.0
        %729 = vmatpush1.xpose.msra.mxu0 0.0
        %730 = vmatprep.subr.mxu0 0.0
        %731 = vmatpush1.xpose.msra.mxu0 0.0
        %732 = vmatprep.subr.mxu0 0.0
        %733 = vmatpush1.xpose.msra.mxu0 0.0
        %734 = vmatprep.subr.mxu0 0.0
        %735 = vmatpush1.xpose.msra.mxu0 0.0
        %736 = vmatprep.subr.mxu0 0.0
        %737 = vmatpush1.xpose.msra.mxu0 0.0
        %738 = vmatprep.subr.mxu0 0.0
        %739 = vmatpush1.xpose.msra.mxu0 0.0
        %740 = vmatprep.subr.mxu0 0.0
        %741 = vmatpush1.xpose.msra.mxu0 0.0
        %742 = vmatprep.subr.mxu0 0.0
        %743 = vmatpush1.xpose.msra.mxu0 0.0
        %744 = vmatprep.subr.mxu0 0.0
        %745 = vmatpush1.xpose.msra.mxu0 0.0
        %746 = vmatprep.subr.mxu0 0.0
        %747 = vmatpush1.xpose.msra.mxu0 0.0
        %748 = vmatprep.subr.mxu0 0.0
        %749 = vmatpush1.xpose.msra.mxu0 0.0
        %750 = vmatprep.subr.mxu0 0.0
        %751 = vmatpush1.xpose.msra.mxu0 0.0
        %752 = vmatprep.subr.mxu0 0.0
        %753 = vmatpush1.xpose.msra.mxu0 0.0
        %754 = vmatprep.subr.mxu0 0.0
        %755 = vmatpush1.xpose.msra.mxu0 0.0
        %756 = vmatprep.subr.mxu0 0.0
        %757 = vmatpush1.xpose.msra.mxu0 %v726
        %758 = vmatprep.subr.mxu0 0.0
        %759 = vmatpush1.xpose.msra.mxu0 %v723
        %760 = vmatprep.subr.mxu0 0.0
        %761 = vmatpush2.xpose.msra.mxu0 0.0
        %762 = vmatprep.subr.mxu0 0.0
        %763 = vmatpush2.xpose.msra.mxu0 0.0
        %764 = vmatprep.subr.mxu0 0.0
        %765 = vmatpush2.xpose.msra.mxu0 0.0
        %766 = vmatprep.subr.mxu0 0.0
        %767 = vmatpush2.xpose.msra.mxu0 0.0
        %768 = vmatprep.subr.mxu0 0.0
        %769 = vmatpush2.xpose.msra.mxu0 0.0
        %770 = vmatprep.subr.mxu0 0.0
        %771 = vmatpush2.xpose.msra.mxu0 0.0
        %772 = vmatprep.subr.mxu0 0.0
        %773 = vmatpush2.xpose.msra.mxu0 0.0
        %774 = vmatprep.subr.mxu0 0.0
        %775 = vmatpush2.xpose.msra.mxu0 0.0
        %776 = vmatprep.subr.mxu0 0.0
        %777 = vmatpush2.xpose.msra.mxu0 0.0
        %778 = vmatprep.subr.mxu0 0.0
        %779 = vmatpush2.xpose.msra.mxu0 0.0
        %780 = vmatprep.subr.mxu0 0.0
        %781 = vmatpush2.xpose.msra.mxu0 0.0
        %782 = vmatprep.subr.mxu0 0.0
        %783 = vmatpush2.xpose.msra.mxu0 0.0
        %784 = vmatprep.subr.mxu0 0.0
        %785 = vmatpush2.xpose.msra.mxu0 0.0
        %786 = vmatprep.subr.mxu0 0.0
        %787 = vmatpush2.xpose.msra.mxu0 0.0
        %788 = vmatprep.subr.mxu0 0.0
        %789 = vmatpush2.xpose.msra.mxu0 0.0
        %790 = vmatprep.subr.mxu0 0.0
        %791 = vmatpush2.xpose.msra.mxu0 0.0
        %792 = vmatprep.mubr.f32.mxu0 0.0
        %793 = vmatmul.mubr.f32.gmra.mxu0 %v717
        %v794 = vpop.f32.mrf.mxu0
        %v795 = vadd.f32 0.0, %v794
        %v796 = vpop.f32.mrf.mxu0
        %797 = vmatprep.mubr.f32.mxu0 0.0
        %798 = vmatmul.mubr.f32.gmra.mxu0 %v720
        %v799 = vpop.f32.mrf.mxu0
        %v800 = vadd.f32 0.0, %v799
        %v801 = vpop.f32.mrf.mxu0
        %802 = vdwg.mxu0
        %v803 = vsel %vm713, -1e+20, %v795
        %v804 = vsel %vm714, -1e+20, %v800
        %vm805 = vcmask 130048
        %v806 = vsel %vm805, %v803, -inf
        %807 = vmax.xlane.f32.xlu0 %v806
        %v808 = vpop.xlane.xlu0 %807
        %v809 = vsel %vm805, %v804, -inf
        %810 = vmax.xlane.f32.xlu0 %v809
        %v811 = vpop.xlane.xlu0 %810
        %v812 = vsub.f32 %v803, %v808
        %v813 = vsub.f32 %v804, %v811
        %v814 = vmul.f32 %v812, 1.442695
        %v815 = vpow.pop %v814
        %v816 = vmul.f32 %v813, 1.442695
        %v817 = vpow.pop %v816
        %v818 = vsel %vm805, %v815, 0.0
        %819 = vadd.xlane.f32.xlu0 %v818
        %v820 = vpop.xlane.xlu0 %819
        %v821 = vsel %vm805, %v817, 0.0
        %822 = vadd.xlane.f32.xlu0 %v821
        %v823 = vpop.xlane.xlu0 %822
        %v824 = vrcp.pop %v820
        %v825 = vrcp.pop %v823
        %v826 = vmul.f32 %v815, %v824
        %v827 = vmul.f32 %v817, %v825
        %v829 = vsel %vm805, %v826, 0
        %v832 = vsel %vm805, %v827, 0
        %834 = vmatprep.subr.mxu0 0.0
        %835 = vmatpush1.msra.mxu0 0.0
        %836 = vmatprep.subr.mxu0 0.0
        %837 = vmatpush1.msra.mxu0 0.0
        %838 = vmatprep.subr.mxu0 0.0
        %839 = vmatpush1.msra.mxu0 0.0
        %840 = vmatprep.subr.mxu0 0.0
        %841 = vmatpush1.msra.mxu0 0.0
        %842 = vmatprep.subr.mxu0 0.0
        %843 = vmatpush1.msra.mxu0 0.0
        %844 = vmatprep.subr.mxu0 0.0
        %845 = vmatpush1.msra.mxu0 0.0
        %846 = vmatprep.subr.mxu0 0.0
        %847 = vmatpush1.msra.mxu0 0.0
        %848 = vmatprep.subr.mxu0 0.0
        %849 = vmatpush1.msra.mxu0 0.0
        %850 = vmatprep.subr.mxu0 0.0
        %851 = vmatpush1.msra.mxu0 0.0
        %852 = vmatprep.subr.mxu0 0.0
        %853 = vmatpush1.msra.mxu0 0.0
        %854 = vmatprep.subr.mxu0 0.0
        %855 = vmatpush1.msra.mxu0 0.0
        %856 = vmatprep.subr.mxu0 0.0
        %857 = vmatpush1.msra.mxu0 0.0
        %858 = vmatprep.subr.mxu0 0.0
        %859 = vmatpush1.msra.mxu0 0.0
        %860 = vmatprep.subr.mxu0 0.0
        %861 = vmatpush1.msra.mxu0 0.0
        %862 = vmatprep.subr.mxu0 0.0
        %863 = vmatpush1.msra.mxu0 %v704
        %864 = vmatprep.subr.mxu0 0.0
        %865 = vmatpush1.msra.mxu0 %v699
        %866 = vmatprep.subr.mxu0 0.0
        %867 = vmatpush2.msra.mxu0 0.0
        %868 = vmatprep.subr.mxu0 0.0
        %869 = vmatpush2.msra.mxu0 0.0
        %870 = vmatprep.subr.mxu0 0.0
        %871 = vmatpush2.msra.mxu0 0.0
        %872 = vmatprep.subr.mxu0 0.0
        %873 = vmatpush2.msra.mxu0 0.0
        %874 = vmatprep.subr.mxu0 0.0
        %875 = vmatpush2.msra.mxu0 0.0
        %876 = vmatprep.subr.mxu0 0.0
        %877 = vmatpush2.msra.mxu0 0.0
        %878 = vmatprep.subr.mxu0 0.0
        %879 = vmatpush2.msra.mxu0 0.0
        %880 = vmatprep.subr.mxu0 0.0
        %881 = vmatpush2.msra.mxu0 0.0
        %882 = vmatprep.subr.mxu0 0.0
        %883 = vmatpush2.msra.mxu0 0.0
        %884 = vmatprep.subr.mxu0 0.0
        %885 = vmatpush2.msra.mxu0 0.0
        %886 = vmatprep.subr.mxu0 0.0
        %887 = vmatpush2.msra.mxu0 0.0
        %888 = vmatprep.subr.mxu0 0.0
        %889 = vmatpush2.msra.mxu0 0.0
        %890 = vmatprep.subr.mxu0 0.0
        %891 = vmatpush2.msra.mxu0 0.0
        %892 = vmatprep.subr.mxu0 0.0
        %893 = vmatpush2.msra.mxu0 0.0
        %894 = vmatprep.subr.mxu0 0.0
        %895 = vmatpush2.msra.mxu0 0.0
        %896 = vmatprep.subr.mxu0 0.0
        %897 = vmatpush2.msra.mxu0 0.0
        %898 = vmatprep.mubr.f32.mxu0 0.0
        %899 = vmatmul.mubr.f32.gmra.mxu0 %v829
        %v900 = vpop.f32.mrf.mxu0
        %v901 = vadd.f32 0.0, %v900
        %v902 = vpop.f32.mrf.mxu0
        %903 = vmatprep.mubr.f32.mxu0 0.0
        %904 = vmatmul.mubr.f32.gmra.mxu0 %v832
        %v905 = vpop.f32.mrf.mxu0
        %v906 = vadd.f32 0.0, %v905
        %v907 = vpop.f32.mrf.mxu0
        %908 = vdwg.mxu0
        %909 = vrot.lane.b32.xlu0 %v622, 96
        %v910 = vpop.permute.xlu0 %909
        %911 = vrot.lane.b32.xlu0 %v628, 96
        %v912 = vpop.permute.xlu0 %911
        %913 = vrot.lane.b32.xlu0 %v624, 96
        %v914 = vpop.permute.xlu0 %913
        %915 = vrot.lane.b32.xlu0 %v630, 96
        %v916 = vpop.permute.xlu0 %915
        %v917 = vsel %vm715, %v910, 0
        %v919 = vsel %vm715, %v912, 0
        %v921 = vsel %vm715, %v914, 0
        %v923 = vsel %vm715, %v916, 0
        %925 = vmatprep.subr.mxu0 0.0
        %926 = vmatpush1.xpose.msra.mxu0 0.0
        %927 = vmatprep.subr.mxu0 0.0
        %928 = vmatpush1.xpose.msra.mxu0 0.0
        %929 = vmatprep.subr.mxu0 0.0
        %930 = vmatpush1.xpose.msra.mxu0 0.0
        %931 = vmatprep.subr.mxu0 0.0
        %932 = vmatpush1.xpose.msra.mxu0 0.0
        %933 = vmatprep.subr.mxu0 0.0
        %934 = vmatpush1.xpose.msra.mxu0 0.0
        %935 = vmatprep.subr.mxu0 0.0
        %936 = vmatpush1.xpose.msra.mxu0 0.0
        %937 = vmatprep.subr.mxu0 0.0
        %938 = vmatpush1.xpose.msra.mxu0 0.0
        %939 = vmatprep.subr.mxu0 0.0
        %940 = vmatpush1.xpose.msra.mxu0 0.0
        %941 = vmatprep.subr.mxu0 0.0
        %942 = vmatpush1.xpose.msra.mxu0 0.0
        %943 = vmatprep.subr.mxu0 0.0
        %944 = vmatpush1.xpose.msra.mxu0 0.0
        %945 = vmatprep.subr.mxu0 0.0
        %946 = vmatpush1.xpose.msra.mxu0 0.0
        %947 = vmatprep.subr.mxu0 0.0
        %948 = vmatpush1.xpose.msra.mxu0 0.0
        %949 = vmatprep.subr.mxu0 0.0
        %950 = vmatpush1.xpose.msra.mxu0 0.0
        %951 = vmatprep.subr.mxu0 0.0
        %952 = vmatpush1.xpose.msra.mxu0 0.0
        %953 = vmatprep.subr.mxu0 0.0
        %954 = vmatpush1.xpose.msra.mxu0 %v923
        %955 = vmatprep.subr.mxu0 0.0
        %956 = vmatpush1.xpose.msra.mxu0 %v921
        %957 = vmatprep.subr.mxu0 0.0
        %958 = vmatpush2.xpose.msra.mxu0 0.0
        %959 = vmatprep.subr.mxu0 0.0
        %960 = vmatpush2.xpose.msra.mxu0 0.0
        %961 = vmatprep.subr.mxu0 0.0
        %962 = vmatpush2.xpose.msra.mxu0 0.0
        %963 = vmatprep.subr.mxu0 0.0
        %964 = vmatpush2.xpose.msra.mxu0 0.0
        %965 = vmatprep.subr.mxu0 0.0
        %966 = vmatpush2.xpose.msra.mxu0 0.0
        %967 = vmatprep.subr.mxu0 0.0
        %968 = vmatpush2.xpose.msra.mxu0 0.0
        %969 = vmatprep.subr.mxu0 0.0
        %970 = vmatpush2.xpose.msra.mxu0 0.0
        %971 = vmatprep.subr.mxu0 0.0
        %972 = vmatpush2.xpose.msra.mxu0 0.0
        %973 = vmatprep.subr.mxu0 0.0
        %974 = vmatpush2.xpose.msra.mxu0 0.0
        %975 = vmatprep.subr.mxu0 0.0
        %976 = vmatpush2.xpose.msra.mxu0 0.0
        %977 = vmatprep.subr.mxu0 0.0
        %978 = vmatpush2.xpose.msra.mxu0 0.0
        %979 = vmatprep.subr.mxu0 0.0
        %980 = vmatpush2.xpose.msra.mxu0 0.0
        %981 = vmatprep.subr.mxu0 0.0
        %982 = vmatpush2.xpose.msra.mxu0 0.0
        %983 = vmatprep.subr.mxu0 0.0
        %984 = vmatpush2.xpose.msra.mxu0 0.0
        %985 = vmatprep.subr.mxu0 0.0
        %986 = vmatpush2.xpose.msra.mxu0 0.0
        %987 = vmatprep.subr.mxu0 0.0
        %988 = vmatpush2.xpose.msra.mxu0 0.0
        %989 = vmatprep.mubr.f32.mxu0 0.0
        %990 = vmatmul.mubr.f32.gmra.mxu0 %v917
        %v991 = vpop.f32.mrf.mxu0
        %v992 = vadd.f32 0.0, %v991
        %v993 = vpop.f32.mrf.mxu0
        %994 = vmatprep.mubr.f32.mxu0 0.0
        %995 = vmatmul.mubr.f32.gmra.mxu0 %v919
        %v996 = vpop.f32.mrf.mxu0
        %v997 = vadd.f32 0.0, %v996
        %v998 = vpop.f32.mrf.mxu0
        %999 = vdwg.mxu0
        %v1000 = vsel %vm713, -1e+20, %v992
        %v1001 = vsel %vm714, -1e+20, %v997
        %v1002 = vsel %vm805, %v1000, -inf
        %1003 = vmax.xlane.f32.xlu0 %v1002
        %v1004 = vpop.xlane.xlu0 %1003
        %v1005 = vsel %vm805, %v1001, -inf
        %1006 = vmax.xlane.f32.xlu0 %v1005
        %v1007 = vpop.xlane.xlu0 %1006
        %v1008 = vsub.f32 %v1000, %v1004
        %v1009 = vsub.f32 %v1001, %v1007
        %v1010 = vmul.f32 %v1008, 1.442695
        %v1011 = vpow.pop %v1010
        %v1012 = vmul.f32 %v1009, 1.442695
        %v1013 = vpow.pop %v1012
        %v1014 = vsel %vm805, %v1011, 0.0
        %1015 = vadd.xlane.f32.xlu0 %v1014
        %v1016 = vpop.xlane.xlu0 %1015
        %v1017 = vsel %vm805, %v1013, 0.0
        %1018 = vadd.xlane.f32.xlu0 %v1017
        %v1019 = vpop.xlane.xlu0 %1018
        %v1020 = vrcp.pop %v1016
        %v1021 = vrcp.pop %v1019
        %v1022 = vmul.f32 %v1011, %v1020
        %v1023 = vmul.f32 %v1013, %v1021
        %1026 = vrot.lane.b32.xlu0 %v699, 96
        %v1027 = vpop.permute.xlu0 %1026
        %1028 = vrot.lane.b32.xlu0 %v704, 96
        %v1029 = vpop.permute.xlu0 %1028
        %v1033 = vsel %vm805, %v1022, 0
        %v1036 = vsel %vm805, %v1023, 0
        %1038 = vmatprep.subr.mxu0 0.0
        %1039 = vmatpush1.msra.mxu0 0.0
        %1040 = vmatprep.subr.mxu0 0.0
        %1041 = vmatpush1.msra.mxu0 0.0
        %1042 = vmatprep.subr.mxu0 0.0
        %1043 = vmatpush1.msra.mxu0 0.0
        %1044 = vmatprep.subr.mxu0 0.0
        %1045 = vmatpush1.msra.mxu0 0.0
        %1046 = vmatprep.subr.mxu0 0.0
        %1047 = vmatpush1.msra.mxu0 0.0
        %1048 = vmatprep.subr.mxu0 0.0
        %1049 = vmatpush1.msra.mxu0 0.0
        %1050 = vmatprep.subr.mxu0 0.0
        %1051 = vmatpush1.msra.mxu0 0.0
        %1052 = vmatprep.subr.mxu0 0.0
        %1053 = vmatpush1.msra.mxu0 0.0
        %1054 = vmatprep.subr.mxu0 0.0
        %1055 = vmatpush1.msra.mxu0 0.0
        %1056 = vmatprep.subr.mxu0 0.0
        %1057 = vmatpush1.msra.mxu0 0.0
        %1058 = vmatprep.subr.mxu0 0.0
        %1059 = vmatpush1.msra.mxu0 0.0
        %1060 = vmatprep.subr.mxu0 0.0
        %1061 = vmatpush1.msra.mxu0 0.0
        %1062 = vmatprep.subr.mxu0 0.0
        %1063 = vmatpush1.msra.mxu0 0.0
        %1064 = vmatprep.subr.mxu0 0.0
        %1065 = vmatpush1.msra.mxu0 0.0
        %1066 = vmatprep.subr.mxu0 0.0
        %1067 = vmatpush1.msra.mxu0 %v1029
        %1068 = vmatprep.subr.mxu0 0.0
        %1069 = vmatpush1.msra.mxu0 %v1027
        %1070 = vmatprep.subr.mxu0 0.0
        %1071 = vmatpush2.msra.mxu0 0.0
        %1072 = vmatprep.subr.mxu0 0.0
        %1073 = vmatpush2.msra.mxu0 0.0
        %1074 = vmatprep.subr.mxu0 0.0
        %1075 = vmatpush2.msra.mxu0 0.0
        %1076 = vmatprep.subr.mxu0 0.0
        %1077 = vmatpush2.msra.mxu0 0.0
        %1078 = vmatprep.subr.mxu0 0.0
        %1079 = vmatpush2.msra.mxu0 0.0
        %1080 = vmatprep.subr.mxu0 0.0
        %1081 = vmatpush2.msra.mxu0 0.0
        %1082 = vmatprep.subr.mxu0 0.0
        %1083 = vmatpush2.msra.mxu0 0.0
        %1084 = vmatprep.subr.mxu0 0.0
        %1085 = vmatpush2.msra.mxu0 0.0
        %1086 = vmatprep.subr.mxu0 0.0
        %1087 = vmatpush2.msra.mxu0 0.0
        %1088 = vmatprep.subr.mxu0 0.0
        %1089 = vmatpush2.msra.mxu0 0.0
        %1090 = vmatprep.subr.mxu0 0.0
        %1091 = vmatpush2.msra.mxu0 0.0
        %1092 = vmatprep.subr.mxu0 0.0
        %1093 = vmatpush2.msra.mxu0 0.0
        %1094 = vmatprep.subr.mxu0 0.0
        %1095 = vmatpush2.msra.mxu0 0.0
        %1096 = vmatprep.subr.mxu0 0.0
        %1097 = vmatpush2.msra.mxu0 0.0
        %1098 = vmatprep.subr.mxu0 0.0
        %1099 = vmatpush2.msra.mxu0 0.0
        %1100 = vmatprep.subr.mxu0 0.0
        %1101 = vmatpush2.msra.mxu0 0.0
        %1102 = vmatprep.mubr.f32.mxu0 0.0
        %1103 = vmatmul.mubr.f32.gmra.mxu0 %v1033
        %v1104 = vpop.f32.mrf.mxu0
        %v1105 = vadd.f32 0.0, %v1104
        %v1106 = vpop.f32.mrf.mxu0
        %1107 = vmatprep.mubr.f32.mxu0 0.0
        %1108 = vmatmul.mubr.f32.gmra.mxu0 %v1036
        %v1109 = vpop.f32.mrf.mxu0
        %v1110 = vadd.f32 0.0, %v1109
        %v1111 = vpop.f32.mrf.mxu0
        %1112 = vdwg.mxu0
        %1113 = vrot.lane.b32.xlu0 %v622, 64
        %v1114 = vpop.permute.xlu0 %1113
        %1115 = vrot.lane.b32.xlu0 %v628, 64
        %v1116 = vpop.permute.xlu0 %1115
        %1117 = vrot.lane.b32.xlu0 %v624, 64
        %v1118 = vpop.permute.xlu0 %1117
        %1119 = vrot.lane.b32.xlu0 %v630, 64
        %v1120 = vpop.permute.xlu0 %1119
        %v1121 = vsel %vm715, %v1114, 0
        %v1123 = vsel %vm715, %v1116, 0
        %v1125 = vsel %vm715, %v1118, 0
        %v1127 = vsel %vm715, %v1120, 0
        %1129 = vmatprep.subr.mxu0 0.0
        %1130 = vmatpush1.xpose.msra.mxu0 0.0
        %1131 = vmatprep.subr.mxu0 0.0
        %1132 = vmatpush1.xpose.msra.mxu0 0.0
        %1133 = vmatprep.subr.mxu0 0.0
        %1134 = vmatpush1.xpose.msra.mxu0 0.0
        %1135 = vmatprep.subr.mxu0 0.0
        %1136 = vmatpush1.xpose.msra.mxu0 0.0
        %1137 = vmatprep.subr.mxu0 0.0
        %1138 = vmatpush1.xpose.msra.mxu0 0.0
        %1139 = vmatprep.subr.mxu0 0.0
        %1140 = vmatpush1.xpose.msra.mxu0 0.0
        %1141 = vmatprep.subr.mxu0 0.0
        %1142 = vmatpush1.xpose.msra.mxu0 0.0
        %1143 = vmatprep.subr.mxu0 0.0
        %1144 = vmatpush1.xpose.msra.mxu0 0.0
        %1145 = vmatprep.subr.mxu0 0.0
        %1146 = vmatpush1.xpose.msra.mxu0 0.0
        %1147 = vmatprep.subr.mxu0 0.0
        %1148 = vmatpush1.xpose.msra.mxu0 0.0
        %1149 = vmatprep.subr.mxu0 0.0
        %1150 = vmatpush1.xpose.msra.mxu0 0.0
        %1151 = vmatprep.subr.mxu0 0.0
        %1152 = vmatpush1.xpose.msra.mxu0 0.0
        %1153 = vmatprep.subr.mxu0 0.0
        %1154 = vmatpush1.xpose.msra.mxu0 0.0
        %1155 = vmatprep.subr.mxu0 0.0
        %1156 = vmatpush1.xpose.msra.mxu0 0.0
        %1157 = vmatprep.subr.mxu0 0.0
        %1158 = vmatpush1.xpose.msra.mxu0 %v1127
        %1159 = vmatprep.subr.mxu0 0.0
        %1160 = vmatpush1.xpose.msra.mxu0 %v1125
        %1161 = vmatprep.subr.mxu0 0.0
        %1162 = vmatpush2.xpose.msra.mxu0 0.0
        %1163 = vmatprep.subr.mxu0 0.0
        %1164 = vmatpush2.xpose.msra.mxu0 0.0
        %1165 = vmatprep.subr.mxu0 0.0
        %1166 = vmatpush2.xpose.msra.mxu0 0.0
        %1167 = vmatprep.subr.mxu0 0.0
        %1168 = vmatpush2.xpose.msra.mxu0 0.0
        %1169 = vmatprep.subr.mxu0 0.0
        %1170 = vmatpush2.xpose.msra.mxu0 0.0
        %1171 = vmatprep.subr.mxu0 0.0
        %1172 = vmatpush2.xpose.msra.mxu0 0.0
        %1173 = vmatprep.subr.mxu0 0.0
        %1174 = vmatpush2.xpose.msra.mxu0 0.0
        %1175 = vmatprep.subr.mxu0 0.0
        %1176 = vmatpush2.xpose.msra.mxu0 0.0
        %1177 = vmatprep.subr.mxu0 0.0
        %1178 = vmatpush2.xpose.msra.mxu0 0.0
        %1179 = vmatprep.subr.mxu0 0.0
        %1180 = vmatpush2.xpose.msra.mxu0 0.0
        %1181 = vmatprep.subr.mxu0 0.0
        %1182 = vmatpush2.xpose.msra.mxu0 0.0
        %1183 = vmatprep.subr.mxu0 0.0
        %1184 = vmatpush2.xpose.msra.mxu0 0.0
        %1185 = vmatprep.subr.mxu0 0.0
        %1186 = vmatpush2.xpose.msra.mxu0 0.0
        %1187 = vmatprep.subr.mxu0 0.0
        %1188 = vmatpush2.xpose.msra.mxu0 0.0
        %1189 = vmatprep.subr.mxu0 0.0
        %1190 = vmatpush2.xpose.msra.mxu0 0.0
        %1191 = vmatprep.subr.mxu0 0.0
        %1192 = vmatpush2.xpose.msra.mxu0 0.0
        %1193 = vmatprep.mubr.f32.mxu0 0.0
        %1194 = vmatmul.mubr.f32.gmra.mxu0 %v1121
        %v1195 = vpop.f32.mrf.mxu0
        %v1196 = vadd.f32 0.0, %v1195
        %v1197 = vpop.f32.mrf.mxu0
        %1198 = vmatprep.mubr.f32.mxu0 0.0
        %1199 = vmatmul.mubr.f32.gmra.mxu0 %v1123
        %v1200 = vpop.f32.mrf.mxu0
        %v1201 = vadd.f32 0.0, %v1200
        %v1202 = vpop.f32.mrf.mxu0
        %1203 = vdwg.mxu0
        %v1204 = vsel %vm713, -1e+20, %v1196
        %v1205 = vsel %vm714, -1e+20, %v1201
        %v1206 = vsel %vm805, %v1204, -inf
        %1207 = vmax.xlane.f32.xlu0 %v1206
        %v1208 = vpop.xlane.xlu0 %1207
        %v1209 = vsel %vm805, %v1205, -inf
        %1210 = vmax.xlane.f32.xlu0 %v1209
        %v1211 = vpop.xlane.xlu0 %1210
        %v1212 = vsub.f32 %v1204, %v1208
        %v1213 = vsub.f32 %v1205, %v1211
        %v1214 = vmul.f32 %v1212, 1.442695
        %v1215 = vpow.pop %v1214
        %v1216 = vmul.f32 %v1213, 1.442695
        %v1217 = vpow.pop %v1216
        %v1218 = vsel %vm805, %v1215, 0.0
        %1219 = vadd.xlane.f32.xlu0 %v1218
        %v1220 = vpop.xlane.xlu0 %1219
        %v1221 = vsel %vm805, %v1217, 0.0
        %1222 = vadd.xlane.f32.xlu0 %v1221
        %v1223 = vpop.xlane.xlu0 %1222
        %v1224 = vrcp.pop %v1220
        %v1225 = vrcp.pop %v1223
        %v1226 = vmul.f32 %v1215, %v1224
        %v1227 = vmul.f32 %v1217, %v1225
        %1228 = vrot.lane.b32.xlu0 %v699, 64
        %v1229 = vpop.permute.xlu0 %1228
        %1230 = vrot.lane.b32.xlu0 %v704, 64
        %v1231 = vpop.permute.xlu0 %1230
        %v1235 = vsel %vm805, %v1226, 0
        %v1238 = vsel %vm805, %v1227, 0
        %1240 = vmatprep.subr.mxu0 0.0
        %1241 = vmatpush1.msra.mxu0 0.0
        %1242 = vmatprep.subr.mxu0 0.0
        %1243 = vmatpush1.msra.mxu0 0.0
        %1244 = vmatprep.subr.mxu0 0.0
        %1245 = vmatpush1.msra.mxu0 0.0
        %1246 = vmatprep.subr.mxu0 0.0
        %1247 = vmatpush1.msra.mxu0 0.0
        %1248 = vmatprep.subr.mxu0 0.0
        %1249 = vmatpush1.msra.mxu0 0.0
        %1250 = vmatprep.subr.mxu0 0.0
        %1251 = vmatpush1.msra.mxu0 0.0
        %1252 = vmatprep.subr.mxu0 0.0
        %1253 = vmatpush1.msra.mxu0 0.0
        %1254 = vmatprep.subr.mxu0 0.0
        %1255 = vmatpush1.msra.mxu0 0.0
        %1256 = vmatprep.subr.mxu0 0.0
        %1257 = vmatpush1.msra.mxu0 0.0
        %1258 = vmatprep.subr.mxu0 0.0
        %1259 = vmatpush1.msra.mxu0 0.0
        %1260 = vmatprep.subr.mxu0 0.0
        %1261 = vmatpush1.msra.mxu0 0.0
        %1262 = vmatprep.subr.mxu0 0.0
        %1263 = vmatpush1.msra.mxu0 0.0
        %1264 = vmatprep.subr.mxu0 0.0
        %1265 = vmatpush1.msra.mxu0 0.0
        %1266 = vmatprep.subr.mxu0 0.0
        %1267 = vmatpush1.msra.mxu0 0.0
        %1268 = vmatprep.subr.mxu0 0.0
        %1269 = vmatpush1.msra.mxu0 %v1231
        %1270 = vmatprep.subr.mxu0 0.0
        %1271 = vmatpush1.msra.mxu0 %v1229
        %1272 = vmatprep.subr.mxu0 0.0
        %1273 = vmatpush2.msra.mxu0 0.0
        %1274 = vmatprep.subr.mxu0 0.0
        %1275 = vmatpush2.msra.mxu0 0.0
        %1276 = vmatprep.subr.mxu0 0.0
        %1277 = vmatpush2.msra.mxu0 0.0
        %1278 = vmatprep.subr.mxu0 0.0
        %1279 = vmatpush2.msra.mxu0 0.0
        %1280 = vmatprep.subr.mxu0 0.0
        %1281 = vmatpush2.msra.mxu0 0.0
        %1282 = vmatprep.subr.mxu0 0.0
        %1283 = vmatpush2.msra.mxu0 0.0
        %1284 = vmatprep.subr.mxu0 0.0
        %1285 = vmatpush2.msra.mxu0 0.0
        %1286 = vmatprep.subr.mxu0 0.0
        %1287 = vmatpush2.msra.mxu0 0.0
        %1288 = vmatprep.subr.mxu0 0.0
        %1289 = vmatpush2.msra.mxu0 0.0
        %1290 = vmatprep.subr.mxu0 0.0
        %1291 = vmatpush2.msra.mxu0 0.0
        %1292 = vmatprep.subr.mxu0 0.0
        %1293 = vmatpush2.msra.mxu0 0.0
        %1294 = vmatprep.subr.mxu0 0.0
        %1295 = vmatpush2.msra.mxu0 0.0
        %1296 = vmatprep.subr.mxu0 0.0
        %1297 = vmatpush2.msra.mxu0 0.0
        %1298 = vmatprep.subr.mxu0 0.0
        %1299 = vmatpush2.msra.mxu0 0.0
        %1300 = vmatprep.subr.mxu0 0.0
        %1301 = vmatpush2.msra.mxu0 0.0
        %1302 = vmatprep.subr.mxu0 0.0
        %1303 = vmatpush2.msra.mxu0 0.0
        %1304 = vmatprep.mubr.f32.mxu0 0.0
        %1305 = vmatmul.mubr.f32.gmra.mxu0 %v1235
        %v1306 = vpop.f32.mrf.mxu0
        %v1307 = vadd.f32 0.0, %v1306
        %v1308 = vpop.f32.mrf.mxu0
        %1309 = vmatprep.mubr.f32.mxu0 0.0
        %1310 = vmatmul.mubr.f32.gmra.mxu0 %v1238
        %v1311 = vpop.f32.mrf.mxu0
        %v1312 = vadd.f32 0.0, %v1311
        %v1313 = vpop.f32.mrf.mxu0
        %1314 = vdwg.mxu0
        %1315 = vrot.lane.b32.xlu0 %v622, 32
        %v1316 = vpop.permute.xlu0 %1315
        %1317 = vrot.lane.b32.xlu0 %v628, 32
        %v1318 = vpop.permute.xlu0 %1317
        %1319 = vrot.lane.b32.xlu0 %v624, 32
        %v1320 = vpop.permute.xlu0 %1319
        %1321 = vrot.lane.b32.xlu0 %v630, 32
        %v1322 = vpop.permute.xlu0 %1321
        %v1323 = vsel %vm715, %v1316, 0
        %v1325 = vsel %vm715, %v1318, 0
        %v1327 = vsel %vm715, %v1320, 0
        %v1329 = vsel %vm715, %v1322, 0
        %1331 = vmatprep.subr.mxu0 0.0
        %1332 = vmatpush1.xpose.msra.mxu0 0.0
        %1333 = vmatprep.subr.mxu0 0.0
        %1334 = vmatpush1.xpose.msra.mxu0 0.0
        %1335 = vmatprep.subr.mxu0 0.0
        %1336 = vmatpush1.xpose.msra.mxu0 0.0
        %1337 = vmatprep.subr.mxu0 0.0
        %1338 = vmatpush1.xpose.msra.mxu0 0.0
        %1339 = vmatprep.subr.mxu0 0.0
        %1340 = vmatpush1.xpose.msra.mxu0 0.0
        %1341 = vmatprep.subr.mxu0 0.0
        %1342 = vmatpush1.xpose.msra.mxu0 0.0
        %1343 = vmatprep.subr.mxu0 0.0
        %1344 = vmatpush1.xpose.msra.mxu0 0.0
        %1345 = vmatprep.subr.mxu0 0.0
        %1346 = vmatpush1.xpose.msra.mxu0 0.0
        %1347 = vmatprep.subr.mxu0 0.0
        %1348 = vmatpush1.xpose.msra.mxu0 0.0
        %1349 = vmatprep.subr.mxu0 0.0
        %1350 = vmatpush1.xpose.msra.mxu0 0.0
        %1351 = vmatprep.subr.mxu0 0.0
        %1352 = vmatpush1.xpose.msra.mxu0 0.0
        %1353 = vmatprep.subr.mxu0 0.0
        %1354 = vmatpush1.xpose.msra.mxu0 0.0
        %1355 = vmatprep.subr.mxu0 0.0
        %1356 = vmatpush1.xpose.msra.mxu0 0.0
        %1357 = vmatprep.subr.mxu0 0.0
        %1358 = vmatpush1.xpose.msra.mxu0 0.0
        %1359 = vmatprep.subr.mxu0 0.0
        %1360 = vmatpush1.xpose.msra.mxu0 %v1329
        %1361 = vmatprep.subr.mxu0 0.0
        %1362 = vmatpush1.xpose.msra.mxu0 %v1327
        %1363 = vmatprep.subr.mxu0 0.0
        %1364 = vmatpush2.xpose.msra.mxu0 0.0
        %1365 = vmatprep.subr.mxu0 0.0
        %1366 = vmatpush2.xpose.msra.mxu0 0.0
        %1367 = vmatprep.subr.mxu0 0.0
        %1368 = vmatpush2.xpose.msra.mxu0 0.0
        %1369 = vmatprep.subr.mxu0 0.0
        %1370 = vmatpush2.xpose.msra.mxu0 0.0
        %1371 = vmatprep.subr.mxu0 0.0
        %1372 = vmatpush2.xpose.msra.mxu0 0.0
        %1373 = vmatprep.subr.mxu0 0.0
        %1374 = vmatpush2.xpose.msra.mxu0 0.0
        %1375 = vmatprep.subr.mxu0 0.0
        %1376 = vmatpush2.xpose.msra.mxu0 0.0
        %1377 = vmatprep.subr.mxu0 0.0
        %1378 = vmatpush2.xpose.msra.mxu0 0.0
        %1379 = vmatprep.subr.mxu0 0.0
        %1380 = vmatpush2.xpose.msra.mxu0 0.0
        %1381 = vmatprep.subr.mxu0 0.0
        %1382 = vmatpush2.xpose.msra.mxu0 0.0
        %1383 = vmatprep.subr.mxu0 0.0
        %1384 = vmatpush2.xpose.msra.mxu0 0.0
        %1385 = vmatprep.subr.mxu0 0.0
        %1386 = vmatpush2.xpose.msra.mxu0 0.0
        %1387 = vmatprep.subr.mxu0 0.0
        %1388 = vmatpush2.xpose.msra.mxu0 0.0
        %1389 = vmatprep.subr.mxu0 0.0
        %1390 = vmatpush2.xpose.msra.mxu0 0.0
        %1391 = vmatprep.subr.mxu0 0.0
        %1392 = vmatpush2.xpose.msra.mxu0 0.0
        %1393 = vmatprep.subr.mxu0 0.0
        %1394 = vmatpush2.xpose.msra.mxu0 0.0
        %1395 = vmatprep.mubr.f32.mxu0 0.0
        %1396 = vmatmul.mubr.f32.gmra.mxu0 %v1323
        %v1397 = vpop.f32.mrf.mxu0
        %v1398 = vadd.f32 0.0, %v1397
        %v1399 = vpop.f32.mrf.mxu0
        %1400 = vmatprep.mubr.f32.mxu0 0.0
        %1401 = vmatmul.mubr.f32.gmra.mxu0 %v1325
        %v1402 = vpop.f32.mrf.mxu0
        %v1403 = vadd.f32 0.0, %v1402
        %v1404 = vpop.f32.mrf.mxu0
        %1405 = vdwg.mxu0
        %v1406 = vsel %vm713, -1e+20, %v1398
        %v1407 = vsel %vm714, -1e+20, %v1403
        %v1408 = vsel %vm805, %v1406, -inf
        %1409 = vmax.xlane.f32.xlu0 %v1408
        %v1410 = vpop.xlane.xlu0 %1409
        %v1411 = vsel %vm805, %v1407, -inf
        %1412 = vmax.xlane.f32.xlu0 %v1411
        %v1413 = vpop.xlane.xlu0 %1412
        %v1414 = vsub.f32 %v1406, %v1410
        %v1415 = vsub.f32 %v1407, %v1413
        %v1416 = vmul.f32 %v1414, 1.442695
        %v1417 = vpow.pop %v1416
        %v1418 = vmul.f32 %v1415, 1.442695
        %v1419 = vpow.pop %v1418
        %v1420 = vsel %vm805, %v1417, 0.0
        %1421 = vadd.xlane.f32.xlu0 %v1420
        %v1422 = vpop.xlane.xlu0 %1421
        %v1423 = vsel %vm805, %v1419, 0.0
        %1424 = vadd.xlane.f32.xlu0 %v1423
        %v1425 = vpop.xlane.xlu0 %1424
        %v1426 = vrcp.pop %v1422
        %v1427 = vrcp.pop %v1425
        %v1428 = vmul.f32 %v1417, %v1426
        %v1429 = vmul.f32 %v1419, %v1427
        %1430 = vrot.lane.b32.xlu0 %v699, 32
        %v1431 = vpop.permute.xlu0 %1430
        %1432 = vrot.lane.b32.xlu0 %v704, 32
        %v1433 = vpop.permute.xlu0 %1432
        %v1437 = vsel %vm805, %v1428, 0
        %v1440 = vsel %vm805, %v1429, 0
        %1442 = vmatprep.subr.mxu0 0.0
        %1443 = vmatpush1.msra.mxu0 0.0
        %1444 = vmatprep.subr.mxu0 0.0
        %1445 = vmatpush1.msra.mxu0 0.0
        %1446 = vmatprep.subr.mxu0 0.0
        %1447 = vmatpush1.msra.mxu0 0.0
        %1448 = vmatprep.subr.mxu0 0.0
        %1449 = vmatpush1.msra.mxu0 0.0
        %1450 = vmatprep.subr.mxu0 0.0
        %1451 = vmatpush1.msra.mxu0 0.0
        %1452 = vmatprep.subr.mxu0 0.0
        %1453 = vmatpush1.msra.mxu0 0.0
        %1454 = vmatprep.subr.mxu0 0.0
        %1455 = vmatpush1.msra.mxu0 0.0
        %1456 = vmatprep.subr.mxu0 0.0
        %1457 = vmatpush1.msra.mxu0 0.0
        %1458 = vmatprep.subr.mxu0 0.0
        %1459 = vmatpush1.msra.mxu0 0.0
        %1460 = vmatprep.subr.mxu0 0.0
        %1461 = vmatpush1.msra.mxu0 0.0
        %1462 = vmatprep.subr.mxu0 0.0
        %1463 = vmatpush1.msra.mxu0 0.0
        %1464 = vmatprep.subr.mxu0 0.0
        %1465 = vmatpush1.msra.mxu0 0.0
        %1466 = vmatprep.subr.mxu0 0.0
        %1467 = vmatpush1.msra.mxu0 0.0
        %1468 = vmatprep.subr.mxu0 0.0
        %1469 = vmatpush1.msra.mxu0 0.0
        %1470 = vmatprep.subr.mxu0 0.0
        %1471 = vmatpush1.msra.mxu0 %v1433
        %1472 = vmatprep.subr.mxu0 0.0
        %1473 = vmatpush1.msra.mxu0 %v1431
        %1474 = vmatprep.subr.mxu0 0.0
        %1475 = vmatpush2.msra.mxu0 0.0
        %1476 = vmatprep.subr.mxu0 0.0
        %1477 = vmatpush2.msra.mxu0 0.0
        %1478 = vmatprep.subr.mxu0 0.0
        %1479 = vmatpush2.msra.mxu0 0.0
        %1480 = vmatprep.subr.mxu0 0.0
        %1481 = vmatpush2.msra.mxu0 0.0
        %1482 = vmatprep.subr.mxu0 0.0
        %1483 = vmatpush2.msra.mxu0 0.0
        %1484 = vmatprep.subr.mxu0 0.0
        %1485 = vmatpush2.msra.mxu0 0.0
        %1486 = vmatprep.subr.mxu0 0.0
        %1487 = vmatpush2.msra.mxu0 0.0
        %1488 = vmatprep.subr.mxu0 0.0
        %1489 = vmatpush2.msra.mxu0 0.0
        %1490 = vmatprep.subr.mxu0 0.0
        %1491 = vmatpush2.msra.mxu0 0.0
        %1492 = vmatprep.subr.mxu0 0.0
        %1493 = vmatpush2.msra.mxu0 0.0
        %1494 = vmatprep.subr.mxu0 0.0
        %1495 = vmatpush2.msra.mxu0 0.0
        %1496 = vmatprep.subr.mxu0 0.0
        %1497 = vmatpush2.msra.mxu0 0.0
        %1498 = vmatprep.subr.mxu0 0.0
        %1499 = vmatpush2.msra.mxu0 0.0
        %1500 = vmatprep.subr.mxu0 0.0
        %1501 = vmatpush2.msra.mxu0 0.0
        %1502 = vmatprep.subr.mxu0 0.0
        %1503 = vmatpush2.msra.mxu0 0.0
        %1504 = vmatprep.subr.mxu0 0.0
        %1505 = vmatpush2.msra.mxu0 0.0
        %1506 = vmatprep.mubr.f32.mxu0 0.0
        %1507 = vmatmul.mubr.f32.gmra.mxu0 %v1437
        %v1508 = vpop.f32.mrf.mxu0
        %v1509 = vadd.f32 0.0, %v1508
        %v1510 = vpop.f32.mrf.mxu0
        %1511 = vmatprep.mubr.f32.mxu0 0.0
        %1512 = vmatmul.mubr.f32.gmra.mxu0 %v1440
        %v1513 = vpop.f32.mrf.mxu0
        %v1514 = vadd.f32 0.0, %v1513
        %v1515 = vpop.f32.mrf.mxu0
        %1516 = vdwg.mxu0
        %1519 = vrot.lane.b32.xlu0 %v1105, 32
        %v1520 = vpop.permute.xlu0 %1519
        %1521 = vrot.lane.b32.xlu0 %v1110, 32
        %v1522 = vpop.permute.xlu0 %1521
        %1527 = vrot.lane.b32.xlu0 %v1307, 64
        %v1528 = vpop.permute.xlu0 %1527
        %1529 = vrot.lane.b32.xlu0 %v1312, 64
        %v1530 = vpop.permute.xlu0 %1529
        %1535 = vrot.lane.b32.xlu0 %v1509, 96
        %v1536 = vpop.permute.xlu0 %1535
        %1537 = vrot.lane.b32.xlu0 %v1514, 96
        %v1538 = vpop.permute.xlu0 %1537
        %v1541 = vsel %vm715, %v901, %v1520
        %v1542 = vsel %vm715, %v906, %v1522
        %vm1543 = vcmask 523264
        %v1544 = vsel %vm1543, %v1541, %v1528
        %v1545 = vsel %vm1543, %v1542, %v1530
        %vm1546 = vcmask 785408
        %v1547 = vsel %vm1546, %v1544, %v1536
        %v1548 = vsel %vm1546, %v1545, %v1538
        %v1549 = vld [vmem:[#allocation2] sm:$0xff]
        %v1550 = vld [vmem:[#allocation2 + $0x8] sm:$0xff]
        %v1551 = vld [vmem:[#allocation2 + $0x10] sm:$0xff]
        %v1552 = vld [vmem:[#allocation2 + $0x18] sm:$0xff]
        %v1553 = vld [vmem:[#allocation2 + $0x20] sm:$0xff]
        %v1554 = vld [vmem:[#allocation2 + $0x28] sm:$0xff]
        %v1555 = vld [vmem:[#allocation2 + $0x30] sm:$0xff]
        %v1556 = vld [vmem:[#allocation2 + $0x38] sm:$0xff]
        %v1557 = vld [vmem:[#allocation2 + $0x40] sm:$0xff]
        %v1558 = vld [vmem:[#allocation2 + $0x48] sm:$0xff]
        %v1559 = vld [vmem:[#allocation2 + $0x50] sm:$0xff]
        %v1560 = vld [vmem:[#allocation2 + $0x58] sm:$0xff]
        %v1561 = vld [vmem:[#allocation2 + $0x60] sm:$0xff]
        %v1562 = vld [vmem:[#allocation2 + $0x68] sm:$0xff]
        %v1563 = vld [vmem:[#allocation2 + $0x70] sm:$0xff]
        %v1564 = vld [vmem:[#allocation2 + $0x78] sm:$0xff]
        %v1565 = vld [vmem:[%s4] sm:$0x1]
        %v1567 = vlaneseq
        %v1568 = vshrl.u32 %v1567, 7
        %v1569 = vsub.s32 0, %v1568
        %v1570 = vrot.slane %v1565, %v1569
        %1572 = vmatprep.subr.mxu0 0.0
        %1573 = vmatpush1.msra.mxu0 %v1564
        %1574 = vmatprep.subr.mxu0 0.0
        %1575 = vmatpush1.msra.mxu0 %v1563
        %1576 = vmatprep.subr.mxu0 0.0
        %1577 = vmatpush1.msra.mxu0 %v1562
        %1578 = vmatprep.subr.mxu0 0.0
        %1579 = vmatpush1.msra.mxu0 %v1561
        %1580 = vmatprep.subr.mxu0 0.0
        %1581 = vmatpush1.msra.mxu0 %v1560
        %1582 = vmatprep.subr.mxu0 0.0
        %1583 = vmatpush1.msra.mxu0 %v1559
        %1584 = vmatprep.subr.mxu0 0.0
        %1585 = vmatpush1.msra.mxu0 %v1558
        %1586 = vmatprep.subr.mxu0 0.0
        %1587 = vmatpush1.msra.mxu0 %v1557
        %1588 = vmatprep.subr.mxu0 0.0
        %1589 = vmatpush1.msra.mxu0 %v1556
        %1590 = vmatprep.subr.mxu0 0.0
        %1591 = vmatpush1.msra.mxu0 %v1555
        %1592 = vmatprep.subr.mxu0 0.0
        %1593 = vmatpush1.msra.mxu0 %v1554
        %1594 = vmatprep.subr.mxu0 0.0
        %1595 = vmatpush1.msra.mxu0 %v1553
        %1596 = vmatprep.subr.mxu0 0.0
        %1597 = vmatpush1.msra.mxu0 %v1552
        %1598 = vmatprep.subr.mxu0 0.0
        %1599 = vmatpush1.msra.mxu0 %v1551
        %1600 = vmatprep.subr.mxu0 0.0
        %1601 = vmatpush1.msra.mxu0 %v1550
        %1602 = vmatprep.subr.mxu0 0.0
        %1603 = vmatpush1.msra.mxu0 %v1549
        %1604 = vmatprep.subr.mxu0 0.0
        %1605 = vmatpush2.msra.mxu0 0.0
        %1606 = vmatprep.subr.mxu0 0.0
        %1607 = vmatpush2.msra.mxu0 0.0
        %1608 = vmatprep.subr.mxu0 0.0
        %1609 = vmatpush2.msra.mxu0 0.0
        %1610 = vmatprep.subr.mxu0 0.0
        %1611 = vmatpush2.msra.mxu0 0.0
        %1612 = vmatprep.subr.mxu0 0.0
        %1613 = vmatpush2.msra.mxu0 0.0
        %1614 = vmatprep.subr.mxu0 0.0
        %1615 = vmatpush2.msra.mxu0 0.0
        %1616 = vmatprep.subr.mxu0 0.0
        %1617 = vmatpush2.msra.mxu0 0.0
        %1618 = vmatprep.subr.mxu0 0.0
        %1619 = vmatpush2.msra.mxu0 0.0
        %1620 = vmatprep.subr.mxu0 0.0
        %1621 = vmatpush2.msra.mxu0 0.0
        %1622 = vmatprep.subr.mxu0 0.0
        %1623 = vmatpush2.msra.mxu0 0.0
        %1624 = vmatprep.subr.mxu0 0.0
        %1625 = vmatpush2.msra.mxu0 0.0
        %1626 = vmatprep.subr.mxu0 0.0
        %1627 = vmatpush2.msra.mxu0 0.0
        %1628 = vmatprep.subr.mxu0 0.0
        %1629 = vmatpush2.msra.mxu0 0.0
        %1630 = vmatprep.subr.mxu0 0.0
        %1631 = vmatpush2.msra.mxu0 0.0
        %1632 = vmatprep.subr.mxu0 0.0
        %1633 = vmatpush2.msra.mxu0 0.0
        %1634 = vmatprep.subr.mxu0 0.0
        %1635 = vmatpush2.msra.mxu0 0.0
        %1636 = vmatprep.mubr.f32.mxu0 0.0
        %1637 = vmatmul.mubr.f32.gmra.mxu0 %v1547
        %v1638 = vpop.f32.mrf.mxu0
        %v1639 = vadd.f32 %v1570, %v1638
        %v1640 = vpop.f32.mrf.mxu0
        %1641 = vmatprep.mubr.f32.mxu0 0.0
        %1642 = vmatmul.mubr.f32.gmra.mxu0 %v1548
        %v1643 = vpop.f32.mrf.mxu0
        %v1644 = vadd.f32 %v1570, %v1643
        %v1645 = vpop.f32.mrf.mxu0
        %1646 = vdwg.mxu0
        %v1647 = vadd.f32 %v1639, %v505
        %v1648 = vadd.f32 %v1644, %v506
        %v1649 = vld [vmem:[%s5] sm:$0x1]
        %v1650 = vld [vmem:[%s6] sm:$0x1]
        %1651 = vadd.xlane.f32.xlu0 %v1647
        %v1652 = vpop.xlane.xlu0 %1651
        %1653 = vadd.xlane.f32.xlu0 %v1648
        %v1654 = vpop.xlane.xlu0 %1653
        %v1655 = vrcp.pop 128.0
        %v1656 = vmul.f32 %v1652, %v1655
        %v1657 = vmul.f32 %v1654, %v1655
        %v1658 = vsub.f32 %v1647, %v1656
        %v1659 = vsub.f32 %v1648, %v1657
        %v1660 = vmul.f32 %v1658, %v1658
        %v1661 = vmul.f32 %v1659, %v1659
        %1662 = vadd.xlane.f32.xlu0 %v1660
        %v1663 = vpop.xlane.xlu0 %1662
        %1664 = vadd.xlane.f32.xlu0 %v1661
        %v1665 = vpop.xlane.xlu0 %1664
        %v1666 = vmul.f32 %v1663, %v1655
        %v1667 = vmul.f32 %v1665, %v1655
        %v1668 = vadd.f32 %v1666, 1e-05
        %v1669 = vadd.f32 %v1667, 1e-05
        %v1670 = vrsqrt.pop %v1668
        %v1671 = vrsqrt.pop %v1669
        %v1672 = vmul.f32 %v1658, %v1670
        %v1673 = vmul.f32 %v1659, %v1671
        %v1675 = vlaneseq
        %v1676 = vshrl.u32 %v1675, 7
        %v1677 = vsub.s32 0, %v1676
        %v1678 = vrot.slane %v1649, %v1677
        %v1680 = vmul.f32 %v1672, %v1678
        %v1681 = vmul.f32 %v1673, %v1678
        %v1683 = vlaneseq
        %v1684 = vshrl.u32 %v1683, 7
        %v1685 = vsub.s32 0, %v1684
        %v1686 = vrot.slane %v1650, %v1685
        %v1688 = vadd.f32 %v1680, %v1686
        %v1689 = vadd.f32 %v1681, %v1686
        %v1690 = vld [vmem:[#allocation4] sm:$0xff]
        %v1691 = vld [vmem:[#allocation4 + $0x8] sm:$0xff]
        %v1692 = vld [vmem:[#allocation4 + $0x10] sm:$0xff]
        %v1693 = vld [vmem:[#allocation4 + $0x18] sm:$0xff]
        %v1694 = vld [vmem:[#allocation4 + $0x20] sm:$0xff]
        %v1695 = vld [vmem:[#allocation4 + $0x28] sm:$0xff]
        %v1696 = vld [vmem:[#allocation4 + $0x30] sm:$0xff]
        %v1697 = vld [vmem:[#allocation4 + $0x38] sm:$0xff]
        %v1698 = vld [vmem:[#allocation4 + $0x40] sm:$0xff]
        %v1699 = vld [vmem:[#allocation4 + $0x48] sm:$0xff]
        %v1700 = vld [vmem:[#allocation4 + $0x50] sm:$0xff]
        %v1701 = vld [vmem:[#allocation4 + $0x58] sm:$0xff]
        %v1702 = vld [vmem:[#allocation4 + $0x60] sm:$0xff]
        %v1703 = vld [vmem:[#allocation4 + $0x68] sm:$0xff]
        %v1704 = vld [vmem:[#allocation4 + $0x70] sm:$0xff]
        %v1705 = vld [vmem:[#allocation4 + $0x78] sm:$0xff]
        %v1706 = vld [vmem:[#allocation4 + $0x80] sm:$0xff]
        %v1707 = vld [vmem:[#allocation4 + $0x88] sm:$0xff]
        %v1708 = vld [vmem:[#allocation4 + $0x90] sm:$0xff]
        %v1709 = vld [vmem:[#allocation4 + $0x98] sm:$0xff]
        %v1710 = vld [vmem:[#allocation4 + $0xa0] sm:$0xff]
        %v1711 = vld [vmem:[#allocation4 + $0xa8] sm:$0xff]
        %v1712 = vld [vmem:[#allocation4 + $0xb0] sm:$0xff]
        %v1713 = vld [vmem:[#allocation4 + $0xb8] sm:$0xff]
        %v1714 = vld [vmem:[#allocation4 + $0xc0] sm:$0xff]
        %v1715 = vld [vmem:[#allocation4 + $0xc8] sm:$0xff]
        %v1716 = vld [vmem:[#allocation4 + $0xd0] sm:$0xff]
        %v1717 = vld [vmem:[#allocation4 + $0xd8] sm:$0xff]
        %v1718 = vld [vmem:[#allocation4 + $0xe0] sm:$0xff]
        %v1719 = vld [vmem:[#allocation4 + $0xe8] sm:$0xff]
        %v1720 = vld [vmem:[#allocation4 + $0xf0] sm:$0xff]
        %v1721 = vld [vmem:[#allocation4 + $0xf8] sm:$0xff]
        %v1722 = vld [vmem:[#allocation4 + $0x100] sm:$0xff]
        %v1723 = vld [vmem:[#allocation4 + $0x108] sm:$0xff]
        %v1724 = vld [vmem:[#allocation4 + $0x110] sm:$0xff]
        %v1725 = vld [vmem:[#allocation4 + $0x118] sm:$0xff]
        %v1726 = vld [vmem:[#allocation4 + $0x120] sm:$0xff]
        %v1727 = vld [vmem:[#allocation4 + $0x128] sm:$0xff]
        %v1728 = vld [vmem:[#allocation4 + $0x130] sm:$0xff]
        %v1729 = vld [vmem:[#allocation4 + $0x138] sm:$0xff]
        %v1730 = vld [vmem:[#allocation4 + $0x140] sm:$0xff]
        %v1731 = vld [vmem:[#allocation4 + $0x148] sm:$0xff]
        %v1732 = vld [vmem:[#allocation4 + $0x150] sm:$0xff]
        %v1733 = vld [vmem:[#allocation4 + $0x158] sm:$0xff]
        %v1734 = vld [vmem:[#allocation4 + $0x160] sm:$0xff]
        %v1735 = vld [vmem:[#allocation4 + $0x168] sm:$0xff]
        %v1736 = vld [vmem:[#allocation4 + $0x170] sm:$0xff]
        %v1737 = vld [vmem:[#allocation4 + $0x178] sm:$0xff]
        %v1738 = vld [vmem:[#allocation4 + $0x180] sm:$0xff]
        %v1739 = vld [vmem:[#allocation4 + $0x188] sm:$0xff]
        %v1740 = vld [vmem:[#allocation4 + $0x190] sm:$0xff]
        %v1741 = vld [vmem:[#allocation4 + $0x198] sm:$0xff]
        %v1742 = vld [vmem:[#allocation4 + $0x1a0] sm:$0xff]
        %v1743 = vld [vmem:[#allocation4 + $0x1a8] sm:$0xff]
        %v1744 = vld [vmem:[#allocation4 + $0x1b0] sm:$0xff]
        %v1745 = vld [vmem:[#allocation4 + $0x1b8] sm:$0xff]
        %v1746 = vld [vmem:[#allocation4 + $0x1c0] sm:$0xff]
        %v1747 = vld [vmem:[#allocation4 + $0x1c8] sm:$0xff]
        %v1748 = vld [vmem:[#allocation4 + $0x1d0] sm:$0xff]
        %v1749 = vld [vmem:[#allocation4 + $0x1d8] sm:$0xff]
        %v1750 = vld [vmem:[#allocation4 + $0x1e0] sm:$0xff]
        %v1751 = vld [vmem:[#allocation4 + $0x1e8] sm:$0xff]
        %v1752 = vld [vmem:[#allocation4 + $0x1f0] sm:$0xff]
        %v1753 = vld [vmem:[#allocation4 + $0x1f8] sm:$0xff]
        %v1754 = vld [vmem:[%s8] sm:$0xf]
        %v1756 = vlaneseq
        %v1757 = vshrl.u32 %v1756, 7
        %v1758 = vsub.s32 0, %v1757
        %v1759 = vrot.slane %v1754, %v1758
        %v1760 = vlaneseq
        %v1761 = vshrl.u32 %v1760, 7
        %v1762 = vsub.s32 1, %v1761
        %v1763 = vrot.slane %v1754, %v1762
        %v1764 = vlaneseq
        %v1765 = vshrl.u32 %v1764, 7
        %v1766 = vsub.s32 2, %v1765
        %v1767 = vrot.slane %v1754, %v1766
        %v1768 = vlaneseq
        %v1769 = vshrl.u32 %v1768, 7
        %v1770 = vsub.s32 3, %v1769
        %v1771 = vrot.slane %v1754, %v1770
        %1776 = vmatprep.subr.mxu0 %v1751
        %1777 = vmatpush1.msra.mxu0 %v1750
        %1778 = vmatprep.subr.mxu0 %v1747
        %1779 = vmatpush1.msra.mxu0 %v1746
        %1780 = vmatprep.subr.mxu0 %v1743
        %1781 = vmatpush1.msra.mxu0 %v1742
        %1782 = vmatprep.subr.mxu0 %v1739
        %1783 = vmatpush1.msra.mxu0 %v1738
        %1784 = vmatprep.subr.mxu0 %v1735
        %1785 = vmatpush1.msra.mxu0 %v1734
        %1786 = vmatprep.subr.mxu0 %v1731
        %1787 = vmatpush1.msra.mxu0 %v1730
        %1788 = vmatprep.subr.mxu0 %v1727
        %1789 = vmatpush1.msra.mxu0 %v1726
        %1790 = vmatprep.subr.mxu0 %v1723
        %1791 = vmatpush1.msra.mxu0 %v1722
        %1792 = vmatprep.subr.mxu0 %v1719
        %1793 = vmatpush1.msra.mxu0 %v1718
        %1794 = vmatprep.subr.mxu0 %v1715
        %1795 = vmatpush1.msra.mxu0 %v1714
        %1796 = vmatprep.subr.mxu0 %v1711
        %1797 = vmatpush1.msra.mxu0 %v1710
        %1798 = vmatprep.subr.mxu0 %v1707
        %1799 = vmatpush1.msra.mxu0 %v1706
        %1800 = vmatprep.subr.mxu0 %v1703
        %1801 = vmatpush1.msra.mxu0 %v1702
        %1802 = vmatprep.subr.mxu0 %v1699
        %1803 = vmatpush1.msra.mxu0 %v1698
        %1804 = vmatprep.subr.mxu0 %v1695
        %1805 = vmatpush1.msra.mxu0 %v1694
        %1806 = vmatprep.subr.mxu0 %v1691
        %1807 = vmatpush1.msra.mxu0 %v1690
        %1808 = vmatprep.subr.mxu0 0.0
        %1809 = vmatpush2.msra.mxu0 0.0
        %1810 = vmatprep.subr.mxu0 0.0
        %1811 = vmatpush2.msra.mxu0 0.0
        %1812 = vmatprep.subr.mxu0 0.0
        %1813 = vmatpush2.msra.mxu0 0.0
        %1814 = vmatprep.subr.mxu0 0.0
        %1815 = vmatpush2.msra.mxu0 0.0
        %1816 = vmatprep.subr.mxu0 0.0
        %1817 = vmatpush2.msra.mxu0 0.0
        %1818 = vmatprep.subr.mxu0 0.0
        %1819 = vmatpush2.msra.mxu0 0.0
        %1820 = vmatprep.subr.mxu0 0.0
        %1821 = vmatpush2.msra.mxu0 0.0
        %1822 = vmatprep.subr.mxu0 0.0
        %1823 = vmatpush2.msra.mxu0 0.0
        %1824 = vmatprep.subr.mxu0 0.0
        %1825 = vmatpush2.msra.mxu0 0.0
        %1826 = vmatprep.subr.mxu0 0.0
        %1827 = vmatpush2.msra.mxu0 0.0
        %1828 = vmatprep.subr.mxu0 0.0
        %1829 = vmatpush2.msra.mxu0 0.0
        %1830 = vmatprep.subr.mxu0 0.0
        %1831 = vmatpush2.msra.mxu0 0.0
        %1832 = vmatprep.subr.mxu0 0.0
        %1833 = vmatpush2.msra.mxu0 0.0
        %1834 = vmatprep.subr.mxu0 0.0
        %1835 = vmatpush2.msra.mxu0 0.0
        %1836 = vmatprep.subr.mxu0 0.0
        %1837 = vmatpush2.msra.mxu0 0.0
        %1838 = vmatprep.subr.mxu0 0.0
        %1839 = vmatpush2.msra.mxu0 0.0
        %1840 = vmatprep.mubr.f32.mxu0 0.0
        %1841 = vmatmul.mubr.f32.gmra.mxu0 %v1688
        %v1842 = vpop.f32.mrf.mxu0
        %v1843 = vadd.f32 %v1759, %v1842
        %v1844 = vpop.f32.mrf.mxu0
        %v1845 = vadd.f32 %v1763, %v1844
        %1846 = vmatprep.mubr.f32.mxu0 0.0
        %1847 = vmatmul.mubr.f32.gmra.mxu0 %v1689
        %v1848 = vpop.f32.mrf.mxu0
        %v1849 = vadd.f32 %v1759, %v1848
        %v1850 = vpop.f32.mrf.mxu0
        %v1851 = vadd.f32 %v1763, %v1850
        %1852 = vdwg.mxu0
        %1853 = vmatprep.subr.mxu0 %v1753
        %1854 = vmatpush1.msra.mxu0 %v1752
        %1855 = vmatprep.subr.mxu0 %v1749
        %1856 = vmatpush1.msra.mxu0 %v1748
        %1857 = vmatprep.subr.mxu0 %v1745
        %1858 = vmatpush1.msra.mxu0 %v1744
        %1859 = vmatprep.subr.mxu0 %v1741
        %1860 = vmatpush1.msra.mxu0 %v1740
        %1861 = vmatprep.subr.mxu0 %v1737
        %1862 = vmatpush1.msra.mxu0 %v1736
        %1863 = vmatprep.subr.mxu0 %v1733
        %1864 = vmatpush1.msra.mxu0 %v1732
        %1865 = vmatprep.subr.mxu0 %v1729
        %1866 = vmatpush1.msra.mxu0 %v1728
        %1867 = vmatprep.subr.mxu0 %v1725
        %1868 = vmatpush1.msra.mxu0 %v1724
        %1869 = vmatprep.subr.mxu0 %v1721
        %1870 = vmatpush1.msra.mxu0 %v1720
        %1871 = vmatprep.subr.mxu0 %v1717
        %1872 = vmatpush1.msra.mxu0 %v1716
        %1873 = vmatprep.subr.mxu0 %v1713
        %1874 = vmatpush1.msra.mxu0 %v1712
        %1875 = vmatprep.subr.mxu0 %v1709
        %1876 = vmatpush1.msra.mxu0 %v1708
        %1877 = vmatprep.subr.mxu0 %v1705
        %1878 = vmatpush1.msra.mxu0 %v1704
        %1879 = vmatprep.subr.mxu0 %v1701
        %1880 = vmatpush1.msra.mxu0 %v1700
        %1881 = vmatprep.subr.mxu0 %v1697
        %1882 = vmatpush1.msra.mxu0 %v1696
        %1883 = vmatprep.subr.mxu0 %v1693
        %1884 = vmatpush1.msra.mxu0 %v1692
        %1885 = vmatprep.subr.mxu0 0.0
        %1886 = vmatpush2.msra.mxu0 0.0
        %1887 = vmatprep.subr.mxu0 0.0
        %1888 = vmatpush2.msra.mxu0 0.0
        %1889 = vmatprep.subr.mxu0 0.0
        %1890 = vmatpush2.msra.mxu0 0.0
        %1891 = vmatprep.subr.mxu0 0.0
        %1892 = vmatpush2.msra.mxu0 0.0
        %1893 = vmatprep.subr.mxu0 0.0
        %1894 = vmatpush2.msra.mxu0 0.0
        %1895 = vmatprep.subr.mxu0 0.0
        %1896 = vmatpush2.msra.mxu0 0.0
        %1897 = vmatprep.subr.mxu0 0.0
        %1898 = vmatpush2.msra.mxu0 0.0
        %1899 = vmatprep.subr.mxu0 0.0
        %1900 = vmatpush2.msra.mxu0 0.0
        %1901 = vmatprep.subr.mxu0 0.0
        %1902 = vmatpush2.msra.mxu0 0.0
        %1903 = vmatprep.subr.mxu0 0.0
        %1904 = vmatpush2.msra.mxu0 0.0
        %1905 = vmatprep.subr.mxu0 0.0
        %1906 = vmatpush2.msra.mxu0 0.0
        %1907 = vmatprep.subr.mxu0 0.0
        %1908 = vmatpush2.msra.mxu0 0.0
        %1909 = vmatprep.subr.mxu0 0.0
        %1910 = vmatpush2.msra.mxu0 0.0
        %1911 = vmatprep.subr.mxu0 0.0
        %1912 = vmatpush2.msra.mxu0 0.0
        %1913 = vmatprep.subr.mxu0 0.0
        %1914 = vmatpush2.msra.mxu0 0.0
        %1915 = vmatprep.subr.mxu0 0.0
        %1916 = vmatpush2.msra.mxu0 0.0
        %1917 = vmatprep.mubr.f32.mxu0 0.0
        %1918 = vmatmul.mubr.f32.gmra.mxu0 %v1688
        %v1919 = vpop.f32.mrf.mxu0
        %v1920 = vadd.f32 %v1767, %v1919
        %v1921 = vpop.f32.mrf.mxu0
        %v1922 = vadd.f32 %v1771, %v1921
        %1923 = vmatprep.mubr.f32.mxu0 0.0
        %1924 = vmatmul.mubr.f32.gmra.mxu0 %v1689
        %v1925 = vpop.f32.mrf.mxu0
        %v1926 = vadd.f32 %v1767, %v1925
        %v1927 = vpop.f32.mrf.mxu0
        %v1928 = vadd.f32 %v1771, %v1927
        %1929 = vdwg.mxu0
        %v1930 = vmax.f32 %v1843, 0.0
        %v1931 = vmax.f32 %v1845, 0.0
        %v1932 = vmax.f32 %v1920, 0.0
        %v1933 = vmax.f32 %v1922, 0.0
        %v1934 = vmax.f32 %v1849, 0.0
        %v1935 = vmax.f32 %v1851, 0.0
        %v1936 = vmax.f32 %v1926, 0.0
        %v1937 = vmax.f32 %v1928, 0.0
        %v1938 = vld [vmem:[#allocation6] sm:$0xff]
        %v1939 = vld [vmem:[#allocation6 + $0x8] sm:$0xff]
        %v1940 = vld [vmem:[#allocation6 + $0x10] sm:$0xff]
        %v1941 = vld [vmem:[#allocation6 + $0x18] sm:$0xff]
        %v1942 = vld [vmem:[#allocation6 + $0x20] sm:$0xff]
        %v1943 = vld [vmem:[#allocation6 + $0x28] sm:$0xff]
        %v1944 = vld [vmem:[#allocation6 + $0x30] sm:$0xff]
        %v1945 = vld [vmem:[#allocation6 + $0x38] sm:$0xff]
        %v1946 = vld [vmem:[#allocation6 + $0x40] sm:$0xff]
        %v1947 = vld [vmem:[#allocation6 + $0x48] sm:$0xff]
        %v1948 = vld [vmem:[#allocation6 + $0x50] sm:$0xff]
        %v1949 = vld [vmem:[#allocation6 + $0x58] sm:$0xff]
        %v1950 = vld [vmem:[#allocation6 + $0x60] sm:$0xff]
        %v1951 = vld [vmem:[#allocation6 + $0x68] sm:$0xff]
        %v1952 = vld [vmem:[#allocation6 + $0x70] sm:$0xff]
        %v1953 = vld [vmem:[#allocation6 + $0x78] sm:$0xff]
        %v1954 = vld [vmem:[#allocation6 + $0x80] sm:$0xff]
        %v1955 = vld [vmem:[#allocation6 + $0x88] sm:$0xff]
        %v1956 = vld [vmem:[#allocation6 + $0x90] sm:$0xff]
        %v1957 = vld [vmem:[#allocation6 + $0x98] sm:$0xff]
        %v1958 = vld [vmem:[#allocation6 + $0xa0] sm:$0xff]
        %v1959 = vld [vmem:[#allocation6 + $0xa8] sm:$0xff]
        %v1960 = vld [vmem:[#allocation6 + $0xb0] sm:$0xff]
        %v1961 = vld [vmem:[#allocation6 + $0xb8] sm:$0xff]
        %v1962 = vld [vmem:[#allocation6 + $0xc0] sm:$0xff]
        %v1963 = vld [vmem:[#allocation6 + $0xc8] sm:$0xff]
        %v1964 = vld [vmem:[#allocation6 + $0xd0] sm:$0xff]
        %v1965 = vld [vmem:[#allocation6 + $0xd8] sm:$0xff]
        %v1966 = vld [vmem:[#allocation6 + $0xe0] sm:$0xff]
        %v1967 = vld [vmem:[#allocation6 + $0xe8] sm:$0xff]
        %v1968 = vld [vmem:[#allocation6 + $0xf0] sm:$0xff]
        %v1969 = vld [vmem:[#allocation6 + $0xf8] sm:$0xff]
        %v1970 = vld [vmem:[#allocation6 + $0x100] sm:$0xff]
        %v1971 = vld [vmem:[#allocation6 + $0x108] sm:$0xff]
        %v1972 = vld [vmem:[#allocation6 + $0x110] sm:$0xff]
        %v1973 = vld [vmem:[#allocation6 + $0x118] sm:$0xff]
        %v1974 = vld [vmem:[#allocation6 + $0x120] sm:$0xff]
        %v1975 = vld [vmem:[#allocation6 + $0x128] sm:$0xff]
        %v1976 = vld [vmem:[#allocation6 + $0x130] sm:$0xff]
        %v1977 = vld [vmem:[#allocation6 + $0x138] sm:$0xff]
        %v1978 = vld [vmem:[#allocation6 + $0x140] sm:$0xff]
        %v1979 = vld [vmem:[#allocation6 + $0x148] sm:$0xff]
        %v1980 = vld [vmem:[#allocation6 + $0x150] sm:$0xff]
        %v1981 = vld [vmem:[#allocation6 + $0x158] sm:$0xff]
        %v1982 = vld [vmem:[#allocation6 + $0x160] sm:$0xff]
        %v1983 = vld [vmem:[#allocation6 + $0x168] sm:$0xff]
        %v1984 = vld [vmem:[#allocation6 + $0x170] sm:$0xff]
        %v1985 = vld [vmem:[#allocation6 + $0x178] sm:$0xff]
        %v1986 = vld [vmem:[#allocation6 + $0x180] sm:$0xff]
        %v1987 = vld [vmem:[#allocation6 + $0x188] sm:$0xff]
        %v1988 = vld [vmem:[#allocation6 + $0x190] sm:$0xff]
        %v1989 = vld [vmem:[#allocation6 + $0x198] sm:$0xff]
        %v1990 = vld [vmem:[#allocation6 + $0x1a0] sm:$0xff]
        %v1991 = vld [vmem:[#allocation6 + $0x1a8] sm:$0xff]
        %v1992 = vld [vmem:[#allocation6 + $0x1b0] sm:$0xff]
        %v1993 = vld [vmem:[#allocation6 + $0x1b8] sm:$0xff]
        %v1994 = vld [vmem:[#allocation6 + $0x1c0] sm:$0xff]
        %v1995 = vld [vmem:[#allocation6 + $0x1c8] sm:$0xff]
        %v1996 = vld [vmem:[#allocation6 + $0x1d0] sm:$0xff]
        %v1997 = vld [vmem:[#allocation6 + $0x1d8] sm:$0xff]
        %v1998 = vld [vmem:[#allocation6 + $0x1e0] sm:$0xff]
        %v1999 = vld [vmem:[#allocation6 + $0x1e8] sm:$0xff]
        %v2000 = vld [vmem:[#allocation6 + $0x1f0] sm:$0xff]
        %v2001 = vld [vmem:[#allocation6 + $0x1f8] sm:$0xff]
        %v2002 = vld [vmem:[%s10] sm:$0x1]
        %v2004 = vlaneseq
        %v2005 = vshrl.u32 %v2004, 7
        %v2006 = vsub.s32 0, %v2005
        %v2007 = vrot.slane %v2002, %v2006
        %2009 = vmatprep.subr.mxu0 0.0
        %2010 = vmatpush1.msra.mxu0 %v1953
        %2011 = vmatprep.subr.mxu0 0.0
        %2012 = vmatpush1.msra.mxu0 %v1952
        %2013 = vmatprep.subr.mxu0 0.0
        %2014 = vmatpush1.msra.mxu0 %v1951
        %2015 = vmatprep.subr.mxu0 0.0
        %2016 = vmatpush1.msra.mxu0 %v1950
        %2017 = vmatprep.subr.mxu0 0.0
        %2018 = vmatpush1.msra.mxu0 %v1949
        %2019 = vmatprep.subr.mxu0 0.0
        %2020 = vmatpush1.msra.mxu0 %v1948
        %2021 = vmatprep.subr.mxu0 0.0
        %2022 = vmatpush1.msra.mxu0 %v1947
        %2023 = vmatprep.subr.mxu0 0.0
        %2024 = vmatpush1.msra.mxu0 %v1946
        %2025 = vmatprep.subr.mxu0 0.0
        %2026 = vmatpush1.msra.mxu0 %v1945
        %2027 = vmatprep.subr.mxu0 0.0
        %2028 = vmatpush1.msra.mxu0 %v1944
        %2029 = vmatprep.subr.mxu0 0.0
        %2030 = vmatpush1.msra.mxu0 %v1943
        %2031 = vmatprep.subr.mxu0 0.0
        %2032 = vmatpush1.msra.mxu0 %v1942
        %2033 = vmatprep.subr.mxu0 0.0
        %2034 = vmatpush1.msra.mxu0 %v1941
        %2035 = vmatprep.subr.mxu0 0.0
        %2036 = vmatpush1.msra.mxu0 %v1940
        %2037 = vmatprep.subr.mxu0 0.0
        %2038 = vmatpush1.msra.mxu0 %v1939
        %2039 = vmatprep.subr.mxu0 0.0
        %2040 = vmatpush1.msra.mxu0 %v1938
        %2041 = vmatprep.subr.mxu0 0.0
        %2042 = vmatpush2.msra.mxu0 %v1969
        %2043 = vmatprep.subr.mxu0 0.0
        %2044 = vmatpush2.msra.mxu0 %v1968
        %2045 = vmatprep.subr.mxu0 0.0
        %2046 = vmatpush2.msra.mxu0 %v1967
        %2047 = vmatprep.subr.mxu0 0.0
        %2048 = vmatpush2.msra.mxu0 %v1966
        %2049 = vmatprep.subr.mxu0 0.0
        %2050 = vmatpush2.msra.mxu0 %v1965
        %2051 = vmatprep.subr.mxu0 0.0
        %2052 = vmatpush2.msra.mxu0 %v1964
        %2053 = vmatprep.subr.mxu0 0.0
        %2054 = vmatpush2.msra.mxu0 %v1963
        %2055 = vmatprep.subr.mxu0 0.0
        %2056 = vmatpush2.msra.mxu0 %v1962
        %2057 = vmatprep.subr.mxu0 0.0
        %2058 = vmatpush2.msra.mxu0 %v1961
        %2059 = vmatprep.subr.mxu0 0.0
        %2060 = vmatpush2.msra.mxu0 %v1960
        %2061 = vmatprep.subr.mxu0 0.0
        %2062 = vmatpush2.msra.mxu0 %v1959
        %2063 = vmatprep.subr.mxu0 0.0
        %2064 = vmatpush2.msra.mxu0 %v1958
        %2065 = vmatprep.subr.mxu0 0.0
        %2066 = vmatpush2.msra.mxu0 %v1957
        %2067 = vmatprep.subr.mxu0 0.0
        %2068 = vmatpush2.msra.mxu0 %v1956
        %2069 = vmatprep.subr.mxu0 0.0
        %2070 = vmatpush2.msra.mxu0 %v1955
        %2071 = vmatprep.subr.mxu0 0.0
        %2072 = vmatpush2.msra.mxu0 %v1954
        %2073 = vmatprep.mubr.f32.mxu0 %v1931
        %2074 = vmatmul.mubr.f32.gmra.mxu0 %v1930
        %v2075 = vpop.f32.mrf.mxu0
        %v2076 = vadd.f32 %v2007, %v2075
        %v2077 = vpop.f32.mrf.mxu0
        %2078 = vmatprep.mubr.f32.mxu0 %v1935
        %2079 = vmatmul.mubr.f32.gmra.mxu0 %v1934
        %v2080 = vpop.f32.mrf.mxu0
        %v2081 = vadd.f32 %v2007, %v2080
        %v2082 = vpop.f32.mrf.mxu0
        %2083 = vdwg.mxu0
        %2084 = vmatprep.subr.mxu0 0.0
        %2085 = vmatpush1.msra.mxu0 %v1985
        %2086 = vmatprep.subr.mxu0 0.0
        %2087 = vmatpush1.msra.mxu0 %v1984
        %2088 = vmatprep.subr.mxu0 0.0
        %2089 = vmatpush1.msra.mxu0 %v1983
        %2090 = vmatprep.subr.mxu0 0.0
        %2091 = vmatpush1.msra.mxu0 %v1982
        %2092 = vmatprep.subr.mxu0 0.0
        %2093 = vmatpush1.msra.mxu0 %v1981
        %2094 = vmatprep.subr.mxu0 0.0
        %2095 = vmatpush1.msra.mxu0 %v1980
        %2096 = vmatprep.subr.mxu0 0.0
        %2097 = vmatpush1.msra.mxu0 %v1979
        %2098 = vmatprep.subr.mxu0 0.0
        %2099 = vmatpush1.msra.mxu0 %v1978
        %2100 = vmatprep.subr.mxu0 0.0
        %2101 = vmatpush1.msra.mxu0 %v1977
        %2102 = vmatprep.subr.mxu0 0.0
        %2103 = vmatpush1.msra.mxu0 %v1976
        %2104 = vmatprep.subr.mxu0 0.0
        %2105 = vmatpush1.msra.mxu0 %v1975
        %2106 = vmatprep.subr.mxu0 0.0
        %2107 = vmatpush1.msra.mxu0 %v1974
        %2108 = vmatprep.subr.mxu0 0.0
        %2109 = vmatpush1.msra.mxu0 %v1973
        %2110 = vmatprep.subr.mxu0 0.0
        %2111 = vmatpush1.msra.mxu0 %v1972
        %2112 = vmatprep.subr.mxu0 0.0
        %2113 = vmatpush1.msra.mxu0 %v1971
        %2114 = vmatprep.subr.mxu0 0.0
        %2115 = vmatpush1.msra.mxu0 %v1970
        %2116 = vmatprep.subr.mxu0 0.0
        %2117 = vmatpush2.msra.mxu0 %v2001
        %2118 = vmatprep.subr.mxu0 0.0
        %2119 = vmatpush2.msra.mxu0 %v2000
        %2120 = vmatprep.subr.mxu0 0.0
        %2121 = vmatpush2.msra.mxu0 %v1999
        %2122 = vmatprep.subr.mxu0 0.0
        %2123 = vmatpush2.msra.mxu0 %v1998
        %2124 = vmatprep.subr.mxu0 0.0
        %2125 = vmatpush2.msra.mxu0 %v1997
        %2126 = vmatprep.subr.mxu0 0.0
        %2127 = vmatpush2.msra.mxu0 %v1996
        %2128 = vmatprep.subr.mxu0 0.0
        %2129 = vmatpush2.msra.mxu0 %v1995
        %2130 = vmatprep.subr.mxu0 0.0
        %2131 = vmatpush2.msra.mxu0 %v1994
        %2132 = vmatprep.subr.mxu0 0.0
        %2133 = vmatpush2.msra.mxu0 %v1993
        %2134 = vmatprep.subr.mxu0 0.0
        %2135 = vmatpush2.msra.mxu0 %v1992
        %2136 = vmatprep.subr.mxu0 0.0
        %2137 = vmatpush2.msra.mxu0 %v1991
        %2138 = vmatprep.subr.mxu0 0.0
        %2139 = vmatpush2.msra.mxu0 %v1990
        %2140 = vmatprep.subr.mxu0 0.0
        %2141 = vmatpush2.msra.mxu0 %v1989
        %2142 = vmatprep.subr.mxu0 0.0
        %2143 = vmatpush2.msra.mxu0 %v1988
        %2144 = vmatprep.subr.mxu0 0.0
        %2145 = vmatpush2.msra.mxu0 %v1987
        %2146 = vmatprep.subr.mxu0 0.0
        %2147 = vmatpush2.msra.mxu0 %v1986
        %2148 = vmatprep.mubr.f32.mxu0 %v1933
        %2149 = vmatmul.mubr.f32.gmra.mxu0 %v1932
        %v2150 = vpop.f32.mrf.mxu0
        %v2151 = vadd.f32 %v2076, %v2150
        %v2152 = vpop.f32.mrf.mxu0
        %2153 = vmatprep.mubr.f32.mxu0 %v1937
        %2154 = vmatmul.mubr.f32.gmra.mxu0 %v1936
        %v2155 = vpop.f32.mrf.mxu0
        %v2156 = vadd.f32 %v2081, %v2155
        %v2157 = vpop.f32.mrf.mxu0
        %2158 = vdwg.mxu0
        %v2159 = vadd.f32 %v2151, %v1688
        %v2160 = vadd.f32 %v2156, %v1689
        %v2161 = vld [vmem:[%s11] sm:$0x1]
        %v2162 = vld [vmem:[%s12] sm:$0x1]
        %2163 = vadd.xlane.f32.xlu0 %v2159
        %v2164 = vpop.xlane.xlu0 %2163
        %2165 = vadd.xlane.f32.xlu0 %v2160
        %v2166 = vpop.xlane.xlu0 %2165
        %v2167 = vmul.f32 %v2164, %v1655
        %v2168 = vmul.f32 %v2166, %v1655
        %v2169 = vsub.f32 %v2159, %v2167
        %v2170 = vsub.f32 %v2160, %v2168
        %v2171 = vmul.f32 %v2169, %v2169
        %v2172 = vmul.f32 %v2170, %v2170
        %2173 = vadd.xlane.f32.xlu0 %v2171
        %v2174 = vpop.xlane.xlu0 %2173
        %2175 = vadd.xlane.f32.xlu0 %v2172
        %v2176 = vpop.xlane.xlu0 %2175
        %v2177 = vmul.f32 %v2174, %v1655
        %v2178 = vmul.f32 %v2176, %v1655
        %v2179 = vadd.f32 %v2177, 1e-05
        %v2180 = vadd.f32 %v2178, 1e-05
        %v2181 = vrsqrt.pop %v2179
        %v2182 = vrsqrt.pop %v2180
        %v2183 = vmul.f32 %v2169, %v2181
        %v2184 = vmul.f32 %v2170, %v2182
        %v2186 = vlaneseq
        %v2187 = vshrl.u32 %v2186, 7
        %v2188 = vsub.s32 0, %v2187
        %v2189 = vrot.slane %v2161, %v2188
        %v2191 = vmul.f32 %v2183, %v2189
        %v2192 = vmul.f32 %v2184, %v2189
        %v2194 = vlaneseq
        %v2195 = vshrl.u32 %v2194, 7
        %v2196 = vsub.s32 0, %v2195
        %v2197 = vrot.slane %v2162, %v2196
        %v2199 = vadd.f32 %v2191, %v2197
        %v2200 = vadd.f32 %v2192, %v2197
        %2201 = vst [vmem:[%s504] sm:$0xff] %v2199
        %2202 = vst [vmem:[%s504 + $0x8] sm:$0xff] %v2200
        %p2203 = scmp.lt.s32.totalorder %s26, 1
        %s2204 = scalar_select %p2203, %s26, 1
        %s2205 = smul.addr %s2204, 2
        %s2206 = smul.addr %s2205, 8
        %s2207 = scalar_lea.vmem %s13, %s2206
        // Predicated region
        $region85: #{gpt2_forward.3} parent=71 // pred_check
          %p2208 = pneg %p327
        $region86: #{gpt2_forward.3} parent=71 // pred_check_branch
          %2210 = sbr.rel (%p2208) target = $region88
        $region87: #{gpt2_forward.3} parent=71 // pred_region
          _
        $region88: #{gpt2_forward.3} parent=71 // pred_fallthru
          _
      $region72: #{gpt2_forward.3} parent=5 // pred_fallthru
        _
      %p2211 = scmp.le.s32.totalorder 2, %s21
      // Predicated region
      $region89: #{gpt2_forward.3} parent=5 // pred_check
        %p2212 = pneg %p2211
      $region90: #{gpt2_forward.3} parent=5 // pred_check_branch
        %2214 = sbr.rel (%p2212) target = $region92
      $region91: #{gpt2_forward.3} parent=5 // pred_region
        %s2215 = ssub.s32 %s21, 2
        // Predicated region
        $region93: #{gpt2_forward.3} parent=91 // pred_check
          %p2216 = pneg %p333
        $region94: #{gpt2_forward.3} parent=91 // pred_check_branch
          %2218 = sbr.rel (%p2216) target = $region96
        $region95: #{gpt2_forward.3} parent=91 // pred_region
          %p2219 = scmp.lt.s32.totalorder %s27, 1
          %s2220 = scalar_select %p2219, %s27, 1
          %s2221 = smul.addr %s2220, 2
          %s2222 = smul.addr %s2221, 8
          %s2223 = scalar_lea.vmem %s13, %s2222
        $region96: #{gpt2_forward.3} parent=91 // pred_fallthru
          _
      $region92: #{gpt2_forward.3} parent=5 // pred_fallthru
        _
    $region6: #{gpt2_forward.3} parent=1 // loop_footer
      %s25 = sadd.s32 1, %s21
    $region7: #{gpt2_forward.3} parent=1 // loop_footer_branch
      %20 = sbr.rel target = $region3
    $region8: #{gpt2_forward.3} parent=1 // loop_exit
      _
    %2224 = vsyncpa [#allocation3], 1
    %s2225 = scalar_lea.sflag [#allocation3], 1
    %2226 = vsyncpa %s2225, 1
    %2227 = vsyncpa [#allocation5], 1

</llo_original>
